<compile_context>
chip_gen: v7x
topology: tpu7x:2x2x1
jax: 0.10.0
libtpu: 0.0.40
codegen_flags: <defaults>
</compile_context>

<pallas_src>
import functools

import jax
import jax.numpy as jnp
from jax.experimental import pallas as pl
from jax.experimental.pallas import tpu as pltpu


def _sepconv3d_kernel(x_ref, ws_ref, wt_ref, bias_ref, o_ref, acc_ref,
                      *, h, w, hw, t, cinp, cout):
    """Fused SepConv3d for one batch element (BN scales pre-folded into the weights).

    x_ref   : (T, H+2, W+2, Cinp)  zero-padded channels-last input
    ws_ref  : (9, Cinp, Cout)      spatial taps (index dy*3+dx), BN_s scale folded in
    wt_ref  : (3, Cout, Cout)      temporal taps, BN_t scale folded in
    bias_ref: (2, Cout)            row 0: BN_s bias, row 1: BN_t bias
    o_ref   : (Cout, T*H*W)        lane-dense transposed output
    acc_ref : (T*H*W, Cout) VMEM   temporal-stage accumulator
    """
    m = t * hw

    # ---- spatial (1,3,3) conv: 9 in-kernel taps, accumulating MXU dots --------------
    acc = jnp.zeros((m, cout), jnp.float32)
    for dy in range(3):
        for dx in range(3):
            tap = x_ref[:, dy:dy + h, dx:dx + w, :].reshape(m, cinp)
            acc = acc + jnp.dot(tap, ws_ref[dy * 3 + dx],
                                preferred_element_type=jnp.float32)
    mid = jnp.maximum(acc + bias_ref[0:1, :], 0.0)                    # (M, Cout)

    # ---- temporal (3,1,1) conv: ref-sliced accumulation (no pad / concat) -----------
    # Center tap covers every output frame.
    acc_ref[...] = jnp.dot(mid, wt_ref[1], preferred_element_type=jnp.float32)
    if t > 1:
        # tap t-1 contributes to output frames 1..T-1 (from mid frames 0..T-2)
        acc_ref[pl.ds(hw, m - hw), :] = acc_ref[pl.ds(hw, m - hw), :] + jnp.dot(
            mid[:m - hw, :], wt_ref[0], preferred_element_type=jnp.float32)
        # tap t+1 contributes to output frames 0..T-2 (from mid frames 1..T-1)
        acc_ref[pl.ds(0, m - hw), :] = acc_ref[pl.ds(0, m - hw), :] + jnp.dot(
            mid[hw:, :], wt_ref[2], preferred_element_type=jnp.float32)
    z = jnp.maximum(acc_ref[...] + bias_ref[1:2, :], 0.0)             # (M, Cout)

    # ---- lane-dense (Cout, M) store: transpose on the MXU via identity matmul -------
    eye = (jax.lax.broadcasted_iota(jnp.int32, (cout, cout), 0) ==
           jax.lax.broadcasted_iota(jnp.int32, (cout, cout), 1)).astype(jnp.float32)
    o_ref[...] = jax.lax.dot_general(eye, z, (((1,), (1,)), ((), ())),
                                     preferred_element_type=jnp.float32)


def sepconv3d_pallas(x_ncthw, ws, wt, scale_s, bias_s, scale_t, bias_t):
    """x_ncthw: (N, Cin, T, H, W) float32 -> (N, Cout, T, H, W) float32."""
    N, Cin, T, H, W = x_ncthw.shape
    Cout = ws.shape[-1]
    cinp = ((Cin + 7) // 8) * 8                  # pad channels 30 -> 32
    HW = H * W
    M = T * HW

    # ---- wrapper-side glue: one transpose + one pad ---------------------------------
    x = jnp.transpose(x_ncthw, (0, 2, 3, 4, 1)).astype(jnp.float32)        # (N,T,H,W,Cin)
    x = jnp.pad(x, ((0, 0), (0, 0), (1, 1), (1, 1), (0, cinp - Cin)))      # (N,T,H+2,W+2,cinp)

    # Fold BN scales into the conv weights (tiny, traced once under jit).
    ws_f = jnp.pad(ws.astype(jnp.float32) * scale_s.astype(jnp.float32),
                   ((0, 0), (0, 0), (0, cinp - Cin), (0, 0))).reshape(9, cinp, Cout)
    wt_f = wt.astype(jnp.float32) * scale_t.astype(jnp.float32)            # (3, Cout, Cout)
    bias2 = jnp.stack([bias_s, bias_t], axis=0).astype(jnp.float32)        # (2, Cout)

    out = pl.pallas_call(
        functools.partial(_sepconv3d_kernel,
                          h=H, w=W, hw=HW, t=T, cinp=cinp, cout=Cout),
        out_shape=jax.ShapeDtypeStruct((N, Cout, M), jnp.float32),
        grid=(N,),
        in_specs=[
            pl.BlockSpec((None, T, H + 2, W + 2, cinp), lambda n: (n, 0, 0, 0, 0)),
            pl.BlockSpec((9, cinp, Cout), lambda n: (0, 0, 0)),
            pl.BlockSpec((3, Cout, Cout), lambda n: (0, 0, 0)),
            pl.BlockSpec((2, Cout), lambda n: (0, 0)),
        ],
        out_specs=pl.BlockSpec((None, Cout, M), lambda n: (n, 0, 0)),
        scratch_shapes=[pltpu.VMEM((M, Cout), jnp.float32)],
        compiler_params=pltpu.CompilerParams(dimension_semantics=("parallel",)),
    )(x, ws_f, wt_f, bias2)

    # (N, Cout, T*H*W) -> NCDHW is a pure reshape (no transpose HLO).
    return out.reshape(N, Cout, T, H, W)


def ref_forward(x_ncthw, ws, wt, scale_s, bias_s, scale_t, bias_t):
    """Pure-JAX reference using lax.conv_general_dilated (cross-correlation, like torch)."""
    N, Cin, T, H, W = x_ncthw.shape
    Cout = ws.shape[-1]
    x = jnp.transpose(x_ncthw, (0, 2, 3, 4, 1))            # (N,T,H,W,Cin)

    # spatial (1,3,3)
    x2 = x.reshape(N * T, H, W, Cin)
    y2 = jax.lax.conv_general_dilated(
        x2, ws, window_strides=(1, 1), padding=((1, 1), (1, 1)),
        dimension_numbers=("NHWC", "HWIO", "NHWC"))
    y = jnp.maximum(y2 * scale_s + bias_s, 0.0).reshape(N, T, H, W, Cout)

    # temporal (3,1,1)
    yt = y.reshape(N, T, H * W, Cout).transpose(0, 2, 1, 3).reshape(N * H * W, T, Cout)
    z = jax.lax.conv_general_dilated(
        yt, wt, window_strides=(1,), padding=((1, 1),),
        dimension_numbers=("NWC", "WIO", "NWC"))
    z = jnp.maximum(z * scale_t + bias_t, 0.0)
    z = z.reshape(N, H * W, T, Cout).transpose(0, 2, 1, 3).reshape(N, T, H, W, Cout)
    return jnp.transpose(z, (0, 4, 1, 2, 3))                # NCDHW


def fold_bn(gamma, beta, mean, var, eps=1e-3):
    scale = gamma / jnp.sqrt(var + eps)
    return scale, beta - mean * scale


if __name__ == "__main__":
    key = jax.random.PRNGKey(0)
    ks = jax.random.split(key, 12)

    N, Cin, Cout, T, H, W = 2, 30, 64, 4, 8, 8

    x = jax.random.normal(ks[0], (N, Cin, T, H, W), jnp.float32)

    # Conv weights (no bias, as in the module). ws: (kh, kw, Cin, Cout); wt: (kt, Cout, Cout)
    ws = 0.1 * jax.random.normal(ks[1], (3, 3, Cin, Cout), jnp.float32)
    wt = 0.1 * jax.random.normal(ks[2], (3, Cout, Cout), jnp.float32)

    # BatchNorm params (inference form), initialized deterministically in-script.
    g_s = jax.random.uniform(ks[3], (Cout,), jnp.float32, 0.5, 1.5)
    b_s = 0.1 * jax.random.normal(ks[4], (Cout,), jnp.float32)
    m_s = 0.1 * jax.random.normal(ks[5], (Cout,), jnp.float32)
    v_s = jax.random.uniform(ks[6], (Cout,), jnp.float32, 0.5, 1.5)
    g_t = jax.random.uniform(ks[7], (Cout,), jnp.float32, 0.5, 1.5)
    b_t = 0.1 * jax.random.normal(ks[8], (Cout,), jnp.float32)
    m_t = 0.1 * jax.random.normal(ks[9], (Cout,), jnp.float32)
    v_t = jax.random.uniform(ks[10], (Cout,), jnp.float32, 0.5, 1.5)

    scale_s, bias_s = fold_bn(g_s, b_s, m_s, v_s)
    scale_t, bias_t = fold_bn(g_t, b_t, m_t, v_t)

    run = jax.jit(sepconv3d_pallas)
    out = run(x, ws, wt, scale_s, bias_s, scale_t, bias_t)
    out = jax.block_until_ready(out)

    ref = ref_forward(x, ws, wt, scale_s, bias_s, scale_t, bias_t)
    if not jnp.allclose(out, ref, rtol=1e-3, atol=1e-3):
        raise AssertionError("Pallas SepConv3d output mismatch vs JAX reference")

    assert out.shape == (N, Cout, T, H, W)
    print("KERNEL_OK")
</pallas_src>

<mosaic_0001>
module attributes {stable_mosaic.version = 11 : i64} {
  func.func @_sepconv3d_kernel(%arg0: i32, %arg1: memref<1x4x10x10x32xf32, #tpu.memory_space<vmem>>, %arg2: memref<9x32x64xf32, #tpu.memory_space<vmem>>, %arg3: memref<3x64x64xf32, #tpu.memory_space<vmem>>, %arg4: memref<2x64xf32, #tpu.memory_space<vmem>>, %arg5: memref<1x64x256xf32, #tpu.memory_space<vmem>>, %arg6: memref<256x64xf32, #tpu.memory_space<vmem>>) attributes {dimension_semantics = [#tpu.dimension_semantics<parallel>], iteration_bounds = array<i64: 2>, scalar_prefetch = 0 : i64, scratch_operands = 1 : i64, tpu.core_type = #tpu.core_type<tc>, window_params = [{transform_indices = @transform_0, window_bounds = array<i64: 1, 4, 10, 10, 32>}, {pipeline_mode = #tpu.pipeline_mode<synchronous>, transform_indices = @transform_1, window_bounds = array<i64: 9, 32, 64>}, {pipeline_mode = #tpu.pipeline_mode<synchronous>, transform_indices = @transform_2, window_bounds = array<i64: 3, 64, 64>}, {pipeline_mode = #tpu.pipeline_mode<synchronous>, transform_indices = @transform_3, window_bounds = array<i64: 2, 64>}, {transform_indices = @transform_4, window_bounds = array<i64: 1, 64, 256>}]} {
    %cst = arith.constant 0.000000e+00 : f32
    %0 = vector.broadcast %cst : f32 to vector<256x64xf32>
    %c0 = arith.constant 0 : index
    %c0_0 = arith.constant 0 : index
    %c0_1 = arith.constant 0 : index
    %c0_2 = arith.constant 0 : index
    %c0_3 = arith.constant 0 : index
    %1 = vector.load %arg1[%c0, %c0_0, %c0_1, %c0_2, %c0_3] : memref<1x4x10x10x32xf32, #tpu.memory_space<vmem>>, vector<1x4x8x8x32xf32>
    %2 = vector.shape_cast %1 : vector<1x4x8x8x32xf32> to vector<4x8x8x32xf32>
    %3 = vector.shape_cast %2 : vector<4x8x8x32xf32> to vector<256x32xf32>
    %c0_4 = arith.constant 0 : index
    %c0_5 = arith.constant 0 : index
    %c0_6 = arith.constant 0 : index
    %4 = vector.load %arg2[%c0_4, %c0_5, %c0_6] : memref<9x32x64xf32, #tpu.memory_space<vmem>>, vector<1x32x64xf32>
    %5 = vector.shape_cast %4 : vector<1x32x64xf32> to vector<32x64xf32>
    %cst_7 = arith.constant dense<0.000000e+00> : vector<256x64xf32>
    %6 = tpu.matmul %3, %5, %cst_7 {dimension_numbers = #tpu.dot_dimension_numbers<[1], [0], [0], [1], [0, 0, 1, 1], [], []>} : vector<256x32xf32>, vector<32x64xf32>, vector<256x64xf32> -> vector<256x64xf32>
    %7 = arith.addf %0, %6 : vector<256x64xf32>
    %c0_8 = arith.constant 0 : index
    %c0_9 = arith.constant 0 : index
    %c0_10 = arith.constant 0 : index
    %c1 = arith.constant 1 : index
    %c0_11 = arith.constant 0 : index
    %8 = vector.load %arg1[%c0_8, %c0_9, %c0_10, %c1, %c0_11] : memref<1x4x10x10x32xf32, #tpu.memory_space<vmem>>, vector<1x4x8x8x32xf32>
    %9 = vector.shape_cast %8 : vector<1x4x8x8x32xf32> to vector<4x8x8x32xf32>
    %10 = vector.shape_cast %9 : vector<4x8x8x32xf32> to vector<256x32xf32>
    %c1_12 = arith.constant 1 : index
    %c0_13 = arith.constant 0 : index
    %c0_14 = arith.constant 0 : index
    %11 = vector.load %arg2[%c1_12, %c0_13, %c0_14] : memref<9x32x64xf32, #tpu.memory_space<vmem>>, vector<1x32x64xf32>
    %12 = vector.shape_cast %11 : vector<1x32x64xf32> to vector<32x64xf32>
    %cst_15 = arith.constant dense<0.000000e+00> : vector<256x64xf32>
    %13 = tpu.matmul %10, %12, %cst_15 {dimension_numbers = #tpu.dot_dimension_numbers<[1], [0], [0], [1], [0, 0, 1, 1], [], []>} : vector<256x32xf32>, vector<32x64xf32>, vector<256x64xf32> -> vector<256x64xf32>
    %14 = arith.addf %7, %13 : vector<256x64xf32>
    %c0_16 = arith.constant 0 : index
    %c0_17 = arith.constant 0 : index
    %c0_18 = arith.constant 0 : index
    %c2 = arith.constant 2 : index
    %c0_19 = arith.constant 0 : index
    %15 = vector.load %arg1[%c0_16, %c0_17, %c0_18, %c2, %c0_19] : memref<1x4x10x10x32xf32, #tpu.memory_space<vmem>>, vector<1x4x8x8x32xf32>
    %16 = vector.shape_cast %15 : vector<1x4x8x8x32xf32> to vector<4x8x8x32xf32>
    %17 = vector.shape_cast %16 : vector<4x8x8x32xf32> to vector<256x32xf32>
    %c2_20 = arith.constant 2 : index
    %c0_21 = arith.constant 0 : index
    %c0_22 = arith.constant 0 : index
    %18 = vector.load %arg2[%c2_20, %c0_21, %c0_22] : memref<9x32x64xf32, #tpu.memory_space<vmem>>, vector<1x32x64xf32>
    %19 = vector.shape_cast %18 : vector<1x32x64xf32> to vector<32x64xf32>
    %cst_23 = arith.constant dense<0.000000e+00> : vector<256x64xf32>
    %20 = tpu.matmul %17, %19, %cst_23 {dimension_numbers = #tpu.dot_dimension_numbers<[1], [0], [0], [1], [0, 0, 1, 1], [], []>} : vector<256x32xf32>, vector<32x64xf32>, vector<256x64xf32> -> vector<256x64xf32>
    %21 = arith.addf %14, %20 : vector<256x64xf32>
    %c0_24 = arith.constant 0 : index
    %c0_25 = arith.constant 0 : index
    %c1_26 = arith.constant 1 : index
    %c0_27 = arith.constant 0 : index
    %c0_28 = arith.constant 0 : index
    %22 = vector.load %arg1[%c0_24, %c0_25, %c1_26, %c0_27, %c0_28] : memref<1x4x10x10x32xf32, #tpu.memory_space<vmem>>, vector<1x4x8x8x32xf32>
    %23 = vector.shape_cast %22 : vector<1x4x8x8x32xf32> to vector<4x8x8x32xf32>
    %24 = vector.shape_cast %23 : vector<4x8x8x32xf32> to vector<256x32xf32>
    %c3 = arith.constant 3 : index
    %c0_29 = arith.constant 0 : index
    %c0_30 = arith.constant 0 : index
    %25 = vector.load %arg2[%c3, %c0_29, %c0_30] : memref<9x32x64xf32, #tpu.memory_space<vmem>>, vector<1x32x64xf32>
    %26 = vector.shape_cast %25 : vector<1x32x64xf32> to vector<32x64xf32>
    %cst_31 = arith.constant dense<0.000000e+00> : vector<256x64xf32>
    %27 = tpu.matmul %24, %26, %cst_31 {dimension_numbers = #tpu.dot_dimension_numbers<[1], [0], [0], [1], [0, 0, 1, 1], [], []>} : vector<256x32xf32>, vector<32x64xf32>, vector<256x64xf32> -> vector<256x64xf32>
    %28 = arith.addf %21, %27 : vector<256x64xf32>
    %c0_32 = arith.constant 0 : index
    %c0_33 = arith.constant 0 : index
    %c1_34 = arith.constant 1 : index
    %c1_35 = arith.constant 1 : index
    %c0_36 = arith.constant 0 : index
    %29 = vector.load %arg1[%c0_32, %c0_33, %c1_34, %c1_35, %c0_36] : memref<1x4x10x10x32xf32, #tpu.memory_space<vmem>>, vector<1x4x8x8x32xf32>
    %30 = vector.shape_cast %29 : vector<1x4x8x8x32xf32> to vector<4x8x8x32xf32>
    %31 = vector.shape_cast %30 : vector<4x8x8x32xf32> to vector<256x32xf32>
    %c4 = arith.constant 4 : index
    %c0_37 = arith.constant 0 : index
    %c0_38 = arith.constant 0 : index
    %32 = vector.load %arg2[%c4, %c0_37, %c0_38] : memref<9x32x64xf32, #tpu.memory_space<vmem>>, vector<1x32x64xf32>
    %33 = vector.shape_cast %32 : vector<1x32x64xf32> to vector<32x64xf32>
    %cst_39 = arith.constant dense<0.000000e+00> : vector<256x64xf32>
    %34 = tpu.matmul %31, %33, %cst_39 {dimension_numbers = #tpu.dot_dimension_numbers<[1], [0], [0], [1], [0, 0, 1, 1], [], []>} : vector<256x32xf32>, vector<32x64xf32>, vector<256x64xf32> -> vector<256x64xf32>
    %35 = arith.addf %28, %34 : vector<256x64xf32>
    %c0_40 = arith.constant 0 : index
    %c0_41 = arith.constant 0 : index
    %c1_42 = arith.constant 1 : index
    %c2_43 = arith.constant 2 : index
    %c0_44 = arith.constant 0 : index
    %36 = vector.load %arg1[%c0_40, %c0_41, %c1_42, %c2_43, %c0_44] : memref<1x4x10x10x32xf32, #tpu.memory_space<vmem>>, vector<1x4x8x8x32xf32>
    %37 = vector.shape_cast %36 : vector<1x4x8x8x32xf32> to vector<4x8x8x32xf32>
    %38 = vector.shape_cast %37 : vector<4x8x8x32xf32> to vector<256x32xf32>
    %c5 = arith.constant 5 : index
    %c0_45 = arith.constant 0 : index
    %c0_46 = arith.constant 0 : index
    %39 = vector.load %arg2[%c5, %c0_45, %c0_46] : memref<9x32x64xf32, #tpu.memory_space<vmem>>, vector<1x32x64xf32>
    %40 = vector.shape_cast %39 : vector<1x32x64xf32> to vector<32x64xf32>
    %cst_47 = arith.constant dense<0.000000e+00> : vector<256x64xf32>
    %41 = tpu.matmul %38, %40, %cst_47 {dimension_numbers = #tpu.dot_dimension_numbers<[1], [0], [0], [1], [0, 0, 1, 1], [], []>} : vector<256x32xf32>, vector<32x64xf32>, vector<256x64xf32> -> vector<256x64xf32>
    %42 = arith.addf %35, %41 : vector<256x64xf32>
    %c0_48 = arith.constant 0 : index
    %c0_49 = arith.constant 0 : index
    %c2_50 = arith.constant 2 : index
    %c0_51 = arith.constant 0 : index
    %c0_52 = arith.constant 0 : index
    %43 = vector.load %arg1[%c0_48, %c0_49, %c2_50, %c0_51, %c0_52] : memref<1x4x10x10x32xf32, #tpu.memory_space<vmem>>, vector<1x4x8x8x32xf32>
    %44 = vector.shape_cast %43 : vector<1x4x8x8x32xf32> to vector<4x8x8x32xf32>
    %45 = vector.shape_cast %44 : vector<4x8x8x32xf32> to vector<256x32xf32>
    %c6 = arith.constant 6 : index
    %c0_53 = arith.constant 0 : index
    %c0_54 = arith.constant 0 : index
    %46 = vector.load %arg2[%c6, %c0_53, %c0_54] : memref<9x32x64xf32, #tpu.memory_space<vmem>>, vector<1x32x64xf32>
    %47 = vector.shape_cast %46 : vector<1x32x64xf32> to vector<32x64xf32>
    %cst_55 = arith.constant dense<0.000000e+00> : vector<256x64xf32>
    %48 = tpu.matmul %45, %47, %cst_55 {dimension_numbers = #tpu.dot_dimension_numbers<[1], [0], [0], [1], [0, 0, 1, 1], [], []>} : vector<256x32xf32>, vector<32x64xf32>, vector<256x64xf32> -> vector<256x64xf32>
    %49 = arith.addf %42, %48 : vector<256x64xf32>
    %c0_56 = arith.constant 0 : index
    %c0_57 = arith.constant 0 : index
    %c2_58 = arith.constant 2 : index
    %c1_59 = arith.constant 1 : index
    %c0_60 = arith.constant 0 : index
    %50 = vector.load %arg1[%c0_56, %c0_57, %c2_58, %c1_59, %c0_60] : memref<1x4x10x10x32xf32, #tpu.memory_space<vmem>>, vector<1x4x8x8x32xf32>
    %51 = vector.shape_cast %50 : vector<1x4x8x8x32xf32> to vector<4x8x8x32xf32>
    %52 = vector.shape_cast %51 : vector<4x8x8x32xf32> to vector<256x32xf32>
    %c7 = arith.constant 7 : index
    %c0_61 = arith.constant 0 : index
    %c0_62 = arith.constant 0 : index
    %53 = vector.load %arg2[%c7, %c0_61, %c0_62] : memref<9x32x64xf32, #tpu.memory_space<vmem>>, vector<1x32x64xf32>
    %54 = vector.shape_cast %53 : vector<1x32x64xf32> to vector<32x64xf32>
    %cst_63 = arith.constant dense<0.000000e+00> : vector<256x64xf32>
    %55 = tpu.matmul %52, %54, %cst_63 {dimension_numbers = #tpu.dot_dimension_numbers<[1], [0], [0], [1], [0, 0, 1, 1], [], []>} : vector<256x32xf32>, vector<32x64xf32>, vector<256x64xf32> -> vector<256x64xf32>
    %56 = arith.addf %49, %55 : vector<256x64xf32>
    %c0_64 = arith.constant 0 : index
    %c0_65 = arith.constant 0 : index
    %c2_66 = arith.constant 2 : index
    %c2_67 = arith.constant 2 : index
    %c0_68 = arith.constant 0 : index
    %57 = vector.load %arg1[%c0_64, %c0_65, %c2_66, %c2_67, %c0_68] : memref<1x4x10x10x32xf32, #tpu.memory_space<vmem>>, vector<1x4x8x8x32xf32>
    %58 = vector.shape_cast %57 : vector<1x4x8x8x32xf32> to vector<4x8x8x32xf32>
    %59 = vector.shape_cast %58 : vector<4x8x8x32xf32> to vector<256x32xf32>
    %c8 = arith.constant 8 : index
    %c0_69 = arith.constant 0 : index
    %c0_70 = arith.constant 0 : index
    %60 = vector.load %arg2[%c8, %c0_69, %c0_70] : memref<9x32x64xf32, #tpu.memory_space<vmem>>, vector<1x32x64xf32>
    %61 = vector.shape_cast %60 : vector<1x32x64xf32> to vector<32x64xf32>
    %cst_71 = arith.constant dense<0.000000e+00> : vector<256x64xf32>
    %62 = tpu.matmul %59, %61, %cst_71 {dimension_numbers = #tpu.dot_dimension_numbers<[1], [0], [0], [1], [0, 0, 1, 1], [], []>} : vector<256x32xf32>, vector<32x64xf32>, vector<256x64xf32> -> vector<256x64xf32>
    %63 = arith.addf %56, %62 : vector<256x64xf32>
    %c0_72 = arith.constant 0 : index
    %c0_73 = arith.constant 0 : index
    %64 = vector.load %arg4[%c0_72, %c0_73] : memref<2x64xf32, #tpu.memory_space<vmem>>, vector<1x64xf32>
    %65 = vector.broadcast %64 : vector<1x64xf32> to vector<256x64xf32>
    %66 = arith.addf %63, %65 : vector<256x64xf32>
    %cst_74 = arith.constant 0.000000e+00 : f32
    %67 = vector.broadcast %cst_74 : f32 to vector<256x64xf32>
    %68 = arith.maximumf %66, %67 : vector<256x64xf32>
    %c1_75 = arith.constant 1 : index
    %c0_76 = arith.constant 0 : index
    %c0_77 = arith.constant 0 : index
    %69 = vector.load %arg3[%c1_75, %c0_76, %c0_77] : memref<3x64x64xf32, #tpu.memory_space<vmem>>, vector<1x64x64xf32>
    %70 = vector.shape_cast %69 : vector<1x64x64xf32> to vector<64x64xf32>
    %cst_78 = arith.constant dense<0.000000e+00> : vector<256x64xf32>
    %71 = tpu.matmul %68, %70, %cst_78 {dimension_numbers = #tpu.dot_dimension_numbers<[1], [0], [0], [1], [0, 0, 1, 1], [], []>} : vector<256x64xf32>, vector<64x64xf32>, vector<256x64xf32> -> vector<256x64xf32>
    %c0_79 = arith.constant 0 : index
    %c0_80 = arith.constant 0 : index
    %72 = vector.load %arg6[%c0_79, %c0_80] : memref<256x64xf32, #tpu.memory_space<vmem>>, vector<256x64xf32>
    tpu.vector_store %arg6[%c0_79, %c0_80], %71 {strides = array<i32>} : memref<256x64xf32, #tpu.memory_space<vmem>>, vector<256x64xf32>,
    %c64 = arith.constant 64 : index
    %c0_81 = arith.constant 0 : index
    %73 = vector.load %arg6[%c64, %c0_81] : memref<256x64xf32, #tpu.memory_space<vmem>>, vector<192x64xf32>
    %74 = vector.extract_strided_slice %68 {offsets = [0, 0], sizes = [192, 64], strides = [1, 1]} : vector<256x64xf32> to vector<192x64xf32>
    %c0_82 = arith.constant 0 : index
    %c0_83 = arith.constant 0 : index
    %c0_84 = arith.constant 0 : index
    %75 = vector.load %arg3[%c0_82, %c0_83, %c0_84] : memref<3x64x64xf32, #tpu.memory_space<vmem>>, vector<1x64x64xf32>
    %76 = vector.shape_cast %75 : vector<1x64x64xf32> to vector<64x64xf32>
    %cst_85 = arith.constant dense<0.000000e+00> : vector<192x64xf32>
    %77 = tpu.matmul %74, %76, %cst_85 {dimension_numbers = #tpu.dot_dimension_numbers<[1], [0], [0], [1], [0, 0, 1, 1], [], []>} : vector<192x64xf32>, vector<64x64xf32>, vector<192x64xf32> -> vector<192x64xf32>
    %78 = arith.addf %73, %77 : vector<192x64xf32>
    %c64_86 = arith.constant 64 : index
    %c0_87 = arith.constant 0 : index
    %79 = vector.load %arg6[%c64_86, %c0_87] : memref<256x64xf32, #tpu.memory_space<vmem>>, vector<192x64xf32>
    tpu.vector_store %arg6[%c64_86, %c0_87], %78 {strides = array<i32>} : memref<256x64xf32, #tpu.memory_space<vmem>>, vector<192x64xf32>,
    %c0_88 = arith.constant 0 : index
    %c0_89 = arith.constant 0 : index
    %80 = vector.load %arg6[%c0_88, %c0_89] : memref<256x64xf32, #tpu.memory_space<vmem>>, vector<192x64xf32>
    %81 = vector.extract_strided_slice %68 {offsets = [64, 0], sizes = [192, 64], strides = [1, 1]} : vector<256x64xf32> to vector<192x64xf32>
    %c2_90 = arith.constant 2 : index
    %c0_91 = arith.constant 0 : index
    %c0_92 = arith.constant 0 : index
    %82 = vector.load %arg3[%c2_90, %c0_91, %c0_92] : memref<3x64x64xf32, #tpu.memory_space<vmem>>, vector<1x64x64xf32>
    %83 = vector.shape_cast %82 : vector<1x64x64xf32> to vector<64x64xf32>
    %cst_93 = arith.constant dense<0.000000e+00> : vector<192x64xf32>
    %84 = tpu.matmul %81, %83, %cst_93 {dimension_numbers = #tpu.dot_dimension_numbers<[1], [0], [0], [1], [0, 0, 1, 1], [], []>} : vector<192x64xf32>, vector<64x64xf32>, vector<192x64xf32> -> vector<192x64xf32>
    %85 = arith.addf %80, %84 : vector<192x64xf32>
    %c0_94 = arith.constant 0 : index
    %c0_95 = arith.constant 0 : index
    %86 = vector.load %arg6[%c0_94, %c0_95] : memref<256x64xf32, #tpu.memory_space<vmem>>, vector<192x64xf32>
    tpu.vector_store %arg6[%c0_94, %c0_95], %85 {strides = array<i32>} : memref<256x64xf32, #tpu.memory_space<vmem>>, vector<192x64xf32>,
    %c0_96 = arith.constant 0 : index
    %c0_97 = arith.constant 0 : index
    %87 = vector.load %arg6[%c0_96, %c0_97] : memref<256x64xf32, #tpu.memory_space<vmem>>, vector<256x64xf32>
    %c1_98 = arith.constant 1 : index
    %c0_99 = arith.constant 0 : index
    %88 = vector.load %arg4[%c1_98, %c0_99] : memref<2x64xf32, #tpu.memory_space<vmem>>, vector<1x64xf32>
    %89 = vector.broadcast %88 : vector<1x64xf32> to vector<256x64xf32>
    %90 = arith.addf %87, %89 : vector<256x64xf32>
    %cst_100 = arith.constant 0.000000e+00 : f32
    %91 = vector.broadcast %cst_100 : f32 to vector<256x64xf32>
    %92 = arith.maximumf %90, %91 : vector<256x64xf32>
    %93 = tpu.iota {dimensions = array<i32: 0>} : vector<64x64xi32>
    %94 = tpu.iota {dimensions = array<i32: 1>} : vector<64x64xi32>
    %95 = arith.cmpi eq, %93, %94 : vector<64x64xi32>
    %96 = arith.extui %95 : vector<64x64xi1> to vector<64x64xi32>
    %97 = arith.sitofp %96 : vector<64x64xi32> to vector<64x64xf32>
    %cst_101 = arith.constant dense<0.000000e+00> : vector<64x256xf32>
    %98 = tpu.matmul %97, %92, %cst_101 {dimension_numbers = #tpu.dot_dimension_numbers<[1], [1], [0], [0], [0, 0, 1, 0], [], []>} : vector<64x64xf32>, vector<256x64xf32>, vector<64x256xf32> -> vector<64x256xf32>
    %c0_102 = arith.constant 0 : index
    %c0_103 = arith.constant 0 : index
    %c0_104 = arith.constant 0 : index
    %99 = vector.load %arg5[%c0_102, %c0_103, %c0_104] : memref<1x64x256xf32, #tpu.memory_space<vmem>>, vector<1x64x256xf32>
    %100 = vector.shape_cast %99 : vector<1x64x256xf32> to vector<64x256xf32>
    %101 = vector.shape_cast %98 : vector<64x256xf32> to vector<1x64x256xf32>
    tpu.vector_store %arg5[%c0_102, %c0_103, %c0_104], %101 {strides = array<i32>} : memref<1x64x256xf32, #tpu.memory_space<vmem>>, vector<1x64x256xf32>,
    return
  }
  func.func @transform_0(%arg0: i32) -> (i32, i32, i32, i32, i32) {
    %c0_i32 = arith.constant 0 : i32
    %c0_i32_0 = arith.constant 0 : i32
    %c0_i32_1 = arith.constant 0 : i32
    %c0_i32_2 = arith.constant 0 : i32
    %c0_i32_3 = arith.constant 0 : i32
    return %arg0, %c0_i32, %c0_i32_0, %c0_i32_1, %c0_i32_2 : i32, i32, i32, i32, i32
  }
  func.func @transform_1(%arg0: i32) -> (i32, i32, i32) {
    %c0_i32 = arith.constant 0 : i32
    %c0_i32_0 = arith.constant 0 : i32
    %c0_i32_1 = arith.constant 0 : i32
    %c0_i32_2 = arith.constant 0 : i32
    return %c0_i32, %c0_i32_0, %c0_i32_1 : i32, i32, i32
  }
  func.func @transform_2(%arg0: i32) -> (i32, i32, i32) {
    %c0_i32 = arith.constant 0 : i32
    %c0_i32_0 = arith.constant 0 : i32
    %c0_i32_1 = arith.constant 0 : i32
    %c0_i32_2 = arith.constant 0 : i32
    return %c0_i32, %c0_i32_0, %c0_i32_1 : i32, i32, i32
  }
  func.func @transform_3(%arg0: i32) -> (i32, i32) {
    %c0_i32 = arith.constant 0 : i32
    %c0_i32_0 = arith.constant 0 : i32
    %c0_i32_1 = arith.constant 0 : i32
    return %c0_i32, %c0_i32_0 : i32, i32
  }
  func.func @transform_4(%arg0: i32) -> (i32, i32, i32) {
    %c0_i32 = arith.constant 0 : i32
    %c0_i32_0 = arith.constant 0 : i32
    %c0_i32_1 = arith.constant 0 : i32
    return %arg0, %c0_i32, %c0_i32_0 : i32, i32, i32
  }
}

</mosaic_0001>

<llo_original>
// kernel: sepconv3d_pallas.1
$region0: #{sepconv3d_pallas.1}
  #allocation0 [shape = 'u32[]', space=smem, size = 0x4, offset = 0x4, fixed_abs, tag = 'smem constant byte address 0x4 - core index']
  #allocation1 [shape = 'u32[144,128]{1,0:T(1,128)}', space=vmem, size = 0x12000, scoped, tag = 'internal scratch']
  #allocation2 [shape = 'f32[256,64]{1,0:T(8,128)}', space=vmem, size = 0x20000, scoped, tag = 'scratch operand']
  %s0 = inlined_call_operand.vmem [shape: f32[2,4,10,10,32], index: 0, kind: input, shape index: {}]
  %s1 = inlined_call_operand.vmem [shape: f32[9,32,64], index: 1, kind: input, shape index: {}]
  %s2 = inlined_call_operand.vmem [shape: f32[3,64,64], index: 2, kind: input, shape index: {}]
  %s3 = inlined_call_operand.vmem [shape: f32[2,64], index: 3, kind: input, shape index: {}]
  %s4 = inlined_call_operand.vmem [shape: f32[2,64,256], index: 4, kind: output, shape index: {}]
  %s5 = sld [smem:[#allocation0]]
  $region49: #{sepconv3d_pallas.1} parent=0
    _
  %s7 = ssub.s32 1, %s5
  %s8 = scalar_select 0, %s7, %s5
  loop: start=0, step=1, limit=4
  $region2: #{sepconv3d_pallas.1} parent=0 // loop_pre_header
    _
  $region3: #{sepconv3d_pallas.1} parent=0 // loop_header
    %s10 = sphi 0, %s14
    %p11 = scmp.ge.s32.totalorder %s10, 4
    %s20 = sphi 0, %s22
    %s23 = sphi 0, %s20
    %s24 = sphi 0, %s23
    %s40 = sphi 0, %s24
    %s44 = sphi 0, %s44
    %s46 = sphi 0, %s44
    %s47 = sphi 0, %s46
    %s61 = sphi 0, %s47
    %s65 = sphi 0, %s65
    %s67 = sphi 0, %s65
    %s68 = sphi 0, %s67
    %s82 = sphi 0, %s68
    %s86 = sphi 0, %s86
    %s88 = sphi 0, %s86
    %s89 = sphi 0, %s88
    %s103 = sphi 0, %s89
    %s109 = sphi 0, %s111
    %s112 = sphi 0, %s109
    %s113 = sphi 0, %s112
    %s129 = sphi 0, %s113
  $region4: #{sepconv3d_pallas.1} parent=0 // loop_header_branch
    %13 = sbr.rel (%p11) target = $region8
  $region5: #{sepconv3d_pallas.1} parent=0 // loop_body
    %s15 = ssub.s32 %s10, 1
    %s16 = ssub.s32 %s10, 2
    %s17 = sadd.s32 %s10, 1
    %s18 = ssub.s32 %s10, %s17
    %p19 = scmp.eq.s32.totalorder %s18, 0
    %s21 = sadd.s32 %s20, 1
    %s22 = scalar_select %p19, %s20, %s21
    %p25 = pneg %p19
    %p26 = scmp.eq.s32.totalorder %s10, 1
    %p27 = por %p25, %p26
    %p28 = scmp.ne.s32.totalorder %s20, %s23
    %p29 = scmp.eq.s32.totalorder %s10, 0
    %p30 = por %p28, %p29
    %p31 = scmp.ne.s32.totalorder %s20, %s23
    %p32 = scmp.eq.s32.totalorder %s15, 1
    %p33 = por %p31, %p32
    %p34 = scmp.ne.s32.totalorder %s23, %s24
    %p35 = scmp.eq.s32.totalorder %s15, 0
    %p36 = por %p34, %p35
    %p37 = scmp.ne.s32.totalorder %s23, %s24
    %p38 = scmp.eq.s32.totalorder %s16, 1
    %p39 = por %p37, %p38
    %p41 = scmp.ne.s32.totalorder %s24, %s40
    %p42 = scmp.eq.s32.totalorder %s16, 0
    %p43 = por %p41, %p42
    %s45 = sadd.s32 %s44, 1
    %p48 = scmp.eq.s32.totalorder %s10, 1
    %p49 = scmp.ne.s32.totalorder %s44, %s46
    %p50 = scmp.eq.s32.totalorder %s10, 0
    %p51 = por %p49, %p50
    %p52 = scmp.ne.s32.totalorder %s44, %s46
    %p53 = scmp.eq.s32.totalorder %s15, 1
    %p54 = por %p52, %p53
    %p55 = scmp.ne.s32.totalorder %s46, %s47
    %p56 = scmp.eq.s32.totalorder %s15, 0
    %p57 = por %p55, %p56
    %p58 = scmp.ne.s32.totalorder %s46, %s47
    %p59 = scmp.eq.s32.totalorder %s16, 1
    %p60 = por %p58, %p59
    %p62 = scmp.ne.s32.totalorder %s47, %s61
    %p63 = scmp.eq.s32.totalorder %s16, 0
    %p64 = por %p62, %p63
    %s66 = sadd.s32 %s65, 1
    %p69 = scmp.eq.s32.totalorder %s10, 1
    %p70 = scmp.ne.s32.totalorder %s65, %s67
    %p71 = scmp.eq.s32.totalorder %s10, 0
    %p72 = por %p70, %p71
    %p73 = scmp.ne.s32.totalorder %s65, %s67
    %p74 = scmp.eq.s32.totalorder %s15, 1
    %p75 = por %p73, %p74
    %p76 = scmp.ne.s32.totalorder %s67, %s68
    %p77 = scmp.eq.s32.totalorder %s15, 0
    %p78 = por %p76, %p77
    %p79 = scmp.ne.s32.totalorder %s67, %s68
    %p80 = scmp.eq.s32.totalorder %s16, 1
    %p81 = por %p79, %p80
    %p83 = scmp.ne.s32.totalorder %s68, %s82
    %p84 = scmp.eq.s32.totalorder %s16, 0
    %p85 = por %p83, %p84
    %s87 = sadd.s32 %s86, 1
    %p90 = scmp.eq.s32.totalorder %s10, 1
    %p91 = scmp.ne.s32.totalorder %s86, %s88
    %p92 = scmp.eq.s32.totalorder %s10, 0
    %p93 = por %p91, %p92
    %p94 = scmp.ne.s32.totalorder %s86, %s88
    %p95 = scmp.eq.s32.totalorder %s15, 1
    %p96 = por %p94, %p95
    %p97 = scmp.ne.s32.totalorder %s88, %s89
    %p98 = scmp.eq.s32.totalorder %s15, 0
    %p99 = por %p97, %p98
    %p100 = scmp.ne.s32.totalorder %s88, %s89
    %p101 = scmp.eq.s32.totalorder %s16, 1
    %p102 = por %p100, %p101
    %p104 = scmp.ne.s32.totalorder %s89, %s103
    %p105 = scmp.eq.s32.totalorder %s16, 0
    %p106 = por %p104, %p105
    %s107 = ssub.s32 %s10, %s17
    %p108 = scmp.eq.s32.totalorder %s107, 0
    %s110 = sadd.s32 %s109, 1
    %s111 = scalar_select %p108, %s109, %s110
    %p114 = pneg %p108
    %p115 = scmp.eq.s32.totalorder %s10, 1
    %p116 = por %p114, %p115
    %p117 = scmp.ne.s32.totalorder %s109, %s112
    %p118 = scmp.eq.s32.totalorder %s10, 0
    %p119 = por %p117, %p118
    %p120 = scmp.ne.s32.totalorder %s109, %s112
    %p121 = scmp.eq.s32.totalorder %s15, 1
    %p122 = por %p120, %p121
    %p123 = scmp.ne.s32.totalorder %s112, %s113
    %p124 = scmp.eq.s32.totalorder %s15, 0
    %p125 = por %p123, %p124
    %p126 = scmp.ne.s32.totalorder %s112, %s113
    %p127 = scmp.eq.s32.totalorder %s16, 1
    %p128 = por %p126, %p127
    %p130 = scmp.ne.s32.totalorder %s113, %s129
    %p131 = scmp.eq.s32.totalorder %s16, 0
    %p132 = por %p130, %p131
    %p133 = scmp.le.s32.totalorder 1, %s10
    %p134 = scmp.lt.s32.totalorder %s10, 3
    %p135 = pnand %p133, %p134
    %p136 = pneg %p135
    // Predicated region
    $region9: #{sepconv3d_pallas.1} parent=5 // pred_check
      _
    $region10: #{sepconv3d_pallas.1} parent=5 // pred_check_branch
      %138 = sbr.rel (%p135) target = $region12
    $region11: #{sepconv3d_pallas.1} parent=5 // pred_region
      %s139 = ssub.s32 %s10, 1
      // Predicated region
      $region13: #{sepconv3d_pallas.1} parent=11 // pred_check
        %p140 = pneg %p57
      $region14: #{sepconv3d_pallas.1} parent=11 // pred_check_branch
        %142 = sbr.rel (%p140) target = $region16
      $region15: #{sepconv3d_pallas.1} parent=11 // pred_region
        _
      $region16: #{sepconv3d_pallas.1} parent=11 // pred_fallthru
        _
      // Predicated region
      $region17: #{sepconv3d_pallas.1} parent=11 // pred_check
        %p143 = pneg %p78
      $region18: #{sepconv3d_pallas.1} parent=11 // pred_check_branch
        %145 = sbr.rel (%p143) target = $region20
      $region19: #{sepconv3d_pallas.1} parent=11 // pred_region
        _
      $region20: #{sepconv3d_pallas.1} parent=11 // pred_fallthru
        _
      // Predicated region
      $region21: #{sepconv3d_pallas.1} parent=11 // pred_check
        %p146 = pneg %p99
      $region22: #{sepconv3d_pallas.1} parent=11 // pred_check_branch
        %148 = sbr.rel (%p146) target = $region24
      $region23: #{sepconv3d_pallas.1} parent=11 // pred_region
        _
      $region24: #{sepconv3d_pallas.1} parent=11 // pred_fallthru
        _
    $region12: #{sepconv3d_pallas.1} parent=5 // pred_fallthru
      _
    %p149 = scmp.lt.s32.totalorder %s10, 2
    // Predicated region
    $region25: #{sepconv3d_pallas.1} parent=5 // pred_check
      %p150 = pneg %p149
    $region26: #{sepconv3d_pallas.1} parent=5 // pred_check_branch
      %152 = sbr.rel (%p150) target = $region28
    $region27: #{sepconv3d_pallas.1} parent=5 // pred_region
      // Predicated region
      $region29: #{sepconv3d_pallas.1} parent=27 // pred_check
        %p153 = pneg %p30
      $region30: #{sepconv3d_pallas.1} parent=27 // pred_check_branch
        %155 = sbr.rel (%p153) target = $region32
      $region31: #{sepconv3d_pallas.1} parent=27 // pred_region
        %p156 = scmp.lt.s32.totalorder %s10, 1
        %s157 = scalar_select %p156, %s10, 1
        %s158 = smul.addr %s157, 80
        %s159 = smul.addr %s158, 8
        %s160 = scalar_lea.vmem %s0, %s159
      $region32: #{sepconv3d_pallas.1} parent=27 // pred_fallthru
        _
    $region28: #{sepconv3d_pallas.1} parent=5 // pred_fallthru
      _
    %p161 = scmp.le.s32.totalorder 1, %s10
    %p162 = scmp.lt.s32.totalorder %s10, 3
    %p163 = pnand %p161, %p162
    %p164 = pneg %p163
    // Predicated region
    $region33: #{sepconv3d_pallas.1} parent=5 // pred_check
      _
    $region34: #{sepconv3d_pallas.1} parent=5 // pred_check_branch
      %166 = sbr.rel (%p163) target = $region36
    $region35: #{sepconv3d_pallas.1} parent=5 // pred_region
      %s167 = ssub.s32 %s10, 1
      %p168 = scmp.lt.s32.totalorder %s15, 1
      %s169 = scalar_select %p168, %s15, 1
      %s170 = smul.addr %s169, 80
      %s171 = smul.addr %s170, 8
      %s172 = scalar_lea.vmem %s0, %s171
      %p173 = pneg %p36
      %p174 = pneg %p33
      %p175 = pneg %p57
      %p176 = pneg %p54
      %p177 = pneg %p78
      %p178 = pneg %p75
      %p179 = pneg %p99
      %p180 = pneg %p96
      %p181 = pneg %p125
      %p182 = pneg %p122
      %p183 = scmp.lt.s32.totalorder %s15, 1
      %s184 = scalar_select %p183, %s15, 1
      %s185 = smul.addr %s184, 16
      %s186 = smul.addr %s185, 8
      %s187 = scalar_lea.vmem %s4, %s186
      %p188 = scmp.lt.s32.totalorder %s15, 1
      %s189 = scalar_select %p188, %s15, 1
      %s190 = smul.addr %s189, 80
      %s191 = smul.addr %s190, 8
      %s192 = scalar_lea.vmem %s0, %s191
      %p193 = scmp.lt.s32.totalorder %s15, 1
      %s194 = scalar_select %p193, %s15, 1
      %s195 = smul.addr %s194, 16
      %s196 = smul.addr %s195, 8
      %s197 = scalar_lea.vmem %s4, %s196
      %v198 = vld [vmem:[%s192] sm:$0xff]
      %v199 = vld [vmem:[%s192 + $0x10] sm:$0xff]
      %v200 = vld [vmem:[%s192 + $0x20] sm:$0xff]
      %v201 = vld [vmem:[%s192 + $0x30] sm:$0xff]
      %v202 = vld [vmem:[%s192 + $0x40] sm:$0xff]
      %v203 = vld [vmem:[%s192 + $0x50] sm:$0xff]
      %v204 = vld [vmem:[%s192 + $0x60] sm:$0xff]
      %v205 = vld [vmem:[%s192 + $0x70] sm:$0xff]
      %v206 = vld [vmem:[%s192 + $0xa0] sm:$0xff]
      %v207 = vld [vmem:[%s192 + $0xb0] sm:$0xff]
      %v208 = vld [vmem:[%s192 + $0xc0] sm:$0xff]
      %v209 = vld [vmem:[%s192 + $0xd0] sm:$0xff]
      %v210 = vld [vmem:[%s192 + $0xe0] sm:$0xff]
      %v211 = vld [vmem:[%s192 + $0xf0] sm:$0xff]
      %v212 = vld [vmem:[%s192 + $0x100] sm:$0xff]
      %v213 = vld [vmem:[%s192 + $0x110] sm:$0xff]
      %v214 = vld [vmem:[%s192 + $0x140] sm:$0xff]
      %v215 = vld [vmem:[%s192 + $0x150] sm:$0xff]
      %v216 = vld [vmem:[%s192 + $0x160] sm:$0xff]
      %v217 = vld [vmem:[%s192 + $0x170] sm:$0xff]
      %v218 = vld [vmem:[%s192 + $0x180] sm:$0xff]
      %v219 = vld [vmem:[%s192 + $0x190] sm:$0xff]
      %v220 = vld [vmem:[%s192 + $0x1a0] sm:$0xff]
      %v221 = vld [vmem:[%s192 + $0x1b0] sm:$0xff]
      %v222 = vld [vmem:[%s192 + $0x1e0] sm:$0xff]
      %v223 = vld [vmem:[%s192 + $0x1f0] sm:$0xff]
      %v224 = vld [vmem:[%s192 + $0x200] sm:$0xff]
      %v225 = vld [vmem:[%s192 + $0x210] sm:$0xff]
      %v226 = vld [vmem:[%s192 + $0x220] sm:$0xff]
      %v227 = vld [vmem:[%s192 + $0x230] sm:$0xff]
      %v228 = vld [vmem:[%s192 + $0x240] sm:$0xff]
      %v229 = vld [vmem:[%s192 + $0x250] sm:$0xff]
      %v230 = vld [vmem:[%s1] sm:$0xff]
      %v231 = vld [vmem:[%s1 + $0x8] sm:$0xff]
      %v232 = vld [vmem:[%s1 + $0x10] sm:$0xff]
      %v233 = vld [vmem:[%s1 + $0x18] sm:$0xff]
      %v234 = vld [vmem:[%s192 + $0x1] sm:$0xff]
      %v235 = vld [vmem:[%s192 + $0x11] sm:$0xff]
      %v236 = vld [vmem:[%s192 + $0x21] sm:$0xff]
      %v237 = vld [vmem:[%s192 + $0x31] sm:$0xff]
      %v238 = vld [vmem:[%s192 + $0x41] sm:$0xff]
      %v239 = vld [vmem:[%s192 + $0x51] sm:$0xff]
      %v240 = vld [vmem:[%s192 + $0x61] sm:$0xff]
      %v241 = vld [vmem:[%s192 + $0x71] sm:$0xff]
      %v242 = vld [vmem:[%s192 + $0xa1] sm:$0xff]
      %v243 = vld [vmem:[%s192 + $0xb1] sm:$0xff]
      %v244 = vld [vmem:[%s192 + $0xc1] sm:$0xff]
      %v245 = vld [vmem:[%s192 + $0xd1] sm:$0xff]
      %v246 = vld [vmem:[%s192 + $0xe1] sm:$0xff]
      %v247 = vld [vmem:[%s192 + $0xf1] sm:$0xff]
      %v248 = vld [vmem:[%s192 + $0x101] sm:$0xff]
      %v249 = vld [vmem:[%s192 + $0x111] sm:$0xff]
      %v250 = vld [vmem:[%s192 + $0x141] sm:$0xff]
      %v251 = vld [vmem:[%s192 + $0x151] sm:$0xff]
      %v252 = vld [vmem:[%s192 + $0x161] sm:$0xff]
      %v253 = vld [vmem:[%s192 + $0x171] sm:$0xff]
      %v254 = vld [vmem:[%s192 + $0x181] sm:$0xff]
      %v255 = vld [vmem:[%s192 + $0x191] sm:$0xff]
      %v256 = vld [vmem:[%s192 + $0x1a1] sm:$0xff]
      %v257 = vld [vmem:[%s192 + $0x1b1] sm:$0xff]
      %v258 = vld [vmem:[%s192 + $0x1e1] sm:$0xff]
      %v259 = vld [vmem:[%s192 + $0x1f1] sm:$0xff]
      %v260 = vld [vmem:[%s192 + $0x201] sm:$0xff]
      %v261 = vld [vmem:[%s192 + $0x211] sm:$0xff]
      %v262 = vld [vmem:[%s192 + $0x221] sm:$0xff]
      %v263 = vld [vmem:[%s192 + $0x231] sm:$0xff]
      %v264 = vld [vmem:[%s192 + $0x241] sm:$0xff]
      %v265 = vld [vmem:[%s192 + $0x251] sm:$0xff]
      %s266 = scalar_lea.vmem %s1, 32
      %v267 = vld [vmem:[%s266] sm:$0xff]
      %v268 = vld [vmem:[%s266 + $0x8] sm:$0xff]
      %v269 = vld [vmem:[%s266 + $0x10] sm:$0xff]
      %v270 = vld [vmem:[%s266 + $0x18] sm:$0xff]
      %vm271 = vcmask 261120
      %v273 = vsel %vm271, %v234, 0
      %v276 = vsel %vm271, %v235, 0
      %v279 = vsel %vm271, %v236, 0
      %v282 = vsel %vm271, %v237, 0
      %v285 = vsel %vm271, %v238, 0
      %v288 = vsel %vm271, %v239, 0
      %v291 = vsel %vm271, %v240, 0
      %v294 = vsel %vm271, %v241, 0
      %v297 = vsel %vm271, %v242, 0
      %v300 = vsel %vm271, %v243, 0
      %v303 = vsel %vm271, %v244, 0
      %v306 = vsel %vm271, %v245, 0
      %v309 = vsel %vm271, %v246, 0
      %v312 = vsel %vm271, %v247, 0
      %v315 = vsel %vm271, %v248, 0
      %v318 = vsel %vm271, %v249, 0
      %v321 = vsel %vm271, %v250, 0
      %v324 = vsel %vm271, %v251, 0
      %v327 = vsel %vm271, %v252, 0
      %v330 = vsel %vm271, %v253, 0
      %v333 = vsel %vm271, %v254, 0
      %v336 = vsel %vm271, %v255, 0
      %v339 = vsel %vm271, %v256, 0
      %v342 = vsel %vm271, %v257, 0
      %v345 = vsel %vm271, %v258, 0
      %v348 = vsel %vm271, %v259, 0
      %v351 = vsel %vm271, %v260, 0
      %v354 = vsel %vm271, %v261, 0
      %v357 = vsel %vm271, %v262, 0
      %v360 = vsel %vm271, %v263, 0
      %v363 = vsel %vm271, %v264, 0
      %v366 = vsel %vm271, %v265, 0
      %368 = vmatprep.subr.mxu0 0.0
      %369 = vmatpush1.msra.mxu0 %v267
      %370 = vmatprep.subr.mxu0 0.0
      %371 = vmatpush1.msra.mxu0 %v268
      %372 = vmatprep.subr.mxu0 0.0
      %373 = vmatpush1.msra.mxu0 %v269
      %374 = vmatprep.subr.mxu0 0.0
      %375 = vmatpush1.msra.mxu0 %v270
      %376 = vmatprep.subr.mxu0 0.0
      %377 = vmatpush1.msra.mxu0 0.0
      %378 = vmatprep.subr.mxu0 0.0
      %379 = vmatpush1.msra.mxu0 0.0
      %380 = vmatprep.subr.mxu0 0.0
      %381 = vmatpush1.msra.mxu0 0.0
      %382 = vmatprep.subr.mxu0 0.0
      %383 = vmatpush1.msra.mxu0 0.0
      %384 = vmatprep.subr.mxu0 0.0
      %385 = vmatpush1.msra.mxu0 0.0
      %386 = vmatprep.subr.mxu0 0.0
      %387 = vmatpush1.msra.mxu0 0.0
      %388 = vmatprep.subr.mxu0 0.0
      %389 = vmatpush1.msra.mxu0 0.0
      %390 = vmatprep.subr.mxu0 0.0
      %391 = vmatpush1.msra.mxu0 0.0
      %392 = vmatprep.subr.mxu0 0.0
      %393 = vmatpush1.msra.mxu0 0.0
      %394 = vmatprep.subr.mxu0 0.0
      %395 = vmatpush1.msra.mxu0 0.0
      %396 = vmatprep.subr.mxu0 0.0
      %397 = vmatpush1.msra.mxu0 0.0
      %398 = vmatprep.subr.mxu0 0.0
      %399 = vmatpush1.msra.mxu0 0.0
      %400 = vmatprep.subr.mxu0 0.0
      %401 = vmatpush1.msra.mxu0 0.0
      %402 = vmatprep.subr.mxu0 0.0
      %403 = vmatpush1.msra.mxu0 0.0
      %404 = vmatprep.subr.mxu0 0.0
      %405 = vmatpush1.msra.mxu0 0.0
      %406 = vmatprep.subr.mxu0 0.0
      %407 = vmatpush1.msra.mxu0 0.0
      %408 = vmatprep.subr.mxu0 0.0
      %409 = vmatpush1.msra.mxu0 0.0
      %410 = vmatprep.subr.mxu0 0.0
      %411 = vmatpush1.msra.mxu0 0.0
      %412 = vmatprep.subr.mxu0 0.0
      %413 = vmatpush1.msra.mxu0 0.0
      %414 = vmatprep.subr.mxu0 0.0
      %415 = vmatpush1.msra.mxu0 0.0
      %416 = vmatprep.subr.mxu0 0.0
      %417 = vmatpush1.msra.mxu0 0.0
      %418 = vmatprep.subr.mxu0 0.0
      %419 = vmatpush1.msra.mxu0 0.0
      %420 = vmatprep.subr.mxu0 0.0
      %421 = vmatpush1.msra.mxu0 0.0
      %422 = vmatprep.subr.mxu0 0.0
      %423 = vmatpush1.msra.mxu0 0.0
      %424 = vmatprep.subr.mxu0 0.0
      %425 = vmatpush1.msra.mxu0 0.0
      %426 = vmatprep.subr.mxu0 0.0
      %427 = vmatpush1.msra.mxu0 0.0
      %428 = vmatprep.subr.mxu0 0.0
      %429 = vmatpush1.msra.mxu0 0.0
      %430 = vmatprep.subr.mxu0 0.0
      %431 = vmatpush1.msra.mxu0 0.0
      %432 = vmatprep.mubr.f32.mxu0 0.0
      %433 = vmatmul.mubr.f32.gmra.mrb[0].mxu0 %v273
      %v434 = vpop.f32.mrb[0].mxu0
      %v435 = vadd.f32 0.0, %v434
      %v436 = vpop.f32.mrb[0].mxu0
      %437 = vmatprep.mubr.f32.mxu0 0.0
      %438 = vmatmul.mubr.f32.gmra.mrb[0].mxu0 %v276
      %v439 = vpop.f32.mrb[0].mxu0
      %v440 = vadd.f32 0.0, %v439
      %v441 = vpop.f32.mrb[0].mxu0
      %442 = vmatprep.mubr.f32.mxu0 0.0
      %443 = vmatmul.mubr.f32.gmra.mrb[0].mxu0 %v279
      %v444 = vpop.f32.mrb[0].mxu0
      %v445 = vadd.f32 0.0, %v444
      %v446 = vpop.f32.mrb[0].mxu0
      %447 = vmatprep.mubr.f32.mxu0 0.0
      %448 = vmatmul.mubr.f32.gmra.mrb[0].mxu0 %v282
      %v449 = vpop.f32.mrb[0].mxu0
      %v450 = vadd.f32 0.0, %v449
      %v451 = vpop.f32.mrb[0].mxu0
      %452 = vmatprep.mubr.f32.mxu0 0.0
      %453 = vmatmul.mubr.f32.gmra.mrb[0].mxu0 %v285
      %v454 = vpop.f32.mrb[0].mxu0
      %v455 = vadd.f32 0.0, %v454
      %v456 = vpop.f32.mrb[0].mxu0
      %457 = vmatprep.mubr.f32.mxu0 0.0
      %458 = vmatmul.mubr.f32.gmra.mrb[0].mxu0 %v288
      %v459 = vpop.f32.mrb[0].mxu0
      %v460 = vadd.f32 0.0, %v459
      %v461 = vpop.f32.mrb[0].mxu0
      %462 = vmatprep.mubr.f32.mxu0 0.0
      %463 = vmatmul.mubr.f32.gmra.mrb[0].mxu0 %v291
      %v464 = vpop.f32.mrb[0].mxu0
      %v465 = vadd.f32 0.0, %v464
      %v466 = vpop.f32.mrb[0].mxu0
      %467 = vmatprep.mubr.f32.mxu0 0.0
      %468 = vmatmul.mubr.f32.gmra.mrb[0].mxu0 %v294
      %v469 = vpop.f32.mrb[0].mxu0
      %v470 = vadd.f32 0.0, %v469
      %v471 = vpop.f32.mrb[0].mxu0
      %472 = vmatprep.mubr.f32.mxu0 0.0
      %473 = vmatmul.mubr.f32.gmra.mrb[0].mxu0 %v297
      %v474 = vpop.f32.mrb[0].mxu0
      %v475 = vadd.f32 0.0, %v474
      %v476 = vpop.f32.mrb[0].mxu0
      %477 = vmatprep.mubr.f32.mxu0 0.0
      %478 = vmatmul.mubr.f32.gmra.mrb[0].mxu0 %v300
      %v479 = vpop.f32.mrb[0].mxu0
      %v480 = vadd.f32 0.0, %v479
      %v481 = vpop.f32.mrb[0].mxu0
      %482 = vmatprep.mubr.f32.mxu0 0.0
      %483 = vmatmul.mubr.f32.gmra.mrb[0].mxu0 %v303
      %v484 = vpop.f32.mrb[0].mxu0
      %v485 = vadd.f32 0.0, %v484
      %v486 = vpop.f32.mrb[0].mxu0
      %487 = vmatprep.mubr.f32.mxu0 0.0
      %488 = vmatmul.mubr.f32.gmra.mrb[0].mxu0 %v306
      %v489 = vpop.f32.mrb[0].mxu0
      %v490 = vadd.f32 0.0, %v489
      %v491 = vpop.f32.mrb[0].mxu0
      %492 = vmatprep.mubr.f32.mxu0 0.0
      %493 = vmatmul.mubr.f32.gmra.mrb[0].mxu0 %v309
      %v494 = vpop.f32.mrb[0].mxu0
      %v495 = vadd.f32 0.0, %v494
      %v496 = vpop.f32.mrb[0].mxu0
      %497 = vmatprep.mubr.f32.mxu0 0.0
      %498 = vmatmul.mubr.f32.gmra.mrb[0].mxu0 %v312
      %v499 = vpop.f32.mrb[0].mxu0
      %v500 = vadd.f32 0.0, %v499
      %v501 = vpop.f32.mrb[0].mxu0
      %502 = vmatprep.mubr.f32.mxu0 0.0
      %503 = vmatmul.mubr.f32.gmra.mrb[0].mxu0 %v315
      %v504 = vpop.f32.mrb[0].mxu0
      %v505 = vadd.f32 0.0, %v504
      %v506 = vpop.f32.mrb[0].mxu0
      %507 = vmatprep.mubr.f32.mxu0 0.0
      %508 = vmatmul.mubr.f32.gmra.mrb[0].mxu0 %v318
      %v509 = vpop.f32.mrb[0].mxu0
      %v510 = vadd.f32 0.0, %v509
      %v511 = vpop.f32.mrb[0].mxu0
      %512 = vmatprep.mubr.f32.mxu0 0.0
      %513 = vmatmul.mubr.f32.gmra.mrb[0].mxu0 %v321
      %v514 = vpop.f32.mrb[0].mxu0
      %v515 = vadd.f32 0.0, %v514
      %v516 = vpop.f32.mrb[0].mxu0
      %517 = vmatprep.mubr.f32.mxu0 0.0
      %518 = vmatmul.mubr.f32.gmra.mrb[0].mxu0 %v324
      %v519 = vpop.f32.mrb[0].mxu0
      %v520 = vadd.f32 0.0, %v519
      %v521 = vpop.f32.mrb[0].mxu0
      %522 = vmatprep.mubr.f32.mxu0 0.0
      %523 = vmatmul.mubr.f32.gmra.mrb[0].mxu0 %v327
      %v524 = vpop.f32.mrb[0].mxu0
      %v525 = vadd.f32 0.0, %v524
      %v526 = vpop.f32.mrb[0].mxu0
      %527 = vmatprep.mubr.f32.mxu0 0.0
      %528 = vmatmul.mubr.f32.gmra.mrb[0].mxu0 %v330
      %v529 = vpop.f32.mrb[0].mxu0
      %v530 = vadd.f32 0.0, %v529
      %v531 = vpop.f32.mrb[0].mxu0
      %532 = vmatprep.mubr.f32.mxu0 0.0
      %533 = vmatmul.mubr.f32.gmra.mrb[0].mxu0 %v333
      %v534 = vpop.f32.mrb[0].mxu0
      %v535 = vadd.f32 0.0, %v534
      %v536 = vpop.f32.mrb[0].mxu0
      %537 = vmatprep.mubr.f32.mxu0 0.0
      %538 = vmatmul.mubr.f32.gmra.mrb[0].mxu0 %v336
      %v539 = vpop.f32.mrb[0].mxu0
      %v540 = vadd.f32 0.0, %v539
      %v541 = vpop.f32.mrb[0].mxu0
      %542 = vmatprep.mubr.f32.mxu0 0.0
      %543 = vmatmul.mubr.f32.gmra.mrb[0].mxu0 %v339
      %v544 = vpop.f32.mrb[0].mxu0
      %v545 = vadd.f32 0.0, %v544
      %v546 = vpop.f32.mrb[0].mxu0
      %547 = vmatprep.mubr.f32.mxu0 0.0
      %548 = vmatmul.mubr.f32.gmra.mrb[0].mxu0 %v342
      %v549 = vpop.f32.mrb[0].mxu0
      %v550 = vadd.f32 0.0, %v549
      %v551 = vpop.f32.mrb[0].mxu0
      %552 = vmatprep.mubr.f32.mxu0 0.0
      %553 = vmatmul.mubr.f32.gmra.mrb[0].mxu0 %v345
      %v554 = vpop.f32.mrb[0].mxu0
      %v555 = vadd.f32 0.0, %v554
      %v556 = vpop.f32.mrb[0].mxu0
      %557 = vmatprep.mubr.f32.mxu0 0.0
      %558 = vmatmul.mubr.f32.gmra.mrb[0].mxu0 %v348
      %v559 = vpop.f32.mrb[0].mxu0
      %v560 = vadd.f32 0.0, %v559
      %v561 = vpop.f32.mrb[0].mxu0
      %562 = vmatprep.mubr.f32.mxu0 0.0
      %563 = vmatmul.mubr.f32.gmra.mrb[0].mxu0 %v351
      %v564 = vpop.f32.mrb[0].mxu0
      %v565 = vadd.f32 0.0, %v564
      %v566 = vpop.f32.mrb[0].mxu0
      %567 = vmatprep.mubr.f32.mxu0 0.0
      %568 = vmatmul.mubr.f32.gmra.mrb[0].mxu0 %v354
      %v569 = vpop.f32.mrb[0].mxu0
      %v570 = vadd.f32 0.0, %v569
      %v571 = vpop.f32.mrb[0].mxu0
      %572 = vmatprep.mubr.f32.mxu0 0.0
      %573 = vmatmul.mubr.f32.gmra.mrb[0].mxu0 %v357
      %v574 = vpop.f32.mrb[0].mxu0
      %v575 = vadd.f32 0.0, %v574
      %v576 = vpop.f32.mrb[0].mxu0
      %577 = vmatprep.mubr.f32.mxu0 0.0
      %578 = vmatmul.mubr.f32.gmra.mrb[0].mxu0 %v360
      %v579 = vpop.f32.mrb[0].mxu0
      %v580 = vadd.f32 0.0, %v579
      %v581 = vpop.f32.mrb[0].mxu0
      %582 = vmatprep.mubr.f32.mxu0 0.0
      %583 = vmatmul.mubr.f32.gmra.mrb[0].mxu0 %v363
      %v584 = vpop.f32.mrb[0].mxu0
      %v585 = vadd.f32 0.0, %v584
      %v586 = vpop.f32.mrb[0].mxu0
      %587 = vmatprep.mubr.f32.mxu0 0.0
      %588 = vmatmul.mubr.f32.gmra.mrb[0].mxu0 %v366
      %v589 = vpop.f32.mrb[0].mxu0
      %v590 = vadd.f32 0.0, %v589
      %v591 = vpop.f32.mrb[0].mxu0
      %592 = vdwg.mxu0
      %v594 = vsel %vm271, %v198, 0
      %v597 = vsel %vm271, %v199, 0
      %v600 = vsel %vm271, %v200, 0
      %v603 = vsel %vm271, %v201, 0
      %v606 = vsel %vm271, %v202, 0
      %v609 = vsel %vm271, %v203, 0
      %v612 = vsel %vm271, %v204, 0
      %v615 = vsel %vm271, %v205, 0
      %v618 = vsel %vm271, %v206, 0
      %v621 = vsel %vm271, %v207, 0
      %v624 = vsel %vm271, %v208, 0
      %v627 = vsel %vm271, %v209, 0
      %v630 = vsel %vm271, %v210, 0
      %v633 = vsel %vm271, %v211, 0
      %v636 = vsel %vm271, %v212, 0
      %v639 = vsel %vm271, %v213, 0
      %v642 = vsel %vm271, %v214, 0
      %v645 = vsel %vm271, %v215, 0
      %v648 = vsel %vm271, %v216, 0
      %v651 = vsel %vm271, %v217, 0
      %v654 = vsel %vm271, %v218, 0
      %v657 = vsel %vm271, %v219, 0
      %v660 = vsel %vm271, %v220, 0
      %v663 = vsel %vm271, %v221, 0
      %v666 = vsel %vm271, %v222, 0
      %v669 = vsel %vm271, %v223, 0
      %v672 = vsel %vm271, %v224, 0
      %v675 = vsel %vm271, %v225, 0
      %v678 = vsel %vm271, %v226, 0
      %v681 = vsel %vm271, %v227, 0
      %v684 = vsel %vm271, %v228, 0
      %v687 = vsel %vm271, %v229, 0
      %689 = vmatprep.subr.mxu0 0.0
      %690 = vmatpush1.msra.mxu0 %v230
      %691 = vmatprep.subr.mxu0 0.0
      %692 = vmatpush1.msra.mxu0 %v231
      %693 = vmatprep.subr.mxu0 0.0
      %694 = vmatpush1.msra.mxu0 %v232
      %695 = vmatprep.subr.mxu0 0.0
      %696 = vmatpush1.msra.mxu0 %v233
      %697 = vmatprep.subr.mxu0 0.0
      %698 = vmatpush1.msra.mxu0 0.0
      %699 = vmatprep.subr.mxu0 0.0
      %700 = vmatpush1.msra.mxu0 0.0
      %701 = vmatprep.subr.mxu0 0.0
      %702 = vmatpush1.msra.mxu0 0.0
      %703 = vmatprep.subr.mxu0 0.0
      %704 = vmatpush1.msra.mxu0 0.0
      %705 = vmatprep.subr.mxu0 0.0
      %706 = vmatpush1.msra.mxu0 0.0
      %707 = vmatprep.subr.mxu0 0.0
      %708 = vmatpush1.msra.mxu0 0.0
      %709 = vmatprep.subr.mxu0 0.0
      %710 = vmatpush1.msra.mxu0 0.0
      %711 = vmatprep.subr.mxu0 0.0
      %712 = vmatpush1.msra.mxu0 0.0
      %713 = vmatprep.subr.mxu0 0.0
      %714 = vmatpush1.msra.mxu0 0.0
      %715 = vmatprep.subr.mxu0 0.0
      %716 = vmatpush1.msra.mxu0 0.0
      %717 = vmatprep.subr.mxu0 0.0
      %718 = vmatpush1.msra.mxu0 0.0
      %719 = vmatprep.subr.mxu0 0.0
      %720 = vmatpush1.msra.mxu0 0.0
      %721 = vmatprep.subr.mxu0 0.0
      %722 = vmatpush1.msra.mxu0 0.0
      %723 = vmatprep.subr.mxu0 0.0
      %724 = vmatpush1.msra.mxu0 0.0
      %725 = vmatprep.subr.mxu0 0.0
      %726 = vmatpush1.msra.mxu0 0.0
      %727 = vmatprep.subr.mxu0 0.0
      %728 = vmatpush1.msra.mxu0 0.0
      %729 = vmatprep.subr.mxu0 0.0
      %730 = vmatpush1.msra.mxu0 0.0
      %731 = vmatprep.subr.mxu0 0.0
      %732 = vmatpush1.msra.mxu0 0.0
      %733 = vmatprep.subr.mxu0 0.0
      %734 = vmatpush1.msra.mxu0 0.0
      %735 = vmatprep.subr.mxu0 0.0
      %736 = vmatpush1.msra.mxu0 0.0
      %737 = vmatprep.subr.mxu0 0.0
      %738 = vmatpush1.msra.mxu0 0.0
      %739 = vmatprep.subr.mxu0 0.0
      %740 = vmatpush1.msra.mxu0 0.0
      %741 = vmatprep.subr.mxu0 0.0
      %742 = vmatpush1.msra.mxu0 0.0
      %743 = vmatprep.subr.mxu0 0.0
      %744 = vmatpush1.msra.mxu0 0.0
      %745 = vmatprep.subr.mxu0 0.0
      %746 = vmatpush1.msra.mxu0 0.0
      %747 = vmatprep.subr.mxu0 0.0
      %748 = vmatpush1.msra.mxu0 0.0
      %749 = vmatprep.subr.mxu0 0.0
      %750 = vmatpush1.msra.mxu0 0.0
      %751 = vmatprep.subr.mxu0 0.0
      %752 = vmatpush1.msra.mxu0 0.0
      %753 = vmatprep.mubr.f32.mxu0 0.0
      %754 = vmatmul.mubr.f32.gmra.mrb[0].mxu0 %v594
      %v755 = vpop.f32.mrb[0].mxu0
      %v756 = vadd.f32 %v435, %v755
      %v757 = vpop.f32.mrb[0].mxu0
      %758 = vmatprep.mubr.f32.mxu0 0.0
      %759 = vmatmul.mubr.f32.gmra.mrb[0].mxu0 %v597
      %v760 = vpop.f32.mrb[0].mxu0
      %v761 = vadd.f32 %v440, %v760
      %v762 = vpop.f32.mrb[0].mxu0
      %763 = vmatprep.mubr.f32.mxu0 0.0
      %764 = vmatmul.mubr.f32.gmra.mrb[0].mxu0 %v600
      %v765 = vpop.f32.mrb[0].mxu0
      %v766 = vadd.f32 %v445, %v765
      %v767 = vpop.f32.mrb[0].mxu0
      %768 = vmatprep.mubr.f32.mxu0 0.0
      %769 = vmatmul.mubr.f32.gmra.mrb[0].mxu0 %v603
      %v770 = vpop.f32.mrb[0].mxu0
      %v771 = vadd.f32 %v450, %v770
      %v772 = vpop.f32.mrb[0].mxu0
      %773 = vmatprep.mubr.f32.mxu0 0.0
      %774 = vmatmul.mubr.f32.gmra.mrb[0].mxu0 %v606
      %v775 = vpop.f32.mrb[0].mxu0
      %v776 = vadd.f32 %v455, %v775
      %v777 = vpop.f32.mrb[0].mxu0
      %778 = vmatprep.mubr.f32.mxu0 0.0
      %779 = vmatmul.mubr.f32.gmra.mrb[0].mxu0 %v609
      %v780 = vpop.f32.mrb[0].mxu0
      %v781 = vadd.f32 %v460, %v780
      %v782 = vpop.f32.mrb[0].mxu0
      %783 = vmatprep.mubr.f32.mxu0 0.0
      %784 = vmatmul.mubr.f32.gmra.mrb[0].mxu0 %v612
      %v785 = vpop.f32.mrb[0].mxu0
      %v786 = vadd.f32 %v465, %v785
      %v787 = vpop.f32.mrb[0].mxu0
      %788 = vmatprep.mubr.f32.mxu0 0.0
      %789 = vmatmul.mubr.f32.gmra.mrb[0].mxu0 %v615
      %v790 = vpop.f32.mrb[0].mxu0
      %v791 = vadd.f32 %v470, %v790
      %v792 = vpop.f32.mrb[0].mxu0
      %793 = vmatprep.mubr.f32.mxu0 0.0
      %794 = vmatmul.mubr.f32.gmra.mrb[0].mxu0 %v618
      %v795 = vpop.f32.mrb[0].mxu0
      %v796 = vadd.f32 %v475, %v795
      %v797 = vpop.f32.mrb[0].mxu0
      %798 = vmatprep.mubr.f32.mxu0 0.0
      %799 = vmatmul.mubr.f32.gmra.mrb[0].mxu0 %v621
      %v800 = vpop.f32.mrb[0].mxu0
      %v801 = vadd.f32 %v480, %v800
      %v802 = vpop.f32.mrb[0].mxu0
      %803 = vmatprep.mubr.f32.mxu0 0.0
      %804 = vmatmul.mubr.f32.gmra.mrb[0].mxu0 %v624
      %v805 = vpop.f32.mrb[0].mxu0
      %v806 = vadd.f32 %v485, %v805
      %v807 = vpop.f32.mrb[0].mxu0
      %808 = vmatprep.mubr.f32.mxu0 0.0
      %809 = vmatmul.mubr.f32.gmra.mrb[0].mxu0 %v627
      %v810 = vpop.f32.mrb[0].mxu0
      %v811 = vadd.f32 %v490, %v810
      %v812 = vpop.f32.mrb[0].mxu0
      %813 = vmatprep.mubr.f32.mxu0 0.0
      %814 = vmatmul.mubr.f32.gmra.mrb[0].mxu0 %v630
      %v815 = vpop.f32.mrb[0].mxu0
      %v816 = vadd.f32 %v495, %v815
      %v817 = vpop.f32.mrb[0].mxu0
      %818 = vmatprep.mubr.f32.mxu0 0.0
      %819 = vmatmul.mubr.f32.gmra.mrb[0].mxu0 %v633
      %v820 = vpop.f32.mrb[0].mxu0
      %v821 = vadd.f32 %v500, %v820
      %v822 = vpop.f32.mrb[0].mxu0
      %823 = vmatprep.mubr.f32.mxu0 0.0
      %824 = vmatmul.mubr.f32.gmra.mrb[0].mxu0 %v636
      %v825 = vpop.f32.mrb[0].mxu0
      %v826 = vadd.f32 %v505, %v825
      %v827 = vpop.f32.mrb[0].mxu0
      %828 = vmatprep.mubr.f32.mxu0 0.0
      %829 = vmatmul.mubr.f32.gmra.mrb[0].mxu0 %v639
      %v830 = vpop.f32.mrb[0].mxu0
      %v831 = vadd.f32 %v510, %v830
      %v832 = vpop.f32.mrb[0].mxu0
      %833 = vmatprep.mubr.f32.mxu0 0.0
      %834 = vmatmul.mubr.f32.gmra.mrb[0].mxu0 %v642
      %v835 = vpop.f32.mrb[0].mxu0
      %v836 = vadd.f32 %v515, %v835
      %v837 = vpop.f32.mrb[0].mxu0
      %838 = vmatprep.mubr.f32.mxu0 0.0
      %839 = vmatmul.mubr.f32.gmra.mrb[0].mxu0 %v645
      %v840 = vpop.f32.mrb[0].mxu0
      %v841 = vadd.f32 %v520, %v840
      %v842 = vpop.f32.mrb[0].mxu0
      %843 = vmatprep.mubr.f32.mxu0 0.0
      %844 = vmatmul.mubr.f32.gmra.mrb[0].mxu0 %v648
      %v845 = vpop.f32.mrb[0].mxu0
      %v846 = vadd.f32 %v525, %v845
      %v847 = vpop.f32.mrb[0].mxu0
      %848 = vmatprep.mubr.f32.mxu0 0.0
      %849 = vmatmul.mubr.f32.gmra.mrb[0].mxu0 %v651
      %v850 = vpop.f32.mrb[0].mxu0
      %v851 = vadd.f32 %v530, %v850
      %v852 = vpop.f32.mrb[0].mxu0
      %853 = vmatprep.mubr.f32.mxu0 0.0
      %854 = vmatmul.mubr.f32.gmra.mrb[0].mxu0 %v654
      %v855 = vpop.f32.mrb[0].mxu0
      %v856 = vadd.f32 %v535, %v855
      %v857 = vpop.f32.mrb[0].mxu0
      %858 = vmatprep.mubr.f32.mxu0 0.0
      %859 = vmatmul.mubr.f32.gmra.mrb[0].mxu0 %v657
      %v860 = vpop.f32.mrb[0].mxu0
      %v861 = vadd.f32 %v540, %v860
      %v862 = vpop.f32.mrb[0].mxu0
      %863 = vmatprep.mubr.f32.mxu0 0.0
      %864 = vmatmul.mubr.f32.gmra.mrb[0].mxu0 %v660
      %v865 = vpop.f32.mrb[0].mxu0
      %v866 = vadd.f32 %v545, %v865
      %v867 = vpop.f32.mrb[0].mxu0
      %868 = vmatprep.mubr.f32.mxu0 0.0
      %869 = vmatmul.mubr.f32.gmra.mrb[0].mxu0 %v663
      %v870 = vpop.f32.mrb[0].mxu0
      %v871 = vadd.f32 %v550, %v870
      %v872 = vpop.f32.mrb[0].mxu0
      %873 = vmatprep.mubr.f32.mxu0 0.0
      %874 = vmatmul.mubr.f32.gmra.mrb[0].mxu0 %v666
      %v875 = vpop.f32.mrb[0].mxu0
      %v876 = vadd.f32 %v555, %v875
      %v877 = vpop.f32.mrb[0].mxu0
      %878 = vmatprep.mubr.f32.mxu0 0.0
      %879 = vmatmul.mubr.f32.gmra.mrb[0].mxu0 %v669
      %v880 = vpop.f32.mrb[0].mxu0
      %v881 = vadd.f32 %v560, %v880
      %v882 = vpop.f32.mrb[0].mxu0
      %883 = vmatprep.mubr.f32.mxu0 0.0
      %884 = vmatmul.mubr.f32.gmra.mrb[0].mxu0 %v672
      %v885 = vpop.f32.mrb[0].mxu0
      %v886 = vadd.f32 %v565, %v885
      %v887 = vpop.f32.mrb[0].mxu0
      %888 = vmatprep.mubr.f32.mxu0 0.0
      %889 = vmatmul.mubr.f32.gmra.mrb[0].mxu0 %v675
      %v890 = vpop.f32.mrb[0].mxu0
      %v891 = vadd.f32 %v570, %v890
      %v892 = vpop.f32.mrb[0].mxu0
      %893 = vmatprep.mubr.f32.mxu0 0.0
      %894 = vmatmul.mubr.f32.gmra.mrb[0].mxu0 %v678
      %v895 = vpop.f32.mrb[0].mxu0
      %v896 = vadd.f32 %v575, %v895
      %v897 = vpop.f32.mrb[0].mxu0
      %898 = vmatprep.mubr.f32.mxu0 0.0
      %899 = vmatmul.mubr.f32.gmra.mrb[0].mxu0 %v681
      %v900 = vpop.f32.mrb[0].mxu0
      %v901 = vadd.f32 %v580, %v900
      %v902 = vpop.f32.mrb[0].mxu0
      %903 = vmatprep.mubr.f32.mxu0 0.0
      %904 = vmatmul.mubr.f32.gmra.mrb[0].mxu0 %v684
      %v905 = vpop.f32.mrb[0].mxu0
      %v906 = vadd.f32 %v585, %v905
      %v907 = vpop.f32.mrb[0].mxu0
      %908 = vmatprep.mubr.f32.mxu0 0.0
      %909 = vmatmul.mubr.f32.gmra.mrb[0].mxu0 %v687
      %v910 = vpop.f32.mrb[0].mxu0
      %v911 = vadd.f32 %v590, %v910
      %v912 = vpop.f32.mrb[0].mxu0
      %913 = vdwg.mxu0
      %v914 = vld [vmem:[%s192 + $0x2] sm:$0xff]
      %v915 = vld [vmem:[%s192 + $0x12] sm:$0xff]
      %v916 = vld [vmem:[%s192 + $0x22] sm:$0xff]
      %v917 = vld [vmem:[%s192 + $0x32] sm:$0xff]
      %v918 = vld [vmem:[%s192 + $0x42] sm:$0xff]
      %v919 = vld [vmem:[%s192 + $0x52] sm:$0xff]
      %v920 = vld [vmem:[%s192 + $0x62] sm:$0xff]
      %v921 = vld [vmem:[%s192 + $0x72] sm:$0xff]
      %v922 = vld [vmem:[%s192 + $0xa2] sm:$0xff]
      %v923 = vld [vmem:[%s192 + $0xb2] sm:$0xff]
      %v924 = vld [vmem:[%s192 + $0xc2] sm:$0xff]
      %v925 = vld [vmem:[%s192 + $0xd2] sm:$0xff]
      %v926 = vld [vmem:[%s192 + $0xe2] sm:$0xff]
      %v927 = vld [vmem:[%s192 + $0xf2] sm:$0xff]
      %v928 = vld [vmem:[%s192 + $0x102] sm:$0xff]
      %v929 = vld [vmem:[%s192 + $0x112] sm:$0xff]
      %v930 = vld [vmem:[%s192 + $0x142] sm:$0xff]
      %v931 = vld [vmem:[%s192 + $0x152] sm:$0xff]
      %v932 = vld [vmem:[%s192 + $0x162] sm:$0xff]
      %v933 = vld [vmem:[%s192 + $0x172] sm:$0xff]
      %v934 = vld [vmem:[%s192 + $0x182] sm:$0xff]
      %v935 = vld [vmem:[%s192 + $0x192] sm:$0xff]
      %v936 = vld [vmem:[%s192 + $0x1a2] sm:$0xff]
      %v937 = vld [vmem:[%s192 + $0x1b2] sm:$0xff]
      %v938 = vld [vmem:[%s192 + $0x1e2] sm:$0xff]
      %v939 = vld [vmem:[%s192 + $0x1f2] sm:$0xff]
      %v940 = vld [vmem:[%s192 + $0x202] sm:$0xff]
      %v941 = vld [vmem:[%s192 + $0x212] sm:$0xff]
      %v942 = vld [vmem:[%s192 + $0x222] sm:$0xff]
      %v943 = vld [vmem:[%s192 + $0x232] sm:$0xff]
      %v944 = vld [vmem:[%s192 + $0x242] sm:$0xff]
      %v945 = vld [vmem:[%s192 + $0x252] sm:$0xff]
      %s946 = scalar_lea.vmem %s1, 64
      %v947 = vld [vmem:[%s946] sm:$0xff]
      %v948 = vld [vmem:[%s946 + $0x8] sm:$0xff]
      %v949 = vld [vmem:[%s946 + $0x10] sm:$0xff]
      %v950 = vld [vmem:[%s946 + $0x18] sm:$0xff]
      %v952 = vsel %vm271, %v914, 0
      %v955 = vsel %vm271, %v915, 0
      %v958 = vsel %vm271, %v916, 0
      %v961 = vsel %vm271, %v917, 0
      %v964 = vsel %vm271, %v918, 0
      %v967 = vsel %vm271, %v919, 0
      %v970 = vsel %vm271, %v920, 0
      %v973 = vsel %vm271, %v921, 0
      %v976 = vsel %vm271, %v922, 0
      %v979 = vsel %vm271, %v923, 0
      %v982 = vsel %vm271, %v924, 0
      %v985 = vsel %vm271, %v925, 0
      %v988 = vsel %vm271, %v926, 0
      %v991 = vsel %vm271, %v927, 0
      %v994 = vsel %vm271, %v928, 0
      %v997 = vsel %vm271, %v929, 0
      %v1000 = vsel %vm271, %v930, 0
      %v1003 = vsel %vm271, %v931, 0
      %v1006 = vsel %vm271, %v932, 0
      %v1009 = vsel %vm271, %v933, 0
      %v1012 = vsel %vm271, %v934, 0
      %v1015 = vsel %vm271, %v935, 0
      %v1018 = vsel %vm271, %v936, 0
      %v1021 = vsel %vm271, %v937, 0
      %v1024 = vsel %vm271, %v938, 0
      %v1027 = vsel %vm271, %v939, 0
      %v1030 = vsel %vm271, %v940, 0
      %v1033 = vsel %vm271, %v941, 0
      %v1036 = vsel %vm271, %v942, 0
      %v1039 = vsel %vm271, %v943, 0
      %v1042 = vsel %vm271, %v944, 0
      %v1045 = vsel %vm271, %v945, 0
      %1047 = vmatprep.subr.mxu0 0.0
      %1048 = vmatpush1.msra.mxu0 %v947
      %1049 = vmatprep.subr.mxu0 0.0
      %1050 = vmatpush1.msra.mxu0 %v948
      %1051 = vmatprep.subr.mxu0 0.0
      %1052 = vmatpush1.msra.mxu0 %v949
      %1053 = vmatprep.subr.mxu0 0.0
      %1054 = vmatpush1.msra.mxu0 %v950
      %1055 = vmatprep.subr.mxu0 0.0
      %1056 = vmatpush1.msra.mxu0 0.0
      %1057 = vmatprep.subr.mxu0 0.0
      %1058 = vmatpush1.msra.mxu0 0.0
      %1059 = vmatprep.subr.mxu0 0.0
      %1060 = vmatpush1.msra.mxu0 0.0
      %1061 = vmatprep.subr.mxu0 0.0
      %1062 = vmatpush1.msra.mxu0 0.0
      %1063 = vmatprep.subr.mxu0 0.0
      %1064 = vmatpush1.msra.mxu0 0.0
      %1065 = vmatprep.subr.mxu0 0.0
      %1066 = vmatpush1.msra.mxu0 0.0
      %1067 = vmatprep.subr.mxu0 0.0
      %1068 = vmatpush1.msra.mxu0 0.0
      %1069 = vmatprep.subr.mxu0 0.0
      %1070 = vmatpush1.msra.mxu0 0.0
      %1071 = vmatprep.subr.mxu0 0.0
      %1072 = vmatpush1.msra.mxu0 0.0
      %1073 = vmatprep.subr.mxu0 0.0
      %1074 = vmatpush1.msra.mxu0 0.0
      %1075 = vmatprep.subr.mxu0 0.0
      %1076 = vmatpush1.msra.mxu0 0.0
      %1077 = vmatprep.subr.mxu0 0.0
      %1078 = vmatpush1.msra.mxu0 0.0
      %1079 = vmatprep.subr.mxu0 0.0
      %1080 = vmatpush1.msra.mxu0 0.0
      %1081 = vmatprep.subr.mxu0 0.0
      %1082 = vmatpush1.msra.mxu0 0.0
      %1083 = vmatprep.subr.mxu0 0.0
      %1084 = vmatpush1.msra.mxu0 0.0
      %1085 = vmatprep.subr.mxu0 0.0
      %1086 = vmatpush1.msra.mxu0 0.0
      %1087 = vmatprep.subr.mxu0 0.0
      %1088 = vmatpush1.msra.mxu0 0.0
      %1089 = vmatprep.subr.mxu0 0.0
      %1090 = vmatpush1.msra.mxu0 0.0
      %1091 = vmatprep.subr.mxu0 0.0
      %1092 = vmatpush1.msra.mxu0 0.0
      %1093 = vmatprep.subr.mxu0 0.0
      %1094 = vmatpush1.msra.mxu0 0.0
      %1095 = vmatprep.subr.mxu0 0.0
      %1096 = vmatpush1.msra.mxu0 0.0
      %1097 = vmatprep.subr.mxu0 0.0
      %1098 = vmatpush1.msra.mxu0 0.0
      %1099 = vmatprep.subr.mxu0 0.0
      %1100 = vmatpush1.msra.mxu0 0.0
      %1101 = vmatprep.subr.mxu0 0.0
      %1102 = vmatpush1.msra.mxu0 0.0
      %1103 = vmatprep.subr.mxu0 0.0
      %1104 = vmatpush1.msra.mxu0 0.0
      %1105 = vmatprep.subr.mxu0 0.0
      %1106 = vmatpush1.msra.mxu0 0.0
      %1107 = vmatprep.subr.mxu0 0.0
      %1108 = vmatpush1.msra.mxu0 0.0
      %1109 = vmatprep.subr.mxu0 0.0
      %1110 = vmatpush1.msra.mxu0 0.0
      %1111 = vmatprep.mubr.f32.mxu0 0.0
      %1112 = vmatmul.mubr.f32.gmra.mrb[0].mxu0 %v952
      %v1113 = vpop.f32.mrb[0].mxu0
      %v1114 = vadd.f32 0.0, %v1113
      %v1115 = vpop.f32.mrb[0].mxu0
      %1116 = vmatprep.mubr.f32.mxu0 0.0
      %1117 = vmatmul.mubr.f32.gmra.mrb[0].mxu0 %v955
      %v1118 = vpop.f32.mrb[0].mxu0
      %v1119 = vadd.f32 0.0, %v1118
      %v1120 = vpop.f32.mrb[0].mxu0
      %1121 = vmatprep.mubr.f32.mxu0 0.0
      %1122 = vmatmul.mubr.f32.gmra.mrb[0].mxu0 %v958
      %v1123 = vpop.f32.mrb[0].mxu0
      %v1124 = vadd.f32 0.0, %v1123
      %v1125 = vpop.f32.mrb[0].mxu0
      %1126 = vmatprep.mubr.f32.mxu0 0.0
      %1127 = vmatmul.mubr.f32.gmra.mrb[0].mxu0 %v961
      %v1128 = vpop.f32.mrb[0].mxu0
      %v1129 = vadd.f32 0.0, %v1128
      %v1130 = vpop.f32.mrb[0].mxu0
      %1131 = vmatprep.mubr.f32.mxu0 0.0
      %1132 = vmatmul.mubr.f32.gmra.mrb[0].mxu0 %v964
      %v1133 = vpop.f32.mrb[0].mxu0
      %v1134 = vadd.f32 0.0, %v1133
      %v1135 = vpop.f32.mrb[0].mxu0
      %1136 = vmatprep.mubr.f32.mxu0 0.0
      %1137 = vmatmul.mubr.f32.gmra.mrb[0].mxu0 %v967
      %v1138 = vpop.f32.mrb[0].mxu0
      %v1139 = vadd.f32 0.0, %v1138
      %v1140 = vpop.f32.mrb[0].mxu0
      %1141 = vmatprep.mubr.f32.mxu0 0.0
      %1142 = vmatmul.mubr.f32.gmra.mrb[0].mxu0 %v970
      %v1143 = vpop.f32.mrb[0].mxu0
      %v1144 = vadd.f32 0.0, %v1143
      %v1145 = vpop.f32.mrb[0].mxu0
      %1146 = vmatprep.mubr.f32.mxu0 0.0
      %1147 = vmatmul.mubr.f32.gmra.mrb[0].mxu0 %v973
      %v1148 = vpop.f32.mrb[0].mxu0
      %v1149 = vadd.f32 0.0, %v1148
      %v1150 = vpop.f32.mrb[0].mxu0
      %1151 = vmatprep.mubr.f32.mxu0 0.0
      %1152 = vmatmul.mubr.f32.gmra.mrb[0].mxu0 %v976
      %v1153 = vpop.f32.mrb[0].mxu0
      %v1154 = vadd.f32 0.0, %v1153
      %v1155 = vpop.f32.mrb[0].mxu0
      %1156 = vmatprep.mubr.f32.mxu0 0.0
      %1157 = vmatmul.mubr.f32.gmra.mrb[0].mxu0 %v979
      %v1158 = vpop.f32.mrb[0].mxu0
      %v1159 = vadd.f32 0.0, %v1158
      %v1160 = vpop.f32.mrb[0].mxu0
      %1161 = vmatprep.mubr.f32.mxu0 0.0
      %1162 = vmatmul.mubr.f32.gmra.mrb[0].mxu0 %v982
      %v1163 = vpop.f32.mrb[0].mxu0
      %v1164 = vadd.f32 0.0, %v1163
      %v1165 = vpop.f32.mrb[0].mxu0
      %1166 = vmatprep.mubr.f32.mxu0 0.0
      %1167 = vmatmul.mubr.f32.gmra.mrb[0].mxu0 %v985
      %v1168 = vpop.f32.mrb[0].mxu0
      %v1169 = vadd.f32 0.0, %v1168
      %v1170 = vpop.f32.mrb[0].mxu0
      %1171 = vmatprep.mubr.f32.mxu0 0.0
      %1172 = vmatmul.mubr.f32.gmra.mrb[0].mxu0 %v988
      %v1173 = vpop.f32.mrb[0].mxu0
      %v1174 = vadd.f32 0.0, %v1173
      %v1175 = vpop.f32.mrb[0].mxu0
      %1176 = vmatprep.mubr.f32.mxu0 0.0
      %1177 = vmatmul.mubr.f32.gmra.mrb[0].mxu0 %v991
      %v1178 = vpop.f32.mrb[0].mxu0
      %v1179 = vadd.f32 0.0, %v1178
      %v1180 = vpop.f32.mrb[0].mxu0
      %1181 = vmatprep.mubr.f32.mxu0 0.0
      %1182 = vmatmul.mubr.f32.gmra.mrb[0].mxu0 %v994
      %v1183 = vpop.f32.mrb[0].mxu0
      %v1184 = vadd.f32 0.0, %v1183
      %v1185 = vpop.f32.mrb[0].mxu0
      %1186 = vmatprep.mubr.f32.mxu0 0.0
      %1187 = vmatmul.mubr.f32.gmra.mrb[0].mxu0 %v997
      %v1188 = vpop.f32.mrb[0].mxu0
      %v1189 = vadd.f32 0.0, %v1188
      %v1190 = vpop.f32.mrb[0].mxu0
      %1191 = vmatprep.mubr.f32.mxu0 0.0
      %1192 = vmatmul.mubr.f32.gmra.mrb[0].mxu0 %v1000
      %v1193 = vpop.f32.mrb[0].mxu0
      %v1194 = vadd.f32 0.0, %v1193
      %v1195 = vpop.f32.mrb[0].mxu0
      %1196 = vmatprep.mubr.f32.mxu0 0.0
      %1197 = vmatmul.mubr.f32.gmra.mrb[0].mxu0 %v1003
      %v1198 = vpop.f32.mrb[0].mxu0
      %v1199 = vadd.f32 0.0, %v1198
      %v1200 = vpop.f32.mrb[0].mxu0
      %1201 = vmatprep.mubr.f32.mxu0 0.0
      %1202 = vmatmul.mubr.f32.gmra.mrb[0].mxu0 %v1006
      %v1203 = vpop.f32.mrb[0].mxu0
      %v1204 = vadd.f32 0.0, %v1203
      %v1205 = vpop.f32.mrb[0].mxu0
      %1206 = vmatprep.mubr.f32.mxu0 0.0
      %1207 = vmatmul.mubr.f32.gmra.mrb[0].mxu0 %v1009
      %v1208 = vpop.f32.mrb[0].mxu0
      %v1209 = vadd.f32 0.0, %v1208
      %v1210 = vpop.f32.mrb[0].mxu0
      %1211 = vmatprep.mubr.f32.mxu0 0.0
      %1212 = vmatmul.mubr.f32.gmra.mrb[0].mxu0 %v1012
      %v1213 = vpop.f32.mrb[0].mxu0
      %v1214 = vadd.f32 0.0, %v1213
      %v1215 = vpop.f32.mrb[0].mxu0
      %1216 = vmatprep.mubr.f32.mxu0 0.0
      %1217 = vmatmul.mubr.f32.gmra.mrb[0].mxu0 %v1015
      %v1218 = vpop.f32.mrb[0].mxu0
      %v1219 = vadd.f32 0.0, %v1218
      %v1220 = vpop.f32.mrb[0].mxu0
      %1221 = vmatprep.mubr.f32.mxu0 0.0
      %1222 = vmatmul.mubr.f32.gmra.mrb[0].mxu0 %v1018
      %v1223 = vpop.f32.mrb[0].mxu0
      %v1224 = vadd.f32 0.0, %v1223
      %v1225 = vpop.f32.mrb[0].mxu0
      %1226 = vmatprep.mubr.f32.mxu0 0.0
      %1227 = vmatmul.mubr.f32.gmra.mrb[0].mxu0 %v1021
      %v1228 = vpop.f32.mrb[0].mxu0
      %v1229 = vadd.f32 0.0, %v1228
      %v1230 = vpop.f32.mrb[0].mxu0
      %1231 = vmatprep.mubr.f32.mxu0 0.0
      %1232 = vmatmul.mubr.f32.gmra.mrb[0].mxu0 %v1024
      %v1233 = vpop.f32.mrb[0].mxu0
      %v1234 = vadd.f32 0.0, %v1233
      %v1235 = vpop.f32.mrb[0].mxu0
      %1236 = vmatprep.mubr.f32.mxu0 0.0
      %1237 = vmatmul.mubr.f32.gmra.mrb[0].mxu0 %v1027
      %v1238 = vpop.f32.mrb[0].mxu0
      %v1239 = vadd.f32 0.0, %v1238
      %v1240 = vpop.f32.mrb[0].mxu0
      %1241 = vmatprep.mubr.f32.mxu0 0.0
      %1242 = vmatmul.mubr.f32.gmra.mrb[0].mxu0 %v1030
      %v1243 = vpop.f32.mrb[0].mxu0
      %v1244 = vadd.f32 0.0, %v1243
      %v1245 = vpop.f32.mrb[0].mxu0
      %1246 = vmatprep.mubr.f32.mxu0 0.0
      %1247 = vmatmul.mubr.f32.gmra.mrb[0].mxu0 %v1033
      %v1248 = vpop.f32.mrb[0].mxu0
      %v1249 = vadd.f32 0.0, %v1248
      %v1250 = vpop.f32.mrb[0].mxu0
      %1251 = vmatprep.mubr.f32.mxu0 0.0
      %1252 = vmatmul.mubr.f32.gmra.mrb[0].mxu0 %v1036
      %v1253 = vpop.f32.mrb[0].mxu0
      %v1254 = vadd.f32 0.0, %v1253
      %v1255 = vpop.f32.mrb[0].mxu0
      %1256 = vmatprep.mubr.f32.mxu0 0.0
      %1257 = vmatmul.mubr.f32.gmra.mrb[0].mxu0 %v1039
      %v1258 = vpop.f32.mrb[0].mxu0
      %v1259 = vadd.f32 0.0, %v1258
      %v1260 = vpop.f32.mrb[0].mxu0
      %1261 = vmatprep.mubr.f32.mxu0 0.0
      %1262 = vmatmul.mubr.f32.gmra.mrb[0].mxu0 %v1042
      %v1263 = vpop.f32.mrb[0].mxu0
      %v1264 = vadd.f32 0.0, %v1263
      %v1265 = vpop.f32.mrb[0].mxu0
      %1266 = vmatprep.mubr.f32.mxu0 0.0
      %1267 = vmatmul.mubr.f32.gmra.mrb[0].mxu0 %v1045
      %v1268 = vpop.f32.mrb[0].mxu0
      %v1269 = vadd.f32 0.0, %v1268
      %v1270 = vpop.f32.mrb[0].mxu0
      %1271 = vdwg.mxu0
      %v1272 = vadd.f32 %v756, %v1114
      %v1273 = vadd.f32 %v761, %v1119
      %v1274 = vadd.f32 %v766, %v1124
      %v1275 = vadd.f32 %v771, %v1129
      %v1276 = vadd.f32 %v776, %v1134
      %v1277 = vadd.f32 %v781, %v1139
      %v1278 = vadd.f32 %v786, %v1144
      %v1279 = vadd.f32 %v791, %v1149
      %v1280 = vadd.f32 %v796, %v1154
      %v1281 = vadd.f32 %v801, %v1159
      %v1282 = vadd.f32 %v806, %v1164
      %v1283 = vadd.f32 %v811, %v1169
      %v1284 = vadd.f32 %v816, %v1174
      %v1285 = vadd.f32 %v821, %v1179
      %v1286 = vadd.f32 %v826, %v1184
      %v1287 = vadd.f32 %v831, %v1189
      %v1288 = vadd.f32 %v836, %v1194
      %v1289 = vadd.f32 %v841, %v1199
      %v1290 = vadd.f32 %v846, %v1204
      %v1291 = vadd.f32 %v851, %v1209
      %v1292 = vadd.f32 %v856, %v1214
      %v1293 = vadd.f32 %v861, %v1219
      %v1294 = vadd.f32 %v866, %v1224
      %v1295 = vadd.f32 %v871, %v1229
      %v1296 = vadd.f32 %v876, %v1234
      %v1297 = vadd.f32 %v881, %v1239
      %v1298 = vadd.f32 %v886, %v1244
      %v1299 = vadd.f32 %v891, %v1249
      %v1300 = vadd.f32 %v896, %v1254
      %v1301 = vadd.f32 %v901, %v1259
      %v1302 = vadd.f32 %v906, %v1264
      %v1303 = vadd.f32 %v911, %v1269
      %s1304 = scalar_lea.vmem %s192, 16
      %v1305 = vld [vmem:[%s1304] sm:$0xff]
      %v1306 = vld [vmem:[%s1304 + $0x10] sm:$0xff]
      %v1307 = vld [vmem:[%s1304 + $0x20] sm:$0xff]
      %v1308 = vld [vmem:[%s1304 + $0x30] sm:$0xff]
      %v1309 = vld [vmem:[%s1304 + $0x40] sm:$0xff]
      %v1310 = vld [vmem:[%s1304 + $0x50] sm:$0xff]
      %v1311 = vld [vmem:[%s1304 + $0x60] sm:$0xff]
      %v1312 = vld [vmem:[%s1304 + $0x70] sm:$0xff]
      %v1313 = vld [vmem:[%s1304 + $0xa0] sm:$0xff]
      %v1314 = vld [vmem:[%s1304 + $0xb0] sm:$0xff]
      %v1315 = vld [vmem:[%s1304 + $0xc0] sm:$0xff]
      %v1316 = vld [vmem:[%s1304 + $0xd0] sm:$0xff]
      %v1317 = vld [vmem:[%s1304 + $0xe0] sm:$0xff]
      %v1318 = vld [vmem:[%s1304 + $0xf0] sm:$0xff]
      %v1319 = vld [vmem:[%s1304 + $0x100] sm:$0xff]
      %v1320 = vld [vmem:[%s1304 + $0x110] sm:$0xff]
      %v1321 = vld [vmem:[%s1304 + $0x140] sm:$0xff]
      %v1322 = vld [vmem:[%s1304 + $0x150] sm:$0xff]
      %v1323 = vld [vmem:[%s1304 + $0x160] sm:$0xff]
      %v1324 = vld [vmem:[%s1304 + $0x170] sm:$0xff]
      %v1325 = vld [vmem:[%s1304 + $0x180] sm:$0xff]
      %v1326 = vld [vmem:[%s1304 + $0x190] sm:$0xff]
      %v1327 = vld [vmem:[%s1304 + $0x1a0] sm:$0xff]
      %v1328 = vld [vmem:[%s1304 + $0x1b0] sm:$0xff]
      %v1329 = vld [vmem:[%s1304 + $0x1e0] sm:$0xff]
      %v1330 = vld [vmem:[%s1304 + $0x1f0] sm:$0xff]
      %v1331 = vld [vmem:[%s1304 + $0x200] sm:$0xff]
      %v1332 = vld [vmem:[%s1304 + $0x210] sm:$0xff]
      %v1333 = vld [vmem:[%s1304 + $0x220] sm:$0xff]
      %v1334 = vld [vmem:[%s1304 + $0x230] sm:$0xff]
      %v1335 = vld [vmem:[%s1304 + $0x240] sm:$0xff]
      %v1336 = vld [vmem:[%s1304 + $0x250] sm:$0xff]
      %s1337 = scalar_lea.vmem %s1, 96
      %v1338 = vld [vmem:[%s1337] sm:$0xff]
      %v1339 = vld [vmem:[%s1337 + $0x8] sm:$0xff]
      %v1340 = vld [vmem:[%s1337 + $0x10] sm:$0xff]
      %v1341 = vld [vmem:[%s1337 + $0x18] sm:$0xff]
      %v1343 = vsel %vm271, %v1305, 0
      %v1346 = vsel %vm271, %v1306, 0
      %v1349 = vsel %vm271, %v1307, 0
      %v1352 = vsel %vm271, %v1308, 0
      %v1355 = vsel %vm271, %v1309, 0
      %v1358 = vsel %vm271, %v1310, 0
      %v1361 = vsel %vm271, %v1311, 0
      %v1364 = vsel %vm271, %v1312, 0
      %v1367 = vsel %vm271, %v1313, 0
      %v1370 = vsel %vm271, %v1314, 0
      %v1373 = vsel %vm271, %v1315, 0
      %v1376 = vsel %vm271, %v1316, 0
      %v1379 = vsel %vm271, %v1317, 0
      %v1382 = vsel %vm271, %v1318, 0
      %v1385 = vsel %vm271, %v1319, 0
      %v1388 = vsel %vm271, %v1320, 0
      %v1391 = vsel %vm271, %v1321, 0
      %v1394 = vsel %vm271, %v1322, 0
      %v1397 = vsel %vm271, %v1323, 0
      %v1400 = vsel %vm271, %v1324, 0
      %v1403 = vsel %vm271, %v1325, 0
      %v1406 = vsel %vm271, %v1326, 0
      %v1409 = vsel %vm271, %v1327, 0
      %v1412 = vsel %vm271, %v1328, 0
      %v1415 = vsel %vm271, %v1329, 0
      %v1418 = vsel %vm271, %v1330, 0
      %v1421 = vsel %vm271, %v1331, 0
      %v1424 = vsel %vm271, %v1332, 0
      %v1427 = vsel %vm271, %v1333, 0
      %v1430 = vsel %vm271, %v1334, 0
      %v1433 = vsel %vm271, %v1335, 0
      %v1436 = vsel %vm271, %v1336, 0
      %1438 = vmatprep.subr.mxu0 0.0
      %1439 = vmatpush1.msra.mxu0 %v1338
      %1440 = vmatprep.subr.mxu0 0.0
      %1441 = vmatpush1.msra.mxu0 %v1339
      %1442 = vmatprep.subr.mxu0 0.0
      %1443 = vmatpush1.msra.mxu0 %v1340
      %1444 = vmatprep.subr.mxu0 0.0
      %1445 = vmatpush1.msra.mxu0 %v1341
      %1446 = vmatprep.subr.mxu0 0.0
      %1447 = vmatpush1.msra.mxu0 0.0
      %1448 = vmatprep.subr.mxu0 0.0
      %1449 = vmatpush1.msra.mxu0 0.0
      %1450 = vmatprep.subr.mxu0 0.0
      %1451 = vmatpush1.msra.mxu0 0.0
      %1452 = vmatprep.subr.mxu0 0.0
      %1453 = vmatpush1.msra.mxu0 0.0
      %1454 = vmatprep.subr.mxu0 0.0
      %1455 = vmatpush1.msra.mxu0 0.0
      %1456 = vmatprep.subr.mxu0 0.0
      %1457 = vmatpush1.msra.mxu0 0.0
      %1458 = vmatprep.subr.mxu0 0.0
      %1459 = vmatpush1.msra.mxu0 0.0
      %1460 = vmatprep.subr.mxu0 0.0
      %1461 = vmatpush1.msra.mxu0 0.0
      %1462 = vmatprep.subr.mxu0 0.0
      %1463 = vmatpush1.msra.mxu0 0.0
      %1464 = vmatprep.subr.mxu0 0.0
      %1465 = vmatpush1.msra.mxu0 0.0
      %1466 = vmatprep.subr.mxu0 0.0
      %1467 = vmatpush1.msra.mxu0 0.0
      %1468 = vmatprep.subr.mxu0 0.0
      %1469 = vmatpush1.msra.mxu0 0.0
      %1470 = vmatprep.subr.mxu0 0.0
      %1471 = vmatpush1.msra.mxu0 0.0
      %1472 = vmatprep.subr.mxu0 0.0
      %1473 = vmatpush1.msra.mxu0 0.0
      %1474 = vmatprep.subr.mxu0 0.0
      %1475 = vmatpush1.msra.mxu0 0.0
      %1476 = vmatprep.subr.mxu0 0.0
      %1477 = vmatpush1.msra.mxu0 0.0
      %1478 = vmatprep.subr.mxu0 0.0
      %1479 = vmatpush1.msra.mxu0 0.0
      %1480 = vmatprep.subr.mxu0 0.0
      %1481 = vmatpush1.msra.mxu0 0.0
      %1482 = vmatprep.subr.mxu0 0.0
      %1483 = vmatpush1.msra.mxu0 0.0
      %1484 = vmatprep.subr.mxu0 0.0
      %1485 = vmatpush1.msra.mxu0 0.0
      %1486 = vmatprep.subr.mxu0 0.0
      %1487 = vmatpush1.msra.mxu0 0.0
      %1488 = vmatprep.subr.mxu0 0.0
      %1489 = vmatpush1.msra.mxu0 0.0
      %1490 = vmatprep.subr.mxu0 0.0
      %1491 = vmatpush1.msra.mxu0 0.0
      %1492 = vmatprep.subr.mxu0 0.0
      %1493 = vmatpush1.msra.mxu0 0.0
      %1494 = vmatprep.subr.mxu0 0.0
      %1495 = vmatpush1.msra.mxu0 0.0
      %1496 = vmatprep.subr.mxu0 0.0
      %1497 = vmatpush1.msra.mxu0 0.0
      %1498 = vmatprep.subr.mxu0 0.0
      %1499 = vmatpush1.msra.mxu0 0.0
      %1500 = vmatprep.subr.mxu0 0.0
      %1501 = vmatpush1.msra.mxu0 0.0
      %1502 = vmatprep.mubr.f32.mxu0 0.0
      %1503 = vmatmul.mubr.f32.gmra.mrb[0].mxu0 %v1343
      %v1504 = vpop.f32.mrb[0].mxu0
      %v1505 = vadd.f32 0.0, %v1504
      %v1506 = vpop.f32.mrb[0].mxu0
      %1507 = vmatprep.mubr.f32.mxu0 0.0
      %1508 = vmatmul.mubr.f32.gmra.mrb[0].mxu0 %v1346
      %v1509 = vpop.f32.mrb[0].mxu0
      %v1510 = vadd.f32 0.0, %v1509
      %v1511 = vpop.f32.mrb[0].mxu0
      %1512 = vmatprep.mubr.f32.mxu0 0.0
      %1513 = vmatmul.mubr.f32.gmra.mrb[0].mxu0 %v1349
      %v1514 = vpop.f32.mrb[0].mxu0
      %v1515 = vadd.f32 0.0, %v1514
      %v1516 = vpop.f32.mrb[0].mxu0
      %1517 = vmatprep.mubr.f32.mxu0 0.0
      %1518 = vmatmul.mubr.f32.gmra.mrb[0].mxu0 %v1352
      %v1519 = vpop.f32.mrb[0].mxu0
      %v1520 = vadd.f32 0.0, %v1519
      %v1521 = vpop.f32.mrb[0].mxu0
      %1522 = vmatprep.mubr.f32.mxu0 0.0
      %1523 = vmatmul.mubr.f32.gmra.mrb[0].mxu0 %v1355
      %v1524 = vpop.f32.mrb[0].mxu0
      %v1525 = vadd.f32 0.0, %v1524
      %v1526 = vpop.f32.mrb[0].mxu0
      %1527 = vmatprep.mubr.f32.mxu0 0.0
      %1528 = vmatmul.mubr.f32.gmra.mrb[0].mxu0 %v1358
      %v1529 = vpop.f32.mrb[0].mxu0
      %v1530 = vadd.f32 0.0, %v1529
      %v1531 = vpop.f32.mrb[0].mxu0
      %1532 = vmatprep.mubr.f32.mxu0 0.0
      %1533 = vmatmul.mubr.f32.gmra.mrb[0].mxu0 %v1361
      %v1534 = vpop.f32.mrb[0].mxu0
      %v1535 = vadd.f32 0.0, %v1534
      %v1536 = vpop.f32.mrb[0].mxu0
      %1537 = vmatprep.mubr.f32.mxu0 0.0
      %1538 = vmatmul.mubr.f32.gmra.mrb[0].mxu0 %v1364
      %v1539 = vpop.f32.mrb[0].mxu0
      %v1540 = vadd.f32 0.0, %v1539
      %v1541 = vpop.f32.mrb[0].mxu0
      %1542 = vmatprep.mubr.f32.mxu0 0.0
      %1543 = vmatmul.mubr.f32.gmra.mrb[0].mxu0 %v1367
      %v1544 = vpop.f32.mrb[0].mxu0
      %v1545 = vadd.f32 0.0, %v1544
      %v1546 = vpop.f32.mrb[0].mxu0
      %1547 = vmatprep.mubr.f32.mxu0 0.0
      %1548 = vmatmul.mubr.f32.gmra.mrb[0].mxu0 %v1370
      %v1549 = vpop.f32.mrb[0].mxu0
      %v1550 = vadd.f32 0.0, %v1549
      %v1551 = vpop.f32.mrb[0].mxu0
      %1552 = vmatprep.mubr.f32.mxu0 0.0
      %1553 = vmatmul.mubr.f32.gmra.mrb[0].mxu0 %v1373
      %v1554 = vpop.f32.mrb[0].mxu0
      %v1555 = vadd.f32 0.0, %v1554
      %v1556 = vpop.f32.mrb[0].mxu0
      %1557 = vmatprep.mubr.f32.mxu0 0.0
      %1558 = vmatmul.mubr.f32.gmra.mrb[0].mxu0 %v1376
      %v1559 = vpop.f32.mrb[0].mxu0
      %v1560 = vadd.f32 0.0, %v1559
      %v1561 = vpop.f32.mrb[0].mxu0
      %1562 = vmatprep.mubr.f32.mxu0 0.0
      %1563 = vmatmul.mubr.f32.gmra.mrb[0].mxu0 %v1379
      %v1564 = vpop.f32.mrb[0].mxu0
      %v1565 = vadd.f32 0.0, %v1564
      %v1566 = vpop.f32.mrb[0].mxu0
      %1567 = vmatprep.mubr.f32.mxu0 0.0
      %1568 = vmatmul.mubr.f32.gmra.mrb[0].mxu0 %v1382
      %v1569 = vpop.f32.mrb[0].mxu0
      %v1570 = vadd.f32 0.0, %v1569
      %v1571 = vpop.f32.mrb[0].mxu0
      %1572 = vmatprep.mubr.f32.mxu0 0.0
      %1573 = vmatmul.mubr.f32.gmra.mrb[0].mxu0 %v1385
      %v1574 = vpop.f32.mrb[0].mxu0
      %v1575 = vadd.f32 0.0, %v1574
      %v1576 = vpop.f32.mrb[0].mxu0
      %1577 = vmatprep.mubr.f32.mxu0 0.0
      %1578 = vmatmul.mubr.f32.gmra.mrb[0].mxu0 %v1388
      %v1579 = vpop.f32.mrb[0].mxu0
      %v1580 = vadd.f32 0.0, %v1579
      %v1581 = vpop.f32.mrb[0].mxu0
      %1582 = vmatprep.mubr.f32.mxu0 0.0
      %1583 = vmatmul.mubr.f32.gmra.mrb[0].mxu0 %v1391
      %v1584 = vpop.f32.mrb[0].mxu0
      %v1585 = vadd.f32 0.0, %v1584
      %v1586 = vpop.f32.mrb[0].mxu0
      %1587 = vmatprep.mubr.f32.mxu0 0.0
      %1588 = vmatmul.mubr.f32.gmra.mrb[0].mxu0 %v1394
      %v1589 = vpop.f32.mrb[0].mxu0
      %v1590 = vadd.f32 0.0, %v1589
      %v1591 = vpop.f32.mrb[0].mxu0
      %1592 = vmatprep.mubr.f32.mxu0 0.0
      %1593 = vmatmul.mubr.f32.gmra.mrb[0].mxu0 %v1397
      %v1594 = vpop.f32.mrb[0].mxu0
      %v1595 = vadd.f32 0.0, %v1594
      %v1596 = vpop.f32.mrb[0].mxu0
      %1597 = vmatprep.mubr.f32.mxu0 0.0
      %1598 = vmatmul.mubr.f32.gmra.mrb[0].mxu0 %v1400
      %v1599 = vpop.f32.mrb[0].mxu0
      %v1600 = vadd.f32 0.0, %v1599
      %v1601 = vpop.f32.mrb[0].mxu0
      %1602 = vmatprep.mubr.f32.mxu0 0.0
      %1603 = vmatmul.mubr.f32.gmra.mrb[0].mxu0 %v1403
      %v1604 = vpop.f32.mrb[0].mxu0
      %v1605 = vadd.f32 0.0, %v1604
      %v1606 = vpop.f32.mrb[0].mxu0
      %1607 = vmatprep.mubr.f32.mxu0 0.0
      %1608 = vmatmul.mubr.f32.gmra.mrb[0].mxu0 %v1406
      %v1609 = vpop.f32.mrb[0].mxu0
      %v1610 = vadd.f32 0.0, %v1609
      %v1611 = vpop.f32.mrb[0].mxu0
      %1612 = vmatprep.mubr.f32.mxu0 0.0
      %1613 = vmatmul.mubr.f32.gmra.mrb[0].mxu0 %v1409
      %v1614 = vpop.f32.mrb[0].mxu0
      %v1615 = vadd.f32 0.0, %v1614
      %v1616 = vpop.f32.mrb[0].mxu0
      %1617 = vmatprep.mubr.f32.mxu0 0.0
      %1618 = vmatmul.mubr.f32.gmra.mrb[0].mxu0 %v1412
      %v1619 = vpop.f32.mrb[0].mxu0
      %v1620 = vadd.f32 0.0, %v1619
      %v1621 = vpop.f32.mrb[0].mxu0
      %1622 = vmatprep.mubr.f32.mxu0 0.0
      %1623 = vmatmul.mubr.f32.gmra.mrb[0].mxu0 %v1415
      %v1624 = vpop.f32.mrb[0].mxu0
      %v1625 = vadd.f32 0.0, %v1624
      %v1626 = vpop.f32.mrb[0].mxu0
      %1627 = vmatprep.mubr.f32.mxu0 0.0
      %1628 = vmatmul.mubr.f32.gmra.mrb[0].mxu0 %v1418
      %v1629 = vpop.f32.mrb[0].mxu0
      %v1630 = vadd.f32 0.0, %v1629
      %v1631 = vpop.f32.mrb[0].mxu0
      %1632 = vmatprep.mubr.f32.mxu0 0.0
      %1633 = vmatmul.mubr.f32.gmra.mrb[0].mxu0 %v1421
      %v1634 = vpop.f32.mrb[0].mxu0
      %v1635 = vadd.f32 0.0, %v1634
      %v1636 = vpop.f32.mrb[0].mxu0
      %1637 = vmatprep.mubr.f32.mxu0 0.0
      %1638 = vmatmul.mubr.f32.gmra.mrb[0].mxu0 %v1424
      %v1639 = vpop.f32.mrb[0].mxu0
      %v1640 = vadd.f32 0.0, %v1639
      %v1641 = vpop.f32.mrb[0].mxu0
      %1642 = vmatprep.mubr.f32.mxu0 0.0
      %1643 = vmatmul.mubr.f32.gmra.mrb[0].mxu0 %v1427
      %v1644 = vpop.f32.mrb[0].mxu0
      %v1645 = vadd.f32 0.0, %v1644
      %v1646 = vpop.f32.mrb[0].mxu0
      %1647 = vmatprep.mubr.f32.mxu0 0.0
      %1648 = vmatmul.mubr.f32.gmra.mrb[0].mxu0 %v1430
      %v1649 = vpop.f32.mrb[0].mxu0
      %v1650 = vadd.f32 0.0, %v1649
      %v1651 = vpop.f32.mrb[0].mxu0
      %1652 = vmatprep.mubr.f32.mxu0 0.0
      %1653 = vmatmul.mubr.f32.gmra.mrb[0].mxu0 %v1433
      %v1654 = vpop.f32.mrb[0].mxu0
      %v1655 = vadd.f32 0.0, %v1654
      %v1656 = vpop.f32.mrb[0].mxu0
      %1657 = vmatprep.mubr.f32.mxu0 0.0
      %1658 = vmatmul.mubr.f32.gmra.mrb[0].mxu0 %v1436
      %v1659 = vpop.f32.mrb[0].mxu0
      %v1660 = vadd.f32 0.0, %v1659
      %v1661 = vpop.f32.mrb[0].mxu0
      %1662 = vdwg.mxu0
      %v1663 = vadd.f32 %v1272, %v1505
      %v1664 = vadd.f32 %v1273, %v1510
      %v1665 = vadd.f32 %v1274, %v1515
      %v1666 = vadd.f32 %v1275, %v1520
      %v1667 = vadd.f32 %v1276, %v1525
      %v1668 = vadd.f32 %v1277, %v1530
      %v1669 = vadd.f32 %v1278, %v1535
      %v1670 = vadd.f32 %v1279, %v1540
      %v1671 = vadd.f32 %v1280, %v1545
      %v1672 = vadd.f32 %v1281, %v1550
      %v1673 = vadd.f32 %v1282, %v1555
      %v1674 = vadd.f32 %v1283, %v1560
      %v1675 = vadd.f32 %v1284, %v1565
      %v1676 = vadd.f32 %v1285, %v1570
      %v1677 = vadd.f32 %v1286, %v1575
      %v1678 = vadd.f32 %v1287, %v1580
      %v1679 = vadd.f32 %v1288, %v1585
      %v1680 = vadd.f32 %v1289, %v1590
      %v1681 = vadd.f32 %v1290, %v1595
      %v1682 = vadd.f32 %v1291, %v1600
      %v1683 = vadd.f32 %v1292, %v1605
      %v1684 = vadd.f32 %v1293, %v1610
      %v1685 = vadd.f32 %v1294, %v1615
      %v1686 = vadd.f32 %v1295, %v1620
      %v1687 = vadd.f32 %v1296, %v1625
      %v1688 = vadd.f32 %v1297, %v1630
      %v1689 = vadd.f32 %v1298, %v1635
      %v1690 = vadd.f32 %v1299, %v1640
      %v1691 = vadd.f32 %v1300, %v1645
      %v1692 = vadd.f32 %v1301, %v1650
      %v1693 = vadd.f32 %v1302, %v1655
      %v1694 = vadd.f32 %v1303, %v1660
      %v1695 = vld [vmem:[%s1304 + $0x1] sm:$0xff]
      %v1696 = vld [vmem:[%s1304 + $0x11] sm:$0xff]
      %v1697 = vld [vmem:[%s1304 + $0x21] sm:$0xff]
      %v1698 = vld [vmem:[%s1304 + $0x31] sm:$0xff]
      %v1699 = vld [vmem:[%s1304 + $0x41] sm:$0xff]
      %v1700 = vld [vmem:[%s1304 + $0x51] sm:$0xff]
      %v1701 = vld [vmem:[%s1304 + $0x61] sm:$0xff]
      %v1702 = vld [vmem:[%s1304 + $0x71] sm:$0xff]
      %v1703 = vld [vmem:[%s1304 + $0xa1] sm:$0xff]
      %v1704 = vld [vmem:[%s1304 + $0xb1] sm:$0xff]
      %v1705 = vld [vmem:[%s1304 + $0xc1] sm:$0xff]
      %v1706 = vld [vmem:[%s1304 + $0xd1] sm:$0xff]
      %v1707 = vld [vmem:[%s1304 + $0xe1] sm:$0xff]
      %v1708 = vld [vmem:[%s1304 + $0xf1] sm:$0xff]
      %v1709 = vld [vmem:[%s1304 + $0x101] sm:$0xff]
      %v1710 = vld [vmem:[%s1304 + $0x111] sm:$0xff]
      %v1711 = vld [vmem:[%s1304 + $0x141] sm:$0xff]
      %v1712 = vld [vmem:[%s1304 + $0x151] sm:$0xff]
      %v1713 = vld [vmem:[%s1304 + $0x161] sm:$0xff]
      %v1714 = vld [vmem:[%s1304 + $0x171] sm:$0xff]
      %v1715 = vld [vmem:[%s1304 + $0x181] sm:$0xff]
      %v1716 = vld [vmem:[%s1304 + $0x191] sm:$0xff]
      %v1717 = vld [vmem:[%s1304 + $0x1a1] sm:$0xff]
      %v1718 = vld [vmem:[%s1304 + $0x1b1] sm:$0xff]
      %v1719 = vld [vmem:[%s1304 + $0x1e1] sm:$0xff]
      %v1720 = vld [vmem:[%s1304 + $0x1f1] sm:$0xff]
      %v1721 = vld [vmem:[%s1304 + $0x201] sm:$0xff]
      %v1722 = vld [vmem:[%s1304 + $0x211] sm:$0xff]
      %v1723 = vld [vmem:[%s1304 + $0x221] sm:$0xff]
      %v1724 = vld [vmem:[%s1304 + $0x231] sm:$0xff]
      %v1725 = vld [vmem:[%s1304 + $0x241] sm:$0xff]
      %v1726 = vld [vmem:[%s1304 + $0x251] sm:$0xff]
      %s1727 = scalar_lea.vmem %s1, 128
      %v1728 = vld [vmem:[%s1727] sm:$0xff]
      %v1729 = vld [vmem:[%s1727 + $0x8] sm:$0xff]
      %v1730 = vld [vmem:[%s1727 + $0x10] sm:$0xff]
      %v1731 = vld [vmem:[%s1727 + $0x18] sm:$0xff]
      %v1733 = vsel %vm271, %v1695, 0
      %v1736 = vsel %vm271, %v1696, 0
      %v1739 = vsel %vm271, %v1697, 0
      %v1742 = vsel %vm271, %v1698, 0
      %v1745 = vsel %vm271, %v1699, 0
      %v1748 = vsel %vm271, %v1700, 0
      %v1751 = vsel %vm271, %v1701, 0
      %v1754 = vsel %vm271, %v1702, 0
      %v1757 = vsel %vm271, %v1703, 0
      %v1760 = vsel %vm271, %v1704, 0
      %v1763 = vsel %vm271, %v1705, 0
      %v1766 = vsel %vm271, %v1706, 0
      %v1769 = vsel %vm271, %v1707, 0
      %v1772 = vsel %vm271, %v1708, 0
      %v1775 = vsel %vm271, %v1709, 0
      %v1778 = vsel %vm271, %v1710, 0
      %v1781 = vsel %vm271, %v1711, 0
      %v1784 = vsel %vm271, %v1712, 0
      %v1787 = vsel %vm271, %v1713, 0
      %v1790 = vsel %vm271, %v1714, 0
      %v1793 = vsel %vm271, %v1715, 0
      %v1796 = vsel %vm271, %v1716, 0
      %v1799 = vsel %vm271, %v1717, 0
      %v1802 = vsel %vm271, %v1718, 0
      %v1805 = vsel %vm271, %v1719, 0
      %v1808 = vsel %vm271, %v1720, 0
      %v1811 = vsel %vm271, %v1721, 0
      %v1814 = vsel %vm271, %v1722, 0
      %v1817 = vsel %vm271, %v1723, 0
      %v1820 = vsel %vm271, %v1724, 0
      %v1823 = vsel %vm271, %v1725, 0
      %v1826 = vsel %vm271, %v1726, 0
      %1828 = vmatprep.subr.mxu0 0.0
      %1829 = vmatpush1.msra.mxu0 %v1728
      %1830 = vmatprep.subr.mxu0 0.0
      %1831 = vmatpush1.msra.mxu0 %v1729
      %1832 = vmatprep.subr.mxu0 0.0
      %1833 = vmatpush1.msra.mxu0 %v1730
      %1834 = vmatprep.subr.mxu0 0.0
      %1835 = vmatpush1.msra.mxu0 %v1731
      %1836 = vmatprep.subr.mxu0 0.0
      %1837 = vmatpush1.msra.mxu0 0.0
      %1838 = vmatprep.subr.mxu0 0.0
      %1839 = vmatpush1.msra.mxu0 0.0
      %1840 = vmatprep.subr.mxu0 0.0
      %1841 = vmatpush1.msra.mxu0 0.0
      %1842 = vmatprep.subr.mxu0 0.0
      %1843 = vmatpush1.msra.mxu0 0.0
      %1844 = vmatprep.subr.mxu0 0.0
      %1845 = vmatpush1.msra.mxu0 0.0
      %1846 = vmatprep.subr.mxu0 0.0
      %1847 = vmatpush1.msra.mxu0 0.0
      %1848 = vmatprep.subr.mxu0 0.0
      %1849 = vmatpush1.msra.mxu0 0.0
      %1850 = vmatprep.subr.mxu0 0.0
      %1851 = vmatpush1.msra.mxu0 0.0
      %1852 = vmatprep.subr.mxu0 0.0
      %1853 = vmatpush1.msra.mxu0 0.0
      %1854 = vmatprep.subr.mxu0 0.0
      %1855 = vmatpush1.msra.mxu0 0.0
      %1856 = vmatprep.subr.mxu0 0.0
      %1857 = vmatpush1.msra.mxu0 0.0
      %1858 = vmatprep.subr.mxu0 0.0
      %1859 = vmatpush1.msra.mxu0 0.0
      %1860 = vmatprep.subr.mxu0 0.0
      %1861 = vmatpush1.msra.mxu0 0.0
      %1862 = vmatprep.subr.mxu0 0.0
      %1863 = vmatpush1.msra.mxu0 0.0
      %1864 = vmatprep.subr.mxu0 0.0
      %1865 = vmatpush1.msra.mxu0 0.0
      %1866 = vmatprep.subr.mxu0 0.0
      %1867 = vmatpush1.msra.mxu0 0.0
      %1868 = vmatprep.subr.mxu0 0.0
      %1869 = vmatpush1.msra.mxu0 0.0
      %1870 = vmatprep.subr.mxu0 0.0
      %1871 = vmatpush1.msra.mxu0 0.0
      %1872 = vmatprep.subr.mxu0 0.0
      %1873 = vmatpush1.msra.mxu0 0.0
      %1874 = vmatprep.subr.mxu0 0.0
      %1875 = vmatpush1.msra.mxu0 0.0
      %1876 = vmatprep.subr.mxu0 0.0
      %1877 = vmatpush1.msra.mxu0 0.0
      %1878 = vmatprep.subr.mxu0 0.0
      %1879 = vmatpush1.msra.mxu0 0.0
      %1880 = vmatprep.subr.mxu0 0.0
      %1881 = vmatpush1.msra.mxu0 0.0
      %1882 = vmatprep.subr.mxu0 0.0
      %1883 = vmatpush1.msra.mxu0 0.0
      %1884 = vmatprep.subr.mxu0 0.0
      %1885 = vmatpush1.msra.mxu0 0.0
      %1886 = vmatprep.subr.mxu0 0.0
      %1887 = vmatpush1.msra.mxu0 0.0
      %1888 = vmatprep.subr.mxu0 0.0
      %1889 = vmatpush1.msra.mxu0 0.0
      %1890 = vmatprep.subr.mxu0 0.0
      %1891 = vmatpush1.msra.mxu0 0.0
      %1892 = vmatprep.mubr.f32.mxu0 0.0
      %1893 = vmatmul.mubr.f32.gmra.mrb[0].mxu0 %v1733
      %v1894 = vpop.f32.mrb[0].mxu0
      %v1895 = vadd.f32 0.0, %v1894
      %v1896 = vpop.f32.mrb[0].mxu0
      %1897 = vmatprep.mubr.f32.mxu0 0.0
      %1898 = vmatmul.mubr.f32.gmra.mrb[0].mxu0 %v1736
      %v1899 = vpop.f32.mrb[0].mxu0
      %v1900 = vadd.f32 0.0, %v1899
      %v1901 = vpop.f32.mrb[0].mxu0
      %1902 = vmatprep.mubr.f32.mxu0 0.0
      %1903 = vmatmul.mubr.f32.gmra.mrb[0].mxu0 %v1739
      %v1904 = vpop.f32.mrb[0].mxu0
      %v1905 = vadd.f32 0.0, %v1904
      %v1906 = vpop.f32.mrb[0].mxu0
      %1907 = vmatprep.mubr.f32.mxu0 0.0
      %1908 = vmatmul.mubr.f32.gmra.mrb[0].mxu0 %v1742
      %v1909 = vpop.f32.mrb[0].mxu0
      %v1910 = vadd.f32 0.0, %v1909
      %v1911 = vpop.f32.mrb[0].mxu0
      %1912 = vmatprep.mubr.f32.mxu0 0.0
      %1913 = vmatmul.mubr.f32.gmra.mrb[0].mxu0 %v1745
      %v1914 = vpop.f32.mrb[0].mxu0
      %v1915 = vadd.f32 0.0, %v1914
      %v1916 = vpop.f32.mrb[0].mxu0
      %1917 = vmatprep.mubr.f32.mxu0 0.0
      %1918 = vmatmul.mubr.f32.gmra.mrb[0].mxu0 %v1748
      %v1919 = vpop.f32.mrb[0].mxu0
      %v1920 = vadd.f32 0.0, %v1919
      %v1921 = vpop.f32.mrb[0].mxu0
      %1922 = vmatprep.mubr.f32.mxu0 0.0
      %1923 = vmatmul.mubr.f32.gmra.mrb[0].mxu0 %v1751
      %v1924 = vpop.f32.mrb[0].mxu0
      %v1925 = vadd.f32 0.0, %v1924
      %v1926 = vpop.f32.mrb[0].mxu0
      %1927 = vmatprep.mubr.f32.mxu0 0.0
      %1928 = vmatmul.mubr.f32.gmra.mrb[0].mxu0 %v1754
      %v1929 = vpop.f32.mrb[0].mxu0
      %v1930 = vadd.f32 0.0, %v1929
      %v1931 = vpop.f32.mrb[0].mxu0
      %1932 = vmatprep.mubr.f32.mxu0 0.0
      %1933 = vmatmul.mubr.f32.gmra.mrb[0].mxu0 %v1757
      %v1934 = vpop.f32.mrb[0].mxu0
      %v1935 = vadd.f32 0.0, %v1934
      %v1936 = vpop.f32.mrb[0].mxu0
      %1937 = vmatprep.mubr.f32.mxu0 0.0
      %1938 = vmatmul.mubr.f32.gmra.mrb[0].mxu0 %v1760
      %v1939 = vpop.f32.mrb[0].mxu0
      %v1940 = vadd.f32 0.0, %v1939
      %v1941 = vpop.f32.mrb[0].mxu0
      %1942 = vmatprep.mubr.f32.mxu0 0.0
      %1943 = vmatmul.mubr.f32.gmra.mrb[0].mxu0 %v1763
      %v1944 = vpop.f32.mrb[0].mxu0
      %v1945 = vadd.f32 0.0, %v1944
      %v1946 = vpop.f32.mrb[0].mxu0
      %1947 = vmatprep.mubr.f32.mxu0 0.0
      %1948 = vmatmul.mubr.f32.gmra.mrb[0].mxu0 %v1766
      %v1949 = vpop.f32.mrb[0].mxu0
      %v1950 = vadd.f32 0.0, %v1949
      %v1951 = vpop.f32.mrb[0].mxu0
      %1952 = vmatprep.mubr.f32.mxu0 0.0
      %1953 = vmatmul.mubr.f32.gmra.mrb[0].mxu0 %v1769
      %v1954 = vpop.f32.mrb[0].mxu0
      %v1955 = vadd.f32 0.0, %v1954
      %v1956 = vpop.f32.mrb[0].mxu0
      %1957 = vmatprep.mubr.f32.mxu0 0.0
      %1958 = vmatmul.mubr.f32.gmra.mrb[0].mxu0 %v1772
      %v1959 = vpop.f32.mrb[0].mxu0
      %v1960 = vadd.f32 0.0, %v1959
      %v1961 = vpop.f32.mrb[0].mxu0
      %1962 = vmatprep.mubr.f32.mxu0 0.0
      %1963 = vmatmul.mubr.f32.gmra.mrb[0].mxu0 %v1775
      %v1964 = vpop.f32.mrb[0].mxu0
      %v1965 = vadd.f32 0.0, %v1964
      %v1966 = vpop.f32.mrb[0].mxu0
      %1967 = vmatprep.mubr.f32.mxu0 0.0
      %1968 = vmatmul.mubr.f32.gmra.mrb[0].mxu0 %v1778
      %v1969 = vpop.f32.mrb[0].mxu0
      %v1970 = vadd.f32 0.0, %v1969
      %v1971 = vpop.f32.mrb[0].mxu0
      %1972 = vmatprep.mubr.f32.mxu0 0.0
      %1973 = vmatmul.mubr.f32.gmra.mrb[0].mxu0 %v1781
      %v1974 = vpop.f32.mrb[0].mxu0
      %v1975 = vadd.f32 0.0, %v1974
      %v1976 = vpop.f32.mrb[0].mxu0
      %1977 = vmatprep.mubr.f32.mxu0 0.0
      %1978 = vmatmul.mubr.f32.gmra.mrb[0].mxu0 %v1784
      %v1979 = vpop.f32.mrb[0].mxu0
      %v1980 = vadd.f32 0.0, %v1979
      %v1981 = vpop.f32.mrb[0].mxu0
      %1982 = vmatprep.mubr.f32.mxu0 0.0
      %1983 = vmatmul.mubr.f32.gmra.mrb[0].mxu0 %v1787
      %v1984 = vpop.f32.mrb[0].mxu0
      %v1985 = vadd.f32 0.0, %v1984
      %v1986 = vpop.f32.mrb[0].mxu0
      %1987 = vmatprep.mubr.f32.mxu0 0.0
      %1988 = vmatmul.mubr.f32.gmra.mrb[0].mxu0 %v1790
      %v1989 = vpop.f32.mrb[0].mxu0
      %v1990 = vadd.f32 0.0, %v1989
      %v1991 = vpop.f32.mrb[0].mxu0
      %1992 = vmatprep.mubr.f32.mxu0 0.0
      %1993 = vmatmul.mubr.f32.gmra.mrb[0].mxu0 %v1793
      %v1994 = vpop.f32.mrb[0].mxu0
      %v1995 = vadd.f32 0.0, %v1994
      %v1996 = vpop.f32.mrb[0].mxu0
      %1997 = vmatprep.mubr.f32.mxu0 0.0
      %1998 = vmatmul.mubr.f32.gmra.mrb[0].mxu0 %v1796
      %v1999 = vpop.f32.mrb[0].mxu0
      %v2000 = vadd.f32 0.0, %v1999
      %v2001 = vpop.f32.mrb[0].mxu0
      %2002 = vmatprep.mubr.f32.mxu0 0.0
      %2003 = vmatmul.mubr.f32.gmra.mrb[0].mxu0 %v1799
      %v2004 = vpop.f32.mrb[0].mxu0
      %v2005 = vadd.f32 0.0, %v2004
      %v2006 = vpop.f32.mrb[0].mxu0
      %2007 = vmatprep.mubr.f32.mxu0 0.0
      %2008 = vmatmul.mubr.f32.gmra.mrb[0].mxu0 %v1802
      %v2009 = vpop.f32.mrb[0].mxu0
      %v2010 = vadd.f32 0.0, %v2009
      %v2011 = vpop.f32.mrb[0].mxu0
      %2012 = vmatprep.mubr.f32.mxu0 0.0
      %2013 = vmatmul.mubr.f32.gmra.mrb[0].mxu0 %v1805
      %v2014 = vpop.f32.mrb[0].mxu0
      %v2015 = vadd.f32 0.0, %v2014
      %v2016 = vpop.f32.mrb[0].mxu0
      %2017 = vmatprep.mubr.f32.mxu0 0.0
      %2018 = vmatmul.mubr.f32.gmra.mrb[0].mxu0 %v1808
      %v2019 = vpop.f32.mrb[0].mxu0
      %v2020 = vadd.f32 0.0, %v2019
      %v2021 = vpop.f32.mrb[0].mxu0
      %2022 = vmatprep.mubr.f32.mxu0 0.0
      %2023 = vmatmul.mubr.f32.gmra.mrb[0].mxu0 %v1811
      %v2024 = vpop.f32.mrb[0].mxu0
      %v2025 = vadd.f32 0.0, %v2024
      %v2026 = vpop.f32.mrb[0].mxu0
      %2027 = vmatprep.mubr.f32.mxu0 0.0
      %2028 = vmatmul.mubr.f32.gmra.mrb[0].mxu0 %v1814
      %v2029 = vpop.f32.mrb[0].mxu0
      %v2030 = vadd.f32 0.0, %v2029
      %v2031 = vpop.f32.mrb[0].mxu0
      %2032 = vmatprep.mubr.f32.mxu0 0.0
      %2033 = vmatmul.mubr.f32.gmra.mrb[0].mxu0 %v1817
      %v2034 = vpop.f32.mrb[0].mxu0
      %v2035 = vadd.f32 0.0, %v2034
      %v2036 = vpop.f32.mrb[0].mxu0
      %2037 = vmatprep.mubr.f32.mxu0 0.0
      %2038 = vmatmul.mubr.f32.gmra.mrb[0].mxu0 %v1820
      %v2039 = vpop.f32.mrb[0].mxu0
      %v2040 = vadd.f32 0.0, %v2039
      %v2041 = vpop.f32.mrb[0].mxu0
      %2042 = vmatprep.mubr.f32.mxu0 0.0
      %2043 = vmatmul.mubr.f32.gmra.mrb[0].mxu0 %v1823
      %v2044 = vpop.f32.mrb[0].mxu0
      %v2045 = vadd.f32 0.0, %v2044
      %v2046 = vpop.f32.mrb[0].mxu0
      %2047 = vmatprep.mubr.f32.mxu0 0.0
      %2048 = vmatmul.mubr.f32.gmra.mrb[0].mxu0 %v1826
      %v2049 = vpop.f32.mrb[0].mxu0
      %v2050 = vadd.f32 0.0, %v2049
      %v2051 = vpop.f32.mrb[0].mxu0
      %2052 = vdwg.mxu0
      %v2053 = vadd.f32 %v1663, %v1895
      %v2054 = vadd.f32 %v1664, %v1900
      %v2055 = vadd.f32 %v1665, %v1905
      %v2056 = vadd.f32 %v1666, %v1910
      %v2057 = vadd.f32 %v1667, %v1915
      %v2058 = vadd.f32 %v1668, %v1920
      %v2059 = vadd.f32 %v1669, %v1925
      %v2060 = vadd.f32 %v1670, %v1930
      %v2061 = vadd.f32 %v1671, %v1935
      %v2062 = vadd.f32 %v1672, %v1940
      %v2063 = vadd.f32 %v1673, %v1945
      %v2064 = vadd.f32 %v1674, %v1950
      %v2065 = vadd.f32 %v1675, %v1955
      %v2066 = vadd.f32 %v1676, %v1960
      %v2067 = vadd.f32 %v1677, %v1965
      %v2068 = vadd.f32 %v1678, %v1970
      %v2069 = vadd.f32 %v1679, %v1975
      %v2070 = vadd.f32 %v1680, %v1980
      %v2071 = vadd.f32 %v1681, %v1985
      %v2072 = vadd.f32 %v1682, %v1990
      %v2073 = vadd.f32 %v1683, %v1995
      %v2074 = vadd.f32 %v1684, %v2000
      %v2075 = vadd.f32 %v1685, %v2005
      %v2076 = vadd.f32 %v1686, %v2010
      %v2077 = vadd.f32 %v1687, %v2015
      %v2078 = vadd.f32 %v1688, %v2020
      %v2079 = vadd.f32 %v1689, %v2025
      %v2080 = vadd.f32 %v1690, %v2030
      %v2081 = vadd.f32 %v1691, %v2035
      %v2082 = vadd.f32 %v1692, %v2040
      %v2083 = vadd.f32 %v1693, %v2045
      %v2084 = vadd.f32 %v1694, %v2050
      %v2085 = vld [vmem:[%s1304 + $0x2] sm:$0xff]
      %v2086 = vld [vmem:[%s1304 + $0x12] sm:$0xff]
      %v2087 = vld [vmem:[%s1304 + $0x22] sm:$0xff]
      %v2088 = vld [vmem:[%s1304 + $0x32] sm:$0xff]
      %v2089 = vld [vmem:[%s1304 + $0x42] sm:$0xff]
      %v2090 = vld [vmem:[%s1304 + $0x52] sm:$0xff]
      %v2091 = vld [vmem:[%s1304 + $0x62] sm:$0xff]
      %v2092 = vld [vmem:[%s1304 + $0x72] sm:$0xff]
      %v2093 = vld [vmem:[%s1304 + $0xa2] sm:$0xff]
      %v2094 = vld [vmem:[%s1304 + $0xb2] sm:$0xff]
      %v2095 = vld [vmem:[%s1304 + $0xc2] sm:$0xff]
      %v2096 = vld [vmem:[%s1304 + $0xd2] sm:$0xff]
      %v2097 = vld [vmem:[%s1304 + $0xe2] sm:$0xff]
      %v2098 = vld [vmem:[%s1304 + $0xf2] sm:$0xff]
      %v2099 = vld [vmem:[%s1304 + $0x102] sm:$0xff]
      %v2100 = vld [vmem:[%s1304 + $0x112] sm:$0xff]
      %v2101 = vld [vmem:[%s1304 + $0x142] sm:$0xff]
      %v2102 = vld [vmem:[%s1304 + $0x152] sm:$0xff]
      %v2103 = vld [vmem:[%s1304 + $0x162] sm:$0xff]
      %v2104 = vld [vmem:[%s1304 + $0x172] sm:$0xff]
      %v2105 = vld [vmem:[%s1304 + $0x182] sm:$0xff]
      %v2106 = vld [vmem:[%s1304 + $0x192] sm:$0xff]
      %v2107 = vld [vmem:[%s1304 + $0x1a2] sm:$0xff]
      %v2108 = vld [vmem:[%s1304 + $0x1b2] sm:$0xff]
      %v2109 = vld [vmem:[%s1304 + $0x1e2] sm:$0xff]
      %v2110 = vld [vmem:[%s1304 + $0x1f2] sm:$0xff]
      %v2111 = vld [vmem:[%s1304 + $0x202] sm:$0xff]
      %v2112 = vld [vmem:[%s1304 + $0x212] sm:$0xff]
      %v2113 = vld [vmem:[%s1304 + $0x222] sm:$0xff]
      %v2114 = vld [vmem:[%s1304 + $0x232] sm:$0xff]
      %v2115 = vld [vmem:[%s1304 + $0x242] sm:$0xff]
      %v2116 = vld [vmem:[%s1304 + $0x252] sm:$0xff]
      %s2117 = scalar_lea.vmem %s1, 160
      %v2118 = vld [vmem:[%s2117] sm:$0xff]
      %v2119 = vld [vmem:[%s2117 + $0x8] sm:$0xff]
      %v2120 = vld [vmem:[%s2117 + $0x10] sm:$0xff]
      %v2121 = vld [vmem:[%s2117 + $0x18] sm:$0xff]
      %v2123 = vsel %vm271, %v2085, 0
      %v2126 = vsel %vm271, %v2086, 0
      %v2129 = vsel %vm271, %v2087, 0
      %v2132 = vsel %vm271, %v2088, 0
      %v2135 = vsel %vm271, %v2089, 0
      %v2138 = vsel %vm271, %v2090, 0
      %v2141 = vsel %vm271, %v2091, 0
      %v2144 = vsel %vm271, %v2092, 0
      %v2147 = vsel %vm271, %v2093, 0
      %v2150 = vsel %vm271, %v2094, 0
      %v2153 = vsel %vm271, %v2095, 0
      %v2156 = vsel %vm271, %v2096, 0
      %v2159 = vsel %vm271, %v2097, 0
      %v2162 = vsel %vm271, %v2098, 0
      %v2165 = vsel %vm271, %v2099, 0
      %v2168 = vsel %vm271, %v2100, 0
      %v2171 = vsel %vm271, %v2101, 0
      %v2174 = vsel %vm271, %v2102, 0
      %v2177 = vsel %vm271, %v2103, 0
      %v2180 = vsel %vm271, %v2104, 0
      %v2183 = vsel %vm271, %v2105, 0
      %v2186 = vsel %vm271, %v2106, 0
      %v2189 = vsel %vm271, %v2107, 0
      %v2192 = vsel %vm271, %v2108, 0
      %v2195 = vsel %vm271, %v2109, 0
      %v2198 = vsel %vm271, %v2110, 0
      %v2201 = vsel %vm271, %v2111, 0
      %v2204 = vsel %vm271, %v2112, 0
      %v2207 = vsel %vm271, %v2113, 0
      %v2210 = vsel %vm271, %v2114, 0
      %v2213 = vsel %vm271, %v2115, 0
      %v2216 = vsel %vm271, %v2116, 0
      %2218 = vmatprep.subr.mxu0 0.0
      %2219 = vmatpush1.msra.mxu0 %v2118
      %2220 = vmatprep.subr.mxu0 0.0
      %2221 = vmatpush1.msra.mxu0 %v2119
      %2222 = vmatprep.subr.mxu0 0.0
      %2223 = vmatpush1.msra.mxu0 %v2120
      %2224 = vmatprep.subr.mxu0 0.0
      %2225 = vmatpush1.msra.mxu0 %v2121
      %2226 = vmatprep.subr.mxu0 0.0
      %2227 = vmatpush1.msra.mxu0 0.0
      %2228 = vmatprep.subr.mxu0 0.0
      %2229 = vmatpush1.msra.mxu0 0.0
      %2230 = vmatprep.subr.mxu0 0.0
      %2231 = vmatpush1.msra.mxu0 0.0
      %2232 = vmatprep.subr.mxu0 0.0
      %2233 = vmatpush1.msra.mxu0 0.0
      %2234 = vmatprep.subr.mxu0 0.0
      %2235 = vmatpush1.msra.mxu0 0.0
      %2236 = vmatprep.subr.mxu0 0.0
      %2237 = vmatpush1.msra.mxu0 0.0
      %2238 = vmatprep.subr.mxu0 0.0
      %2239 = vmatpush1.msra.mxu0 0.0
      %2240 = vmatprep.subr.mxu0 0.0
      %2241 = vmatpush1.msra.mxu0 0.0
      %2242 = vmatprep.subr.mxu0 0.0
      %2243 = vmatpush1.msra.mxu0 0.0
      %2244 = vmatprep.subr.mxu0 0.0
      %2245 = vmatpush1.msra.mxu0 0.0
      %2246 = vmatprep.subr.mxu0 0.0
      %2247 = vmatpush1.msra.mxu0 0.0
      %2248 = vmatprep.subr.mxu0 0.0
      %2249 = vmatpush1.msra.mxu0 0.0
      %2250 = vmatprep.subr.mxu0 0.0
      %2251 = vmatpush1.msra.mxu0 0.0
      %2252 = vmatprep.subr.mxu0 0.0
      %2253 = vmatpush1.msra.mxu0 0.0
      %2254 = vmatprep.subr.mxu0 0.0
      %2255 = vmatpush1.msra.mxu0 0.0
      %2256 = vmatprep.subr.mxu0 0.0
      %2257 = vmatpush1.msra.mxu0 0.0
      %2258 = vmatprep.subr.mxu0 0.0
      %2259 = vmatpush1.msra.mxu0 0.0
      %2260 = vmatprep.subr.mxu0 0.0
      %2261 = vmatpush1.msra.mxu0 0.0
      %2262 = vmatprep.subr.mxu0 0.0
      %2263 = vmatpush1.msra.mxu0 0.0
      %2264 = vmatprep.subr.mxu0 0.0
      %2265 = vmatpush1.msra.mxu0 0.0
      %2266 = vmatprep.subr.mxu0 0.0
      %2267 = vmatpush1.msra.mxu0 0.0
      %2268 = vmatprep.subr.mxu0 0.0
      %2269 = vmatpush1.msra.mxu0 0.0
      %2270 = vmatprep.subr.mxu0 0.0
      %2271 = vmatpush1.msra.mxu0 0.0
      %2272 = vmatprep.subr.mxu0 0.0
      %2273 = vmatpush1.msra.mxu0 0.0
      %2274 = vmatprep.subr.mxu0 0.0
      %2275 = vmatpush1.msra.mxu0 0.0
      %2276 = vmatprep.subr.mxu0 0.0
      %2277 = vmatpush1.msra.mxu0 0.0
      %2278 = vmatprep.subr.mxu0 0.0
      %2279 = vmatpush1.msra.mxu0 0.0
      %2280 = vmatprep.subr.mxu0 0.0
      %2281 = vmatpush1.msra.mxu0 0.0
      %2282 = vmatprep.mubr.f32.mxu0 0.0
      %2283 = vmatmul.mubr.f32.gmra.mrb[0].mxu0 %v2123
      %v2284 = vpop.f32.mrb[0].mxu0
      %v2285 = vadd.f32 0.0, %v2284
      %v2286 = vpop.f32.mrb[0].mxu0
      %2287 = vmatprep.mubr.f32.mxu0 0.0
      %2288 = vmatmul.mubr.f32.gmra.mrb[0].mxu0 %v2126
      %v2289 = vpop.f32.mrb[0].mxu0
      %v2290 = vadd.f32 0.0, %v2289
      %v2291 = vpop.f32.mrb[0].mxu0
      %2292 = vmatprep.mubr.f32.mxu0 0.0
      %2293 = vmatmul.mubr.f32.gmra.mrb[0].mxu0 %v2129
      %v2294 = vpop.f32.mrb[0].mxu0
      %v2295 = vadd.f32 0.0, %v2294
      %v2296 = vpop.f32.mrb[0].mxu0
      %2297 = vmatprep.mubr.f32.mxu0 0.0
      %2298 = vmatmul.mubr.f32.gmra.mrb[0].mxu0 %v2132
      %v2299 = vpop.f32.mrb[0].mxu0
      %v2300 = vadd.f32 0.0, %v2299
      %v2301 = vpop.f32.mrb[0].mxu0
      %2302 = vmatprep.mubr.f32.mxu0 0.0
      %2303 = vmatmul.mubr.f32.gmra.mrb[0].mxu0 %v2135
      %v2304 = vpop.f32.mrb[0].mxu0
      %v2305 = vadd.f32 0.0, %v2304
      %v2306 = vpop.f32.mrb[0].mxu0
      %2307 = vmatprep.mubr.f32.mxu0 0.0
      %2308 = vmatmul.mubr.f32.gmra.mrb[0].mxu0 %v2138
      %v2309 = vpop.f32.mrb[0].mxu0
      %v2310 = vadd.f32 0.0, %v2309
      %v2311 = vpop.f32.mrb[0].mxu0
      %2312 = vmatprep.mubr.f32.mxu0 0.0
      %2313 = vmatmul.mubr.f32.gmra.mrb[0].mxu0 %v2141
      %v2314 = vpop.f32.mrb[0].mxu0
      %v2315 = vadd.f32 0.0, %v2314
      %v2316 = vpop.f32.mrb[0].mxu0
      %2317 = vmatprep.mubr.f32.mxu0 0.0
      %2318 = vmatmul.mubr.f32.gmra.mrb[0].mxu0 %v2144
      %v2319 = vpop.f32.mrb[0].mxu0
      %v2320 = vadd.f32 0.0, %v2319
      %v2321 = vpop.f32.mrb[0].mxu0
      %2322 = vmatprep.mubr.f32.mxu0 0.0
      %2323 = vmatmul.mubr.f32.gmra.mrb[0].mxu0 %v2147
      %v2324 = vpop.f32.mrb[0].mxu0
      %v2325 = vadd.f32 0.0, %v2324
      %v2326 = vpop.f32.mrb[0].mxu0
      %2327 = vmatprep.mubr.f32.mxu0 0.0
      %2328 = vmatmul.mubr.f32.gmra.mrb[0].mxu0 %v2150
      %v2329 = vpop.f32.mrb[0].mxu0
      %v2330 = vadd.f32 0.0, %v2329
      %v2331 = vpop.f32.mrb[0].mxu0
      %2332 = vmatprep.mubr.f32.mxu0 0.0
      %2333 = vmatmul.mubr.f32.gmra.mrb[0].mxu0 %v2153
      %v2334 = vpop.f32.mrb[0].mxu0
      %v2335 = vadd.f32 0.0, %v2334
      %v2336 = vpop.f32.mrb[0].mxu0
      %2337 = vmatprep.mubr.f32.mxu0 0.0
      %2338 = vmatmul.mubr.f32.gmra.mrb[0].mxu0 %v2156
      %v2339 = vpop.f32.mrb[0].mxu0
      %v2340 = vadd.f32 0.0, %v2339
      %v2341 = vpop.f32.mrb[0].mxu0
      %2342 = vmatprep.mubr.f32.mxu0 0.0
      %2343 = vmatmul.mubr.f32.gmra.mrb[0].mxu0 %v2159
      %v2344 = vpop.f32.mrb[0].mxu0
      %v2345 = vadd.f32 0.0, %v2344
      %v2346 = vpop.f32.mrb[0].mxu0
      %2347 = vmatprep.mubr.f32.mxu0 0.0
      %2348 = vmatmul.mubr.f32.gmra.mrb[0].mxu0 %v2162
      %v2349 = vpop.f32.mrb[0].mxu0
      %v2350 = vadd.f32 0.0, %v2349
      %v2351 = vpop.f32.mrb[0].mxu0
      %2352 = vmatprep.mubr.f32.mxu0 0.0
      %2353 = vmatmul.mubr.f32.gmra.mrb[0].mxu0 %v2165
      %v2354 = vpop.f32.mrb[0].mxu0
      %v2355 = vadd.f32 0.0, %v2354
      %v2356 = vpop.f32.mrb[0].mxu0
      %2357 = vmatprep.mubr.f32.mxu0 0.0
      %2358 = vmatmul.mubr.f32.gmra.mrb[0].mxu0 %v2168
      %v2359 = vpop.f32.mrb[0].mxu0
      %v2360 = vadd.f32 0.0, %v2359
      %v2361 = vpop.f32.mrb[0].mxu0
      %2362 = vmatprep.mubr.f32.mxu0 0.0
      %2363 = vmatmul.mubr.f32.gmra.mrb[0].mxu0 %v2171
      %v2364 = vpop.f32.mrb[0].mxu0
      %v2365 = vadd.f32 0.0, %v2364
      %v2366 = vpop.f32.mrb[0].mxu0
      %2367 = vmatprep.mubr.f32.mxu0 0.0
      %2368 = vmatmul.mubr.f32.gmra.mrb[0].mxu0 %v2174
      %v2369 = vpop.f32.mrb[0].mxu0
      %v2370 = vadd.f32 0.0, %v2369
      %v2371 = vpop.f32.mrb[0].mxu0
      %2372 = vmatprep.mubr.f32.mxu0 0.0
      %2373 = vmatmul.mubr.f32.gmra.mrb[0].mxu0 %v2177
      %v2374 = vpop.f32.mrb[0].mxu0
      %v2375 = vadd.f32 0.0, %v2374
      %v2376 = vpop.f32.mrb[0].mxu0
      %2377 = vmatprep.mubr.f32.mxu0 0.0
      %2378 = vmatmul.mubr.f32.gmra.mrb[0].mxu0 %v2180
      %v2379 = vpop.f32.mrb[0].mxu0
      %v2380 = vadd.f32 0.0, %v2379
      %v2381 = vpop.f32.mrb[0].mxu0
      %2382 = vmatprep.mubr.f32.mxu0 0.0
      %2383 = vmatmul.mubr.f32.gmra.mrb[0].mxu0 %v2183
      %v2384 = vpop.f32.mrb[0].mxu0
      %v2385 = vadd.f32 0.0, %v2384
      %v2386 = vpop.f32.mrb[0].mxu0
      %2387 = vmatprep.mubr.f32.mxu0 0.0
      %2388 = vmatmul.mubr.f32.gmra.mrb[0].mxu0 %v2186
      %v2389 = vpop.f32.mrb[0].mxu0
      %v2390 = vadd.f32 0.0, %v2389
      %v2391 = vpop.f32.mrb[0].mxu0
      %2392 = vmatprep.mubr.f32.mxu0 0.0
      %2393 = vmatmul.mubr.f32.gmra.mrb[0].mxu0 %v2189
      %v2394 = vpop.f32.mrb[0].mxu0
      %v2395 = vadd.f32 0.0, %v2394
      %v2396 = vpop.f32.mrb[0].mxu0
      %2397 = vmatprep.mubr.f32.mxu0 0.0
      %2398 = vmatmul.mubr.f32.gmra.mrb[0].mxu0 %v2192
      %v2399 = vpop.f32.mrb[0].mxu0
      %v2400 = vadd.f32 0.0, %v2399
      %v2401 = vpop.f32.mrb[0].mxu0
      %2402 = vmatprep.mubr.f32.mxu0 0.0
      %2403 = vmatmul.mubr.f32.gmra.mrb[0].mxu0 %v2195
      %v2404 = vpop.f32.mrb[0].mxu0
      %v2405 = vadd.f32 0.0, %v2404
      %v2406 = vpop.f32.mrb[0].mxu0
      %2407 = vmatprep.mubr.f32.mxu0 0.0
      %2408 = vmatmul.mubr.f32.gmra.mrb[0].mxu0 %v2198
      %v2409 = vpop.f32.mrb[0].mxu0
      %v2410 = vadd.f32 0.0, %v2409
      %v2411 = vpop.f32.mrb[0].mxu0
      %2412 = vmatprep.mubr.f32.mxu0 0.0
      %2413 = vmatmul.mubr.f32.gmra.mrb[0].mxu0 %v2201
      %v2414 = vpop.f32.mrb[0].mxu0
      %v2415 = vadd.f32 0.0, %v2414
      %v2416 = vpop.f32.mrb[0].mxu0
      %2417 = vmatprep.mubr.f32.mxu0 0.0
      %2418 = vmatmul.mubr.f32.gmra.mrb[0].mxu0 %v2204
      %v2419 = vpop.f32.mrb[0].mxu0
      %v2420 = vadd.f32 0.0, %v2419
      %v2421 = vpop.f32.mrb[0].mxu0
      %2422 = vmatprep.mubr.f32.mxu0 0.0
      %2423 = vmatmul.mubr.f32.gmra.mrb[0].mxu0 %v2207
      %v2424 = vpop.f32.mrb[0].mxu0
      %v2425 = vadd.f32 0.0, %v2424
      %v2426 = vpop.f32.mrb[0].mxu0
      %2427 = vmatprep.mubr.f32.mxu0 0.0
      %2428 = vmatmul.mubr.f32.gmra.mrb[0].mxu0 %v2210
      %v2429 = vpop.f32.mrb[0].mxu0
      %v2430 = vadd.f32 0.0, %v2429
      %v2431 = vpop.f32.mrb[0].mxu0
      %2432 = vmatprep.mubr.f32.mxu0 0.0
      %2433 = vmatmul.mubr.f32.gmra.mrb[0].mxu0 %v2213
      %v2434 = vpop.f32.mrb[0].mxu0
      %v2435 = vadd.f32 0.0, %v2434
      %v2436 = vpop.f32.mrb[0].mxu0
      %2437 = vmatprep.mubr.f32.mxu0 0.0
      %2438 = vmatmul.mubr.f32.gmra.mrb[0].mxu0 %v2216
      %v2439 = vpop.f32.mrb[0].mxu0
      %v2440 = vadd.f32 0.0, %v2439
      %v2441 = vpop.f32.mrb[0].mxu0
      %2442 = vdwg.mxu0
      %v2443 = vadd.f32 %v2053, %v2285
      %v2444 = vadd.f32 %v2054, %v2290
      %v2445 = vadd.f32 %v2055, %v2295
      %v2446 = vadd.f32 %v2056, %v2300
      %v2447 = vadd.f32 %v2057, %v2305
      %v2448 = vadd.f32 %v2058, %v2310
      %v2449 = vadd.f32 %v2059, %v2315
      %v2450 = vadd.f32 %v2060, %v2320
      %v2451 = vadd.f32 %v2061, %v2325
      %v2452 = vadd.f32 %v2062, %v2330
      %v2453 = vadd.f32 %v2063, %v2335
      %v2454 = vadd.f32 %v2064, %v2340
      %v2455 = vadd.f32 %v2065, %v2345
      %v2456 = vadd.f32 %v2066, %v2350
      %v2457 = vadd.f32 %v2067, %v2355
      %v2458 = vadd.f32 %v2068, %v2360
      %v2459 = vadd.f32 %v2069, %v2365
      %v2460 = vadd.f32 %v2070, %v2370
      %v2461 = vadd.f32 %v2071, %v2375
      %v2462 = vadd.f32 %v2072, %v2380
      %v2463 = vadd.f32 %v2073, %v2385
      %v2464 = vadd.f32 %v2074, %v2390
      %v2465 = vadd.f32 %v2075, %v2395
      %v2466 = vadd.f32 %v2076, %v2400
      %v2467 = vadd.f32 %v2077, %v2405
      %v2468 = vadd.f32 %v2078, %v2410
      %v2469 = vadd.f32 %v2079, %v2415
      %v2470 = vadd.f32 %v2080, %v2420
      %v2471 = vadd.f32 %v2081, %v2425
      %v2472 = vadd.f32 %v2082, %v2430
      %v2473 = vadd.f32 %v2083, %v2435
      %v2474 = vadd.f32 %v2084, %v2440
      %s2475 = scalar_lea.vmem %s192, 32
      %v2476 = vld [vmem:[%s2475] sm:$0xff]
      %v2477 = vld [vmem:[%s2475 + $0x10] sm:$0xff]
      %v2478 = vld [vmem:[%s2475 + $0x20] sm:$0xff]
      %v2479 = vld [vmem:[%s2475 + $0x30] sm:$0xff]
      %v2480 = vld [vmem:[%s2475 + $0x40] sm:$0xff]
      %v2481 = vld [vmem:[%s2475 + $0x50] sm:$0xff]
      %v2482 = vld [vmem:[%s2475 + $0x60] sm:$0xff]
      %v2483 = vld [vmem:[%s2475 + $0x70] sm:$0xff]
      %v2484 = vld [vmem:[%s2475 + $0xa0] sm:$0xff]
      %v2485 = vld [vmem:[%s2475 + $0xb0] sm:$0xff]
      %v2486 = vld [vmem:[%s2475 + $0xc0] sm:$0xff]
      %v2487 = vld [vmem:[%s2475 + $0xd0] sm:$0xff]
      %v2488 = vld [vmem:[%s2475 + $0xe0] sm:$0xff]
      %v2489 = vld [vmem:[%s2475 + $0xf0] sm:$0xff]
      %v2490 = vld [vmem:[%s2475 + $0x100] sm:$0xff]
      %v2491 = vld [vmem:[%s2475 + $0x110] sm:$0xff]
      %v2492 = vld [vmem:[%s2475 + $0x140] sm:$0xff]
      %v2493 = vld [vmem:[%s2475 + $0x150] sm:$0xff]
      %v2494 = vld [vmem:[%s2475 + $0x160] sm:$0xff]
      %v2495 = vld [vmem:[%s2475 + $0x170] sm:$0xff]
      %v2496 = vld [vmem:[%s2475 + $0x180] sm:$0xff]
      %v2497 = vld [vmem:[%s2475 + $0x190] sm:$0xff]
      %v2498 = vld [vmem:[%s2475 + $0x1a0] sm:$0xff]
      %v2499 = vld [vmem:[%s2475 + $0x1b0] sm:$0xff]
      %v2500 = vld [vmem:[%s2475 + $0x1e0] sm:$0xff]
      %v2501 = vld [vmem:[%s2475 + $0x1f0] sm:$0xff]
      %v2502 = vld [vmem:[%s2475 + $0x200] sm:$0xff]
      %v2503 = vld [vmem:[%s2475 + $0x210] sm:$0xff]
      %v2504 = vld [vmem:[%s2475 + $0x220] sm:$0xff]
      %v2505 = vld [vmem:[%s2475 + $0x230] sm:$0xff]
      %v2506 = vld [vmem:[%s2475 + $0x240] sm:$0xff]
      %v2507 = vld [vmem:[%s2475 + $0x250] sm:$0xff]
      %s2508 = scalar_lea.vmem %s1, 192
      %v2509 = vld [vmem:[%s2508] sm:$0xff]
      %v2510 = vld [vmem:[%s2508 + $0x8] sm:$0xff]
      %v2511 = vld [vmem:[%s2508 + $0x10] sm:$0xff]
      %v2512 = vld [vmem:[%s2508 + $0x18] sm:$0xff]
      %v2514 = vsel %vm271, %v2476, 0
      %v2517 = vsel %vm271, %v2477, 0
      %v2520 = vsel %vm271, %v2478, 0
      %v2523 = vsel %vm271, %v2479, 0
      %v2526 = vsel %vm271, %v2480, 0
      %v2529 = vsel %vm271, %v2481, 0
      %v2532 = vsel %vm271, %v2482, 0
      %v2535 = vsel %vm271, %v2483, 0
      %v2538 = vsel %vm271, %v2484, 0
      %v2541 = vsel %vm271, %v2485, 0
      %v2544 = vsel %vm271, %v2486, 0
      %v2547 = vsel %vm271, %v2487, 0
      %v2550 = vsel %vm271, %v2488, 0
      %v2553 = vsel %vm271, %v2489, 0
      %v2556 = vsel %vm271, %v2490, 0
      %v2559 = vsel %vm271, %v2491, 0
      %v2562 = vsel %vm271, %v2492, 0
      %v2565 = vsel %vm271, %v2493, 0
      %v2568 = vsel %vm271, %v2494, 0
      %v2571 = vsel %vm271, %v2495, 0
      %v2574 = vsel %vm271, %v2496, 0
      %v2577 = vsel %vm271, %v2497, 0
      %v2580 = vsel %vm271, %v2498, 0
      %v2583 = vsel %vm271, %v2499, 0
      %v2586 = vsel %vm271, %v2500, 0
      %v2589 = vsel %vm271, %v2501, 0
      %v2592 = vsel %vm271, %v2502, 0
      %v2595 = vsel %vm271, %v2503, 0
      %v2598 = vsel %vm271, %v2504, 0
      %v2601 = vsel %vm271, %v2505, 0
      %v2604 = vsel %vm271, %v2506, 0
      %v2607 = vsel %vm271, %v2507, 0
      %2609 = vmatprep.subr.mxu0 0.0
      %2610 = vmatpush1.msra.mxu0 %v2509
      %2611 = vmatprep.subr.mxu0 0.0
      %2612 = vmatpush1.msra.mxu0 %v2510
      %2613 = vmatprep.subr.mxu0 0.0
      %2614 = vmatpush1.msra.mxu0 %v2511
      %2615 = vmatprep.subr.mxu0 0.0
      %2616 = vmatpush1.msra.mxu0 %v2512
      %2617 = vmatprep.subr.mxu0 0.0
      %2618 = vmatpush1.msra.mxu0 0.0
      %2619 = vmatprep.subr.mxu0 0.0
      %2620 = vmatpush1.msra.mxu0 0.0
      %2621 = vmatprep.subr.mxu0 0.0
      %2622 = vmatpush1.msra.mxu0 0.0
      %2623 = vmatprep.subr.mxu0 0.0
      %2624 = vmatpush1.msra.mxu0 0.0
      %2625 = vmatprep.subr.mxu0 0.0
      %2626 = vmatpush1.msra.mxu0 0.0
      %2627 = vmatprep.subr.mxu0 0.0
      %2628 = vmatpush1.msra.mxu0 0.0
      %2629 = vmatprep.subr.mxu0 0.0
      %2630 = vmatpush1.msra.mxu0 0.0
      %2631 = vmatprep.subr.mxu0 0.0
      %2632 = vmatpush1.msra.mxu0 0.0
      %2633 = vmatprep.subr.mxu0 0.0
      %2634 = vmatpush1.msra.mxu0 0.0
      %2635 = vmatprep.subr.mxu0 0.0
      %2636 = vmatpush1.msra.mxu0 0.0
      %2637 = vmatprep.subr.mxu0 0.0
      %2638 = vmatpush1.msra.mxu0 0.0
      %2639 = vmatprep.subr.mxu0 0.0
      %2640 = vmatpush1.msra.mxu0 0.0
      %2641 = vmatprep.subr.mxu0 0.0
      %2642 = vmatpush1.msra.mxu0 0.0
      %2643 = vmatprep.subr.mxu0 0.0
      %2644 = vmatpush1.msra.mxu0 0.0
      %2645 = vmatprep.subr.mxu0 0.0
      %2646 = vmatpush1.msra.mxu0 0.0
      %2647 = vmatprep.subr.mxu0 0.0
      %2648 = vmatpush1.msra.mxu0 0.0
      %2649 = vmatprep.subr.mxu0 0.0
      %2650 = vmatpush1.msra.mxu0 0.0
      %2651 = vmatprep.subr.mxu0 0.0
      %2652 = vmatpush1.msra.mxu0 0.0
      %2653 = vmatprep.subr.mxu0 0.0
      %2654 = vmatpush1.msra.mxu0 0.0
      %2655 = vmatprep.subr.mxu0 0.0
      %2656 = vmatpush1.msra.mxu0 0.0
      %2657 = vmatprep.subr.mxu0 0.0
      %2658 = vmatpush1.msra.mxu0 0.0
      %2659 = vmatprep.subr.mxu0 0.0
      %2660 = vmatpush1.msra.mxu0 0.0
      %2661 = vmatprep.subr.mxu0 0.0
      %2662 = vmatpush1.msra.mxu0 0.0
      %2663 = vmatprep.subr.mxu0 0.0
      %2664 = vmatpush1.msra.mxu0 0.0
      %2665 = vmatprep.subr.mxu0 0.0
      %2666 = vmatpush1.msra.mxu0 0.0
      %2667 = vmatprep.subr.mxu0 0.0
      %2668 = vmatpush1.msra.mxu0 0.0
      %2669 = vmatprep.subr.mxu0 0.0
      %2670 = vmatpush1.msra.mxu0 0.0
      %2671 = vmatprep.subr.mxu0 0.0
      %2672 = vmatpush1.msra.mxu0 0.0
      %2673 = vmatprep.mubr.f32.mxu0 0.0
      %2674 = vmatmul.mubr.f32.gmra.mrb[0].mxu0 %v2514
      %v2675 = vpop.f32.mrb[0].mxu0
      %v2676 = vadd.f32 0.0, %v2675
      %v2677 = vpop.f32.mrb[0].mxu0
      %2678 = vmatprep.mubr.f32.mxu0 0.0
      %2679 = vmatmul.mubr.f32.gmra.mrb[0].mxu0 %v2517
      %v2680 = vpop.f32.mrb[0].mxu0
      %v2681 = vadd.f32 0.0, %v2680
      %v2682 = vpop.f32.mrb[0].mxu0
      %2683 = vmatprep.mubr.f32.mxu0 0.0
      %2684 = vmatmul.mubr.f32.gmra.mrb[0].mxu0 %v2520
      %v2685 = vpop.f32.mrb[0].mxu0
      %v2686 = vadd.f32 0.0, %v2685
      %v2687 = vpop.f32.mrb[0].mxu0
      %2688 = vmatprep.mubr.f32.mxu0 0.0
      %2689 = vmatmul.mubr.f32.gmra.mrb[0].mxu0 %v2523
      %v2690 = vpop.f32.mrb[0].mxu0
      %v2691 = vadd.f32 0.0, %v2690
      %v2692 = vpop.f32.mrb[0].mxu0
      %2693 = vmatprep.mubr.f32.mxu0 0.0
      %2694 = vmatmul.mubr.f32.gmra.mrb[0].mxu0 %v2526
      %v2695 = vpop.f32.mrb[0].mxu0
      %v2696 = vadd.f32 0.0, %v2695
      %v2697 = vpop.f32.mrb[0].mxu0
      %2698 = vmatprep.mubr.f32.mxu0 0.0
      %2699 = vmatmul.mubr.f32.gmra.mrb[0].mxu0 %v2529
      %v2700 = vpop.f32.mrb[0].mxu0
      %v2701 = vadd.f32 0.0, %v2700
      %v2702 = vpop.f32.mrb[0].mxu0
      %2703 = vmatprep.mubr.f32.mxu0 0.0
      %2704 = vmatmul.mubr.f32.gmra.mrb[0].mxu0 %v2532
      %v2705 = vpop.f32.mrb[0].mxu0
      %v2706 = vadd.f32 0.0, %v2705
      %v2707 = vpop.f32.mrb[0].mxu0
      %2708 = vmatprep.mubr.f32.mxu0 0.0
      %2709 = vmatmul.mubr.f32.gmra.mrb[0].mxu0 %v2535
      %v2710 = vpop.f32.mrb[0].mxu0
      %v2711 = vadd.f32 0.0, %v2710
      %v2712 = vpop.f32.mrb[0].mxu0
      %2713 = vmatprep.mubr.f32.mxu0 0.0
      %2714 = vmatmul.mubr.f32.gmra.mrb[0].mxu0 %v2538
      %v2715 = vpop.f32.mrb[0].mxu0
      %v2716 = vadd.f32 0.0, %v2715
      %v2717 = vpop.f32.mrb[0].mxu0
      %2718 = vmatprep.mubr.f32.mxu0 0.0
      %2719 = vmatmul.mubr.f32.gmra.mrb[0].mxu0 %v2541
      %v2720 = vpop.f32.mrb[0].mxu0
      %v2721 = vadd.f32 0.0, %v2720
      %v2722 = vpop.f32.mrb[0].mxu0
      %2723 = vmatprep.mubr.f32.mxu0 0.0
      %2724 = vmatmul.mubr.f32.gmra.mrb[0].mxu0 %v2544
      %v2725 = vpop.f32.mrb[0].mxu0
      %v2726 = vadd.f32 0.0, %v2725
      %v2727 = vpop.f32.mrb[0].mxu0
      %2728 = vmatprep.mubr.f32.mxu0 0.0
      %2729 = vmatmul.mubr.f32.gmra.mrb[0].mxu0 %v2547
      %v2730 = vpop.f32.mrb[0].mxu0
      %v2731 = vadd.f32 0.0, %v2730
      %v2732 = vpop.f32.mrb[0].mxu0
      %2733 = vmatprep.mubr.f32.mxu0 0.0
      %2734 = vmatmul.mubr.f32.gmra.mrb[0].mxu0 %v2550
      %v2735 = vpop.f32.mrb[0].mxu0
      %v2736 = vadd.f32 0.0, %v2735
      %v2737 = vpop.f32.mrb[0].mxu0
      %2738 = vmatprep.mubr.f32.mxu0 0.0
      %2739 = vmatmul.mubr.f32.gmra.mrb[0].mxu0 %v2553
      %v2740 = vpop.f32.mrb[0].mxu0
      %v2741 = vadd.f32 0.0, %v2740
      %v2742 = vpop.f32.mrb[0].mxu0
      %2743 = vmatprep.mubr.f32.mxu0 0.0
      %2744 = vmatmul.mubr.f32.gmra.mrb[0].mxu0 %v2556
      %v2745 = vpop.f32.mrb[0].mxu0
      %v2746 = vadd.f32 0.0, %v2745
      %v2747 = vpop.f32.mrb[0].mxu0
      %2748 = vmatprep.mubr.f32.mxu0 0.0
      %2749 = vmatmul.mubr.f32.gmra.mrb[0].mxu0 %v2559
      %v2750 = vpop.f32.mrb[0].mxu0
      %v2751 = vadd.f32 0.0, %v2750
      %v2752 = vpop.f32.mrb[0].mxu0
      %2753 = vmatprep.mubr.f32.mxu0 0.0
      %2754 = vmatmul.mubr.f32.gmra.mrb[0].mxu0 %v2562
      %v2755 = vpop.f32.mrb[0].mxu0
      %v2756 = vadd.f32 0.0, %v2755
      %v2757 = vpop.f32.mrb[0].mxu0
      %2758 = vmatprep.mubr.f32.mxu0 0.0
      %2759 = vmatmul.mubr.f32.gmra.mrb[0].mxu0 %v2565
      %v2760 = vpop.f32.mrb[0].mxu0
      %v2761 = vadd.f32 0.0, %v2760
      %v2762 = vpop.f32.mrb[0].mxu0
      %2763 = vmatprep.mubr.f32.mxu0 0.0
      %2764 = vmatmul.mubr.f32.gmra.mrb[0].mxu0 %v2568
      %v2765 = vpop.f32.mrb[0].mxu0
      %v2766 = vadd.f32 0.0, %v2765
      %v2767 = vpop.f32.mrb[0].mxu0
      %2768 = vmatprep.mubr.f32.mxu0 0.0
      %2769 = vmatmul.mubr.f32.gmra.mrb[0].mxu0 %v2571
      %v2770 = vpop.f32.mrb[0].mxu0
      %v2771 = vadd.f32 0.0, %v2770
      %v2772 = vpop.f32.mrb[0].mxu0
      %2773 = vmatprep.mubr.f32.mxu0 0.0
      %2774 = vmatmul.mubr.f32.gmra.mrb[0].mxu0 %v2574
      %v2775 = vpop.f32.mrb[0].mxu0
      %v2776 = vadd.f32 0.0, %v2775
      %v2777 = vpop.f32.mrb[0].mxu0
      %2778 = vmatprep.mubr.f32.mxu0 0.0
      %2779 = vmatmul.mubr.f32.gmra.mrb[0].mxu0 %v2577
      %v2780 = vpop.f32.mrb[0].mxu0
      %v2781 = vadd.f32 0.0, %v2780
      %v2782 = vpop.f32.mrb[0].mxu0
      %2783 = vmatprep.mubr.f32.mxu0 0.0
      %2784 = vmatmul.mubr.f32.gmra.mrb[0].mxu0 %v2580
      %v2785 = vpop.f32.mrb[0].mxu0
      %v2786 = vadd.f32 0.0, %v2785
      %v2787 = vpop.f32.mrb[0].mxu0
      %2788 = vmatprep.mubr.f32.mxu0 0.0
      %2789 = vmatmul.mubr.f32.gmra.mrb[0].mxu0 %v2583
      %v2790 = vpop.f32.mrb[0].mxu0
      %v2791 = vadd.f32 0.0, %v2790
      %v2792 = vpop.f32.mrb[0].mxu0
      %2793 = vmatprep.mubr.f32.mxu0 0.0
      %2794 = vmatmul.mubr.f32.gmra.mrb[0].mxu0 %v2586
      %v2795 = vpop.f32.mrb[0].mxu0
      %v2796 = vadd.f32 0.0, %v2795
      %v2797 = vpop.f32.mrb[0].mxu0
      %2798 = vmatprep.mubr.f32.mxu0 0.0
      %2799 = vmatmul.mubr.f32.gmra.mrb[0].mxu0 %v2589
      %v2800 = vpop.f32.mrb[0].mxu0
      %v2801 = vadd.f32 0.0, %v2800
      %v2802 = vpop.f32.mrb[0].mxu0
      %2803 = vmatprep.mubr.f32.mxu0 0.0
      %2804 = vmatmul.mubr.f32.gmra.mrb[0].mxu0 %v2592
      %v2805 = vpop.f32.mrb[0].mxu0
      %v2806 = vadd.f32 0.0, %v2805
      %v2807 = vpop.f32.mrb[0].mxu0
      %2808 = vmatprep.mubr.f32.mxu0 0.0
      %2809 = vmatmul.mubr.f32.gmra.mrb[0].mxu0 %v2595
      %v2810 = vpop.f32.mrb[0].mxu0
      %v2811 = vadd.f32 0.0, %v2810
      %v2812 = vpop.f32.mrb[0].mxu0
      %2813 = vmatprep.mubr.f32.mxu0 0.0
      %2814 = vmatmul.mubr.f32.gmra.mrb[0].mxu0 %v2598
      %v2815 = vpop.f32.mrb[0].mxu0
      %v2816 = vadd.f32 0.0, %v2815
      %v2817 = vpop.f32.mrb[0].mxu0
      %2818 = vmatprep.mubr.f32.mxu0 0.0
      %2819 = vmatmul.mubr.f32.gmra.mrb[0].mxu0 %v2601
      %v2820 = vpop.f32.mrb[0].mxu0
      %v2821 = vadd.f32 0.0, %v2820
      %v2822 = vpop.f32.mrb[0].mxu0
      %2823 = vmatprep.mubr.f32.mxu0 0.0
      %2824 = vmatmul.mubr.f32.gmra.mrb[0].mxu0 %v2604
      %v2825 = vpop.f32.mrb[0].mxu0
      %v2826 = vadd.f32 0.0, %v2825
      %v2827 = vpop.f32.mrb[0].mxu0
      %2828 = vmatprep.mubr.f32.mxu0 0.0
      %2829 = vmatmul.mubr.f32.gmra.mrb[0].mxu0 %v2607
      %v2830 = vpop.f32.mrb[0].mxu0
      %v2831 = vadd.f32 0.0, %v2830
      %v2832 = vpop.f32.mrb[0].mxu0
      %2833 = vdwg.mxu0
      %v2834 = vadd.f32 %v2443, %v2676
      %v2835 = vadd.f32 %v2444, %v2681
      %v2836 = vadd.f32 %v2445, %v2686
      %v2837 = vadd.f32 %v2446, %v2691
      %v2838 = vadd.f32 %v2447, %v2696
      %v2839 = vadd.f32 %v2448, %v2701
      %v2840 = vadd.f32 %v2449, %v2706
      %v2841 = vadd.f32 %v2450, %v2711
      %v2842 = vadd.f32 %v2451, %v2716
      %v2843 = vadd.f32 %v2452, %v2721
      %v2844 = vadd.f32 %v2453, %v2726
      %v2845 = vadd.f32 %v2454, %v2731
      %v2846 = vadd.f32 %v2455, %v2736
      %v2847 = vadd.f32 %v2456, %v2741
      %v2848 = vadd.f32 %v2457, %v2746
      %v2849 = vadd.f32 %v2458, %v2751
      %v2850 = vadd.f32 %v2459, %v2756
      %v2851 = vadd.f32 %v2460, %v2761
      %v2852 = vadd.f32 %v2461, %v2766
      %v2853 = vadd.f32 %v2462, %v2771
      %v2854 = vadd.f32 %v2463, %v2776
      %v2855 = vadd.f32 %v2464, %v2781
      %v2856 = vadd.f32 %v2465, %v2786
      %v2857 = vadd.f32 %v2466, %v2791
      %v2858 = vadd.f32 %v2467, %v2796
      %v2859 = vadd.f32 %v2468, %v2801
      %v2860 = vadd.f32 %v2469, %v2806
      %v2861 = vadd.f32 %v2470, %v2811
      %v2862 = vadd.f32 %v2471, %v2816
      %v2863 = vadd.f32 %v2472, %v2821
      %v2864 = vadd.f32 %v2473, %v2826
      %v2865 = vadd.f32 %v2474, %v2831
      %v2866 = vld [vmem:[%s2475 + $0x1] sm:$0xff]
      %v2867 = vld [vmem:[%s2475 + $0x11] sm:$0xff]
      %v2868 = vld [vmem:[%s2475 + $0x21] sm:$0xff]
      %v2869 = vld [vmem:[%s2475 + $0x31] sm:$0xff]
      %v2870 = vld [vmem:[%s2475 + $0x41] sm:$0xff]
      %v2871 = vld [vmem:[%s2475 + $0x51] sm:$0xff]
      %v2872 = vld [vmem:[%s2475 + $0x61] sm:$0xff]
      %v2873 = vld [vmem:[%s2475 + $0x71] sm:$0xff]
      %v2874 = vld [vmem:[%s2475 + $0xa1] sm:$0xff]
      %v2875 = vld [vmem:[%s2475 + $0xb1] sm:$0xff]
      %v2876 = vld [vmem:[%s2475 + $0xc1] sm:$0xff]
      %v2877 = vld [vmem:[%s2475 + $0xd1] sm:$0xff]
      %v2878 = vld [vmem:[%s2475 + $0xe1] sm:$0xff]
      %v2879 = vld [vmem:[%s2475 + $0xf1] sm:$0xff]
      %v2880 = vld [vmem:[%s2475 + $0x101] sm:$0xff]
      %v2881 = vld [vmem:[%s2475 + $0x111] sm:$0xff]
      %v2882 = vld [vmem:[%s2475 + $0x141] sm:$0xff]
      %v2883 = vld [vmem:[%s2475 + $0x151] sm:$0xff]
      %v2884 = vld [vmem:[%s2475 + $0x161] sm:$0xff]
      %v2885 = vld [vmem:[%s2475 + $0x171] sm:$0xff]
      %v2886 = vld [vmem:[%s2475 + $0x181] sm:$0xff]
      %v2887 = vld [vmem:[%s2475 + $0x191] sm:$0xff]
      %v2888 = vld [vmem:[%s2475 + $0x1a1] sm:$0xff]
      %v2889 = vld [vmem:[%s2475 + $0x1b1] sm:$0xff]
      %v2890 = vld [vmem:[%s2475 + $0x1e1] sm:$0xff]
      %v2891 = vld [vmem:[%s2475 + $0x1f1] sm:$0xff]
      %v2892 = vld [vmem:[%s2475 + $0x201] sm:$0xff]
      %v2893 = vld [vmem:[%s2475 + $0x211] sm:$0xff]
      %v2894 = vld [vmem:[%s2475 + $0x221] sm:$0xff]
      %v2895 = vld [vmem:[%s2475 + $0x231] sm:$0xff]
      %v2896 = vld [vmem:[%s2475 + $0x241] sm:$0xff]
      %v2897 = vld [vmem:[%s2475 + $0x251] sm:$0xff]
      %s2898 = scalar_lea.vmem %s1, 224
      %v2899 = vld [vmem:[%s2898] sm:$0xff]
      %v2900 = vld [vmem:[%s2898 + $0x8] sm:$0xff]
      %v2901 = vld [vmem:[%s2898 + $0x10] sm:$0xff]
      %v2902 = vld [vmem:[%s2898 + $0x18] sm:$0xff]
      %v2904 = vsel %vm271, %v2866, 0
      %v2907 = vsel %vm271, %v2867, 0
      %v2910 = vsel %vm271, %v2868, 0
      %v2913 = vsel %vm271, %v2869, 0
      %v2916 = vsel %vm271, %v2870, 0
      %v2919 = vsel %vm271, %v2871, 0
      %v2922 = vsel %vm271, %v2872, 0
      %v2925 = vsel %vm271, %v2873, 0
      %v2928 = vsel %vm271, %v2874, 0
      %v2931 = vsel %vm271, %v2875, 0
      %v2934 = vsel %vm271, %v2876, 0
      %v2937 = vsel %vm271, %v2877, 0
      %v2940 = vsel %vm271, %v2878, 0
      %v2943 = vsel %vm271, %v2879, 0
      %v2946 = vsel %vm271, %v2880, 0
      %v2949 = vsel %vm271, %v2881, 0
      %v2952 = vsel %vm271, %v2882, 0
      %v2955 = vsel %vm271, %v2883, 0
      %v2958 = vsel %vm271, %v2884, 0
      %v2961 = vsel %vm271, %v2885, 0
      %v2964 = vsel %vm271, %v2886, 0
      %v2967 = vsel %vm271, %v2887, 0
      %v2970 = vsel %vm271, %v2888, 0
      %v2973 = vsel %vm271, %v2889, 0
      %v2976 = vsel %vm271, %v2890, 0
      %v2979 = vsel %vm271, %v2891, 0
      %v2982 = vsel %vm271, %v2892, 0
      %v2985 = vsel %vm271, %v2893, 0
      %v2988 = vsel %vm271, %v2894, 0
      %v2991 = vsel %vm271, %v2895, 0
      %v2994 = vsel %vm271, %v2896, 0
      %v2997 = vsel %vm271, %v2897, 0
      %2999 = vmatprep.subr.mxu0 0.0
      %3000 = vmatpush1.msra.mxu0 %v2899
      %3001 = vmatprep.subr.mxu0 0.0
      %3002 = vmatpush1.msra.mxu0 %v2900
      %3003 = vmatprep.subr.mxu0 0.0
      %3004 = vmatpush1.msra.mxu0 %v2901
      %3005 = vmatprep.subr.mxu0 0.0
      %3006 = vmatpush1.msra.mxu0 %v2902
      %3007 = vmatprep.subr.mxu0 0.0
      %3008 = vmatpush1.msra.mxu0 0.0
      %3009 = vmatprep.subr.mxu0 0.0
      %3010 = vmatpush1.msra.mxu0 0.0
      %3011 = vmatprep.subr.mxu0 0.0
      %3012 = vmatpush1.msra.mxu0 0.0
      %3013 = vmatprep.subr.mxu0 0.0
      %3014 = vmatpush1.msra.mxu0 0.0
      %3015 = vmatprep.subr.mxu0 0.0
      %3016 = vmatpush1.msra.mxu0 0.0
      %3017 = vmatprep.subr.mxu0 0.0
      %3018 = vmatpush1.msra.mxu0 0.0
      %3019 = vmatprep.subr.mxu0 0.0
      %3020 = vmatpush1.msra.mxu0 0.0
      %3021 = vmatprep.subr.mxu0 0.0
      %3022 = vmatpush1.msra.mxu0 0.0
      %3023 = vmatprep.subr.mxu0 0.0
      %3024 = vmatpush1.msra.mxu0 0.0
      %3025 = vmatprep.subr.mxu0 0.0
      %3026 = vmatpush1.msra.mxu0 0.0
      %3027 = vmatprep.subr.mxu0 0.0
      %3028 = vmatpush1.msra.mxu0 0.0
      %3029 = vmatprep.subr.mxu0 0.0
      %3030 = vmatpush1.msra.mxu0 0.0
      %3031 = vmatprep.subr.mxu0 0.0
      %3032 = vmatpush1.msra.mxu0 0.0
      %3033 = vmatprep.subr.mxu0 0.0
      %3034 = vmatpush1.msra.mxu0 0.0
      %3035 = vmatprep.subr.mxu0 0.0
      %3036 = vmatpush1.msra.mxu0 0.0
      %3037 = vmatprep.subr.mxu0 0.0
      %3038 = vmatpush1.msra.mxu0 0.0
      %3039 = vmatprep.subr.mxu0 0.0
      %3040 = vmatpush1.msra.mxu0 0.0
      %3041 = vmatprep.subr.mxu0 0.0
      %3042 = vmatpush1.msra.mxu0 0.0
      %3043 = vmatprep.subr.mxu0 0.0
      %3044 = vmatpush1.msra.mxu0 0.0
      %3045 = vmatprep.subr.mxu0 0.0
      %3046 = vmatpush1.msra.mxu0 0.0
      %3047 = vmatprep.subr.mxu0 0.0
      %3048 = vmatpush1.msra.mxu0 0.0
      %3049 = vmatprep.subr.mxu0 0.0
      %3050 = vmatpush1.msra.mxu0 0.0
      %3051 = vmatprep.subr.mxu0 0.0
      %3052 = vmatpush1.msra.mxu0 0.0
      %3053 = vmatprep.subr.mxu0 0.0
      %3054 = vmatpush1.msra.mxu0 0.0
      %3055 = vmatprep.subr.mxu0 0.0
      %3056 = vmatpush1.msra.mxu0 0.0
      %3057 = vmatprep.subr.mxu0 0.0
      %3058 = vmatpush1.msra.mxu0 0.0
      %3059 = vmatprep.subr.mxu0 0.0
      %3060 = vmatpush1.msra.mxu0 0.0
      %3061 = vmatprep.subr.mxu0 0.0
      %3062 = vmatpush1.msra.mxu0 0.0
      %3063 = vmatprep.mubr.f32.mxu0 0.0
      %3064 = vmatmul.mubr.f32.gmra.mrb[0].mxu0 %v2904
      %v3065 = vpop.f32.mrb[0].mxu0
      %v3066 = vadd.f32 0.0, %v3065
      %v3067 = vpop.f32.mrb[0].mxu0
      %3068 = vmatprep.mubr.f32.mxu0 0.0
      %3069 = vmatmul.mubr.f32.gmra.mrb[0].mxu0 %v2907
      %v3070 = vpop.f32.mrb[0].mxu0
      %v3071 = vadd.f32 0.0, %v3070
      %v3072 = vpop.f32.mrb[0].mxu0
      %3073 = vmatprep.mubr.f32.mxu0 0.0
      %3074 = vmatmul.mubr.f32.gmra.mrb[0].mxu0 %v2910
      %v3075 = vpop.f32.mrb[0].mxu0
      %v3076 = vadd.f32 0.0, %v3075
      %v3077 = vpop.f32.mrb[0].mxu0
      %3078 = vmatprep.mubr.f32.mxu0 0.0
      %3079 = vmatmul.mubr.f32.gmra.mrb[0].mxu0 %v2913
      %v3080 = vpop.f32.mrb[0].mxu0
      %v3081 = vadd.f32 0.0, %v3080
      %v3082 = vpop.f32.mrb[0].mxu0
      %3083 = vmatprep.mubr.f32.mxu0 0.0
      %3084 = vmatmul.mubr.f32.gmra.mrb[0].mxu0 %v2916
      %v3085 = vpop.f32.mrb[0].mxu0
      %v3086 = vadd.f32 0.0, %v3085
      %v3087 = vpop.f32.mrb[0].mxu0
      %3088 = vmatprep.mubr.f32.mxu0 0.0
      %3089 = vmatmul.mubr.f32.gmra.mrb[0].mxu0 %v2919
      %v3090 = vpop.f32.mrb[0].mxu0
      %v3091 = vadd.f32 0.0, %v3090
      %v3092 = vpop.f32.mrb[0].mxu0
      %3093 = vmatprep.mubr.f32.mxu0 0.0
      %3094 = vmatmul.mubr.f32.gmra.mrb[0].mxu0 %v2922
      %v3095 = vpop.f32.mrb[0].mxu0
      %v3096 = vadd.f32 0.0, %v3095
      %v3097 = vpop.f32.mrb[0].mxu0
      %3098 = vmatprep.mubr.f32.mxu0 0.0
      %3099 = vmatmul.mubr.f32.gmra.mrb[0].mxu0 %v2925
      %v3100 = vpop.f32.mrb[0].mxu0
      %v3101 = vadd.f32 0.0, %v3100
      %v3102 = vpop.f32.mrb[0].mxu0
      %3103 = vmatprep.mubr.f32.mxu0 0.0
      %3104 = vmatmul.mubr.f32.gmra.mrb[0].mxu0 %v2928
      %v3105 = vpop.f32.mrb[0].mxu0
      %v3106 = vadd.f32 0.0, %v3105
      %v3107 = vpop.f32.mrb[0].mxu0
      %3108 = vmatprep.mubr.f32.mxu0 0.0
      %3109 = vmatmul.mubr.f32.gmra.mrb[0].mxu0 %v2931
      %v3110 = vpop.f32.mrb[0].mxu0
      %v3111 = vadd.f32 0.0, %v3110
      %v3112 = vpop.f32.mrb[0].mxu0
      %3113 = vmatprep.mubr.f32.mxu0 0.0
      %3114 = vmatmul.mubr.f32.gmra.mrb[0].mxu0 %v2934
      %v3115 = vpop.f32.mrb[0].mxu0
      %v3116 = vadd.f32 0.0, %v3115
      %v3117 = vpop.f32.mrb[0].mxu0
      %3118 = vmatprep.mubr.f32.mxu0 0.0
      %3119 = vmatmul.mubr.f32.gmra.mrb[0].mxu0 %v2937
      %v3120 = vpop.f32.mrb[0].mxu0
      %v3121 = vadd.f32 0.0, %v3120
      %v3122 = vpop.f32.mrb[0].mxu0
      %3123 = vmatprep.mubr.f32.mxu0 0.0
      %3124 = vmatmul.mubr.f32.gmra.mrb[0].mxu0 %v2940
      %v3125 = vpop.f32.mrb[0].mxu0
      %v3126 = vadd.f32 0.0, %v3125
      %v3127 = vpop.f32.mrb[0].mxu0
      %3128 = vmatprep.mubr.f32.mxu0 0.0
      %3129 = vmatmul.mubr.f32.gmra.mrb[0].mxu0 %v2943
      %v3130 = vpop.f32.mrb[0].mxu0
      %v3131 = vadd.f32 0.0, %v3130
      %v3132 = vpop.f32.mrb[0].mxu0
      %3133 = vmatprep.mubr.f32.mxu0 0.0
      %3134 = vmatmul.mubr.f32.gmra.mrb[0].mxu0 %v2946
      %v3135 = vpop.f32.mrb[0].mxu0
      %v3136 = vadd.f32 0.0, %v3135
      %v3137 = vpop.f32.mrb[0].mxu0
      %3138 = vmatprep.mubr.f32.mxu0 0.0
      %3139 = vmatmul.mubr.f32.gmra.mrb[0].mxu0 %v2949
      %v3140 = vpop.f32.mrb[0].mxu0
      %v3141 = vadd.f32 0.0, %v3140
      %v3142 = vpop.f32.mrb[0].mxu0
      %3143 = vmatprep.mubr.f32.mxu0 0.0
      %3144 = vmatmul.mubr.f32.gmra.mrb[0].mxu0 %v2952
      %v3145 = vpop.f32.mrb[0].mxu0
      %v3146 = vadd.f32 0.0, %v3145
      %v3147 = vpop.f32.mrb[0].mxu0
      %3148 = vmatprep.mubr.f32.mxu0 0.0
      %3149 = vmatmul.mubr.f32.gmra.mrb[0].mxu0 %v2955
      %v3150 = vpop.f32.mrb[0].mxu0
      %v3151 = vadd.f32 0.0, %v3150
      %v3152 = vpop.f32.mrb[0].mxu0
      %3153 = vmatprep.mubr.f32.mxu0 0.0
      %3154 = vmatmul.mubr.f32.gmra.mrb[0].mxu0 %v2958
      %v3155 = vpop.f32.mrb[0].mxu0
      %v3156 = vadd.f32 0.0, %v3155
      %v3157 = vpop.f32.mrb[0].mxu0
      %3158 = vmatprep.mubr.f32.mxu0 0.0
      %3159 = vmatmul.mubr.f32.gmra.mrb[0].mxu0 %v2961
      %v3160 = vpop.f32.mrb[0].mxu0
      %v3161 = vadd.f32 0.0, %v3160
      %v3162 = vpop.f32.mrb[0].mxu0
      %3163 = vmatprep.mubr.f32.mxu0 0.0
      %3164 = vmatmul.mubr.f32.gmra.mrb[0].mxu0 %v2964
      %v3165 = vpop.f32.mrb[0].mxu0
      %v3166 = vadd.f32 0.0, %v3165
      %v3167 = vpop.f32.mrb[0].mxu0
      %3168 = vmatprep.mubr.f32.mxu0 0.0
      %3169 = vmatmul.mubr.f32.gmra.mrb[0].mxu0 %v2967
      %v3170 = vpop.f32.mrb[0].mxu0
      %v3171 = vadd.f32 0.0, %v3170
      %v3172 = vpop.f32.mrb[0].mxu0
      %3173 = vmatprep.mubr.f32.mxu0 0.0
      %3174 = vmatmul.mubr.f32.gmra.mrb[0].mxu0 %v2970
      %v3175 = vpop.f32.mrb[0].mxu0
      %v3176 = vadd.f32 0.0, %v3175
      %v3177 = vpop.f32.mrb[0].mxu0
      %3178 = vmatprep.mubr.f32.mxu0 0.0
      %3179 = vmatmul.mubr.f32.gmra.mrb[0].mxu0 %v2973
      %v3180 = vpop.f32.mrb[0].mxu0
      %v3181 = vadd.f32 0.0, %v3180
      %v3182 = vpop.f32.mrb[0].mxu0
      %3183 = vmatprep.mubr.f32.mxu0 0.0
      %3184 = vmatmul.mubr.f32.gmra.mrb[0].mxu0 %v2976
      %v3185 = vpop.f32.mrb[0].mxu0
      %v3186 = vadd.f32 0.0, %v3185
      %v3187 = vpop.f32.mrb[0].mxu0
      %3188 = vmatprep.mubr.f32.mxu0 0.0
      %3189 = vmatmul.mubr.f32.gmra.mrb[0].mxu0 %v2979
      %v3190 = vpop.f32.mrb[0].mxu0
      %v3191 = vadd.f32 0.0, %v3190
      %v3192 = vpop.f32.mrb[0].mxu0
      %3193 = vmatprep.mubr.f32.mxu0 0.0
      %3194 = vmatmul.mubr.f32.gmra.mrb[0].mxu0 %v2982
      %v3195 = vpop.f32.mrb[0].mxu0
      %v3196 = vadd.f32 0.0, %v3195
      %v3197 = vpop.f32.mrb[0].mxu0
      %3198 = vmatprep.mubr.f32.mxu0 0.0
      %3199 = vmatmul.mubr.f32.gmra.mrb[0].mxu0 %v2985
      %v3200 = vpop.f32.mrb[0].mxu0
      %v3201 = vadd.f32 0.0, %v3200
      %v3202 = vpop.f32.mrb[0].mxu0
      %3203 = vmatprep.mubr.f32.mxu0 0.0
      %3204 = vmatmul.mubr.f32.gmra.mrb[0].mxu0 %v2988
      %v3205 = vpop.f32.mrb[0].mxu0
      %v3206 = vadd.f32 0.0, %v3205
      %v3207 = vpop.f32.mrb[0].mxu0
      %3208 = vmatprep.mubr.f32.mxu0 0.0
      %3209 = vmatmul.mubr.f32.gmra.mrb[0].mxu0 %v2991
      %v3210 = vpop.f32.mrb[0].mxu0
      %v3211 = vadd.f32 0.0, %v3210
      %v3212 = vpop.f32.mrb[0].mxu0
      %3213 = vmatprep.mubr.f32.mxu0 0.0
      %3214 = vmatmul.mubr.f32.gmra.mrb[0].mxu0 %v2994
      %v3215 = vpop.f32.mrb[0].mxu0
      %v3216 = vadd.f32 0.0, %v3215
      %v3217 = vpop.f32.mrb[0].mxu0
      %3218 = vmatprep.mubr.f32.mxu0 0.0
      %3219 = vmatmul.mubr.f32.gmra.mrb[0].mxu0 %v2997
      %v3220 = vpop.f32.mrb[0].mxu0
      %v3221 = vadd.f32 0.0, %v3220
      %v3222 = vpop.f32.mrb[0].mxu0
      %3223 = vdwg.mxu0
      %v3224 = vadd.f32 %v2834, %v3066
      %v3225 = vadd.f32 %v2835, %v3071
      %v3226 = vadd.f32 %v2836, %v3076
      %v3227 = vadd.f32 %v2837, %v3081
      %v3228 = vadd.f32 %v2838, %v3086
      %v3229 = vadd.f32 %v2839, %v3091
      %v3230 = vadd.f32 %v2840, %v3096
      %v3231 = vadd.f32 %v2841, %v3101
      %v3232 = vadd.f32 %v2842, %v3106
      %v3233 = vadd.f32 %v2843, %v3111
      %v3234 = vadd.f32 %v2844, %v3116
      %v3235 = vadd.f32 %v2845, %v3121
      %v3236 = vadd.f32 %v2846, %v3126
      %v3237 = vadd.f32 %v2847, %v3131
      %v3238 = vadd.f32 %v2848, %v3136
      %v3239 = vadd.f32 %v2849, %v3141
      %v3240 = vadd.f32 %v2850, %v3146
      %v3241 = vadd.f32 %v2851, %v3151
      %v3242 = vadd.f32 %v2852, %v3156
      %v3243 = vadd.f32 %v2853, %v3161
      %v3244 = vadd.f32 %v2854, %v3166
      %v3245 = vadd.f32 %v2855, %v3171
      %v3246 = vadd.f32 %v2856, %v3176
      %v3247 = vadd.f32 %v2857, %v3181
      %v3248 = vadd.f32 %v2858, %v3186
      %v3249 = vadd.f32 %v2859, %v3191
      %v3250 = vadd.f32 %v2860, %v3196
      %v3251 = vadd.f32 %v2861, %v3201
      %v3252 = vadd.f32 %v2862, %v3206
      %v3253 = vadd.f32 %v2863, %v3211
      %v3254 = vadd.f32 %v2864, %v3216
      %v3255 = vadd.f32 %v2865, %v3221
      %v3256 = vld [vmem:[%s2475 + $0x2] sm:$0xff]
      %v3257 = vld [vmem:[%s2475 + $0x12] sm:$0xff]
      %v3258 = vld [vmem:[%s2475 + $0x22] sm:$0xff]
      %v3259 = vld [vmem:[%s2475 + $0x32] sm:$0xff]
      %v3260 = vld [vmem:[%s2475 + $0x42] sm:$0xff]
      %v3261 = vld [vmem:[%s2475 + $0x52] sm:$0xff]
      %v3262 = vld [vmem:[%s2475 + $0x62] sm:$0xff]
      %v3263 = vld [vmem:[%s2475 + $0x72] sm:$0xff]
      %v3264 = vld [vmem:[%s2475 + $0xa2] sm:$0xff]
      %v3265 = vld [vmem:[%s2475 + $0xb2] sm:$0xff]
      %v3266 = vld [vmem:[%s2475 + $0xc2] sm:$0xff]
      %v3267 = vld [vmem:[%s2475 + $0xd2] sm:$0xff]
      %v3268 = vld [vmem:[%s2475 + $0xe2] sm:$0xff]
      %v3269 = vld [vmem:[%s2475 + $0xf2] sm:$0xff]
      %v3270 = vld [vmem:[%s2475 + $0x102] sm:$0xff]
      %v3271 = vld [vmem:[%s2475 + $0x112] sm:$0xff]
      %v3272 = vld [vmem:[%s2475 + $0x142] sm:$0xff]
      %v3273 = vld [vmem:[%s2475 + $0x152] sm:$0xff]
      %v3274 = vld [vmem:[%s2475 + $0x162] sm:$0xff]
      %v3275 = vld [vmem:[%s2475 + $0x172] sm:$0xff]
      %v3276 = vld [vmem:[%s2475 + $0x182] sm:$0xff]
      %v3277 = vld [vmem:[%s2475 + $0x192] sm:$0xff]
      %v3278 = vld [vmem:[%s2475 + $0x1a2] sm:$0xff]
      %v3279 = vld [vmem:[%s2475 + $0x1b2] sm:$0xff]
      %v3280 = vld [vmem:[%s2475 + $0x1e2] sm:$0xff]
      %v3281 = vld [vmem:[%s2475 + $0x1f2] sm:$0xff]
      %v3282 = vld [vmem:[%s2475 + $0x202] sm:$0xff]
      %v3283 = vld [vmem:[%s2475 + $0x212] sm:$0xff]
      %v3284 = vld [vmem:[%s2475 + $0x222] sm:$0xff]
      %v3285 = vld [vmem:[%s2475 + $0x232] sm:$0xff]
      %v3286 = vld [vmem:[%s2475 + $0x242] sm:$0xff]
      %v3287 = vld [vmem:[%s2475 + $0x252] sm:$0xff]
      %s3288 = scalar_lea.vmem %s1, 256
      %v3289 = vld [vmem:[%s3288] sm:$0xff]
      %v3290 = vld [vmem:[%s3288 + $0x8] sm:$0xff]
      %v3291 = vld [vmem:[%s3288 + $0x10] sm:$0xff]
      %v3292 = vld [vmem:[%s3288 + $0x18] sm:$0xff]
      %v3294 = vsel %vm271, %v3256, 0
      %v3297 = vsel %vm271, %v3257, 0
      %v3300 = vsel %vm271, %v3258, 0
      %v3303 = vsel %vm271, %v3259, 0
      %v3306 = vsel %vm271, %v3260, 0
      %v3309 = vsel %vm271, %v3261, 0
      %v3312 = vsel %vm271, %v3262, 0
      %v3315 = vsel %vm271, %v3263, 0
      %v3318 = vsel %vm271, %v3264, 0
      %v3321 = vsel %vm271, %v3265, 0
      %v3324 = vsel %vm271, %v3266, 0
      %v3327 = vsel %vm271, %v3267, 0
      %v3330 = vsel %vm271, %v3268, 0
      %v3333 = vsel %vm271, %v3269, 0
      %v3336 = vsel %vm271, %v3270, 0
      %v3339 = vsel %vm271, %v3271, 0
      %v3342 = vsel %vm271, %v3272, 0
      %v3345 = vsel %vm271, %v3273, 0
      %v3348 = vsel %vm271, %v3274, 0
      %v3351 = vsel %vm271, %v3275, 0
      %v3354 = vsel %vm271, %v3276, 0
      %v3357 = vsel %vm271, %v3277, 0
      %v3360 = vsel %vm271, %v3278, 0
      %v3363 = vsel %vm271, %v3279, 0
      %v3366 = vsel %vm271, %v3280, 0
      %v3369 = vsel %vm271, %v3281, 0
      %v3372 = vsel %vm271, %v3282, 0
      %v3375 = vsel %vm271, %v3283, 0
      %v3378 = vsel %vm271, %v3284, 0
      %v3381 = vsel %vm271, %v3285, 0
      %v3384 = vsel %vm271, %v3286, 0
      %v3387 = vsel %vm271, %v3287, 0
      %3389 = vmatprep.subr.mxu0 0.0
      %3390 = vmatpush1.msra.mxu0 %v3289
      %3391 = vmatprep.subr.mxu0 0.0
      %3392 = vmatpush1.msra.mxu0 %v3290
      %3393 = vmatprep.subr.mxu0 0.0
      %3394 = vmatpush1.msra.mxu0 %v3291
      %3395 = vmatprep.subr.mxu0 0.0
      %3396 = vmatpush1.msra.mxu0 %v3292
      %3397 = vmatprep.subr.mxu0 0.0
      %3398 = vmatpush1.msra.mxu0 0.0
      %3399 = vmatprep.subr.mxu0 0.0
      %3400 = vmatpush1.msra.mxu0 0.0
      %3401 = vmatprep.subr.mxu0 0.0
      %3402 = vmatpush1.msra.mxu0 0.0
      %3403 = vmatprep.subr.mxu0 0.0
      %3404 = vmatpush1.msra.mxu0 0.0
      %3405 = vmatprep.subr.mxu0 0.0
      %3406 = vmatpush1.msra.mxu0 0.0
      %3407 = vmatprep.subr.mxu0 0.0
      %3408 = vmatpush1.msra.mxu0 0.0
      %3409 = vmatprep.subr.mxu0 0.0
      %3410 = vmatpush1.msra.mxu0 0.0
      %3411 = vmatprep.subr.mxu0 0.0
      %3412 = vmatpush1.msra.mxu0 0.0
      %3413 = vmatprep.subr.mxu0 0.0
      %3414 = vmatpush1.msra.mxu0 0.0
      %3415 = vmatprep.subr.mxu0 0.0
      %3416 = vmatpush1.msra.mxu0 0.0
      %3417 = vmatprep.subr.mxu0 0.0
      %3418 = vmatpush1.msra.mxu0 0.0
      %3419 = vmatprep.subr.mxu0 0.0
      %3420 = vmatpush1.msra.mxu0 0.0
      %3421 = vmatprep.subr.mxu0 0.0
      %3422 = vmatpush1.msra.mxu0 0.0
      %3423 = vmatprep.subr.mxu0 0.0
      %3424 = vmatpush1.msra.mxu0 0.0
      %3425 = vmatprep.subr.mxu0 0.0
      %3426 = vmatpush1.msra.mxu0 0.0
      %3427 = vmatprep.subr.mxu0 0.0
      %3428 = vmatpush1.msra.mxu0 0.0
      %3429 = vmatprep.subr.mxu0 0.0
      %3430 = vmatpush1.msra.mxu0 0.0
      %3431 = vmatprep.subr.mxu0 0.0
      %3432 = vmatpush1.msra.mxu0 0.0
      %3433 = vmatprep.subr.mxu0 0.0
      %3434 = vmatpush1.msra.mxu0 0.0
      %3435 = vmatprep.subr.mxu0 0.0
      %3436 = vmatpush1.msra.mxu0 0.0
      %3437 = vmatprep.subr.mxu0 0.0
      %3438 = vmatpush1.msra.mxu0 0.0
      %3439 = vmatprep.subr.mxu0 0.0
      %3440 = vmatpush1.msra.mxu0 0.0
      %3441 = vmatprep.subr.mxu0 0.0
      %3442 = vmatpush1.msra.mxu0 0.0
      %3443 = vmatprep.subr.mxu0 0.0
      %3444 = vmatpush1.msra.mxu0 0.0
      %3445 = vmatprep.subr.mxu0 0.0
      %3446 = vmatpush1.msra.mxu0 0.0
      %3447 = vmatprep.subr.mxu0 0.0
      %3448 = vmatpush1.msra.mxu0 0.0
      %3449 = vmatprep.subr.mxu0 0.0
      %3450 = vmatpush1.msra.mxu0 0.0
      %3451 = vmatprep.subr.mxu0 0.0
      %3452 = vmatpush1.msra.mxu0 0.0
      %3453 = vmatprep.mubr.f32.mxu0 0.0
      %3454 = vmatmul.mubr.f32.gmra.mrb[0].mxu0 %v3294
      %v3455 = vpop.f32.mrb[0].mxu0
      %v3456 = vadd.f32 0.0, %v3455
      %v3457 = vpop.f32.mrb[0].mxu0
      %3458 = vmatprep.mubr.f32.mxu0 0.0
      %3459 = vmatmul.mubr.f32.gmra.mrb[0].mxu0 %v3297
      %v3460 = vpop.f32.mrb[0].mxu0
      %v3461 = vadd.f32 0.0, %v3460
      %v3462 = vpop.f32.mrb[0].mxu0
      %3463 = vmatprep.mubr.f32.mxu0 0.0
      %3464 = vmatmul.mubr.f32.gmra.mrb[0].mxu0 %v3300
      %v3465 = vpop.f32.mrb[0].mxu0
      %v3466 = vadd.f32 0.0, %v3465
      %v3467 = vpop.f32.mrb[0].mxu0
      %3468 = vmatprep.mubr.f32.mxu0 0.0
      %3469 = vmatmul.mubr.f32.gmra.mrb[0].mxu0 %v3303
      %v3470 = vpop.f32.mrb[0].mxu0
      %v3471 = vadd.f32 0.0, %v3470
      %v3472 = vpop.f32.mrb[0].mxu0
      %3473 = vmatprep.mubr.f32.mxu0 0.0
      %3474 = vmatmul.mubr.f32.gmra.mrb[0].mxu0 %v3306
      %v3475 = vpop.f32.mrb[0].mxu0
      %v3476 = vadd.f32 0.0, %v3475
      %v3477 = vpop.f32.mrb[0].mxu0
      %3478 = vmatprep.mubr.f32.mxu0 0.0
      %3479 = vmatmul.mubr.f32.gmra.mrb[0].mxu0 %v3309
      %v3480 = vpop.f32.mrb[0].mxu0
      %v3481 = vadd.f32 0.0, %v3480
      %v3482 = vpop.f32.mrb[0].mxu0
      %3483 = vmatprep.mubr.f32.mxu0 0.0
      %3484 = vmatmul.mubr.f32.gmra.mrb[0].mxu0 %v3312
      %v3485 = vpop.f32.mrb[0].mxu0
      %v3486 = vadd.f32 0.0, %v3485
      %v3487 = vpop.f32.mrb[0].mxu0
      %3488 = vmatprep.mubr.f32.mxu0 0.0
      %3489 = vmatmul.mubr.f32.gmra.mrb[0].mxu0 %v3315
      %v3490 = vpop.f32.mrb[0].mxu0
      %v3491 = vadd.f32 0.0, %v3490
      %v3492 = vpop.f32.mrb[0].mxu0
      %3493 = vmatprep.mubr.f32.mxu0 0.0
      %3494 = vmatmul.mubr.f32.gmra.mrb[0].mxu0 %v3318
      %v3495 = vpop.f32.mrb[0].mxu0
      %v3496 = vadd.f32 0.0, %v3495
      %v3497 = vpop.f32.mrb[0].mxu0
      %3498 = vmatprep.mubr.f32.mxu0 0.0
      %3499 = vmatmul.mubr.f32.gmra.mrb[0].mxu0 %v3321
      %v3500 = vpop.f32.mrb[0].mxu0
      %v3501 = vadd.f32 0.0, %v3500
      %v3502 = vpop.f32.mrb[0].mxu0
      %3503 = vmatprep.mubr.f32.mxu0 0.0
      %3504 = vmatmul.mubr.f32.gmra.mrb[0].mxu0 %v3324
      %v3505 = vpop.f32.mrb[0].mxu0
      %v3506 = vadd.f32 0.0, %v3505
      %v3507 = vpop.f32.mrb[0].mxu0
      %3508 = vmatprep.mubr.f32.mxu0 0.0
      %3509 = vmatmul.mubr.f32.gmra.mrb[0].mxu0 %v3327
      %v3510 = vpop.f32.mrb[0].mxu0
      %v3511 = vadd.f32 0.0, %v3510
      %v3512 = vpop.f32.mrb[0].mxu0
      %3513 = vmatprep.mubr.f32.mxu0 0.0
      %3514 = vmatmul.mubr.f32.gmra.mrb[0].mxu0 %v3330
      %v3515 = vpop.f32.mrb[0].mxu0
      %v3516 = vadd.f32 0.0, %v3515
      %v3517 = vpop.f32.mrb[0].mxu0
      %3518 = vmatprep.mubr.f32.mxu0 0.0
      %3519 = vmatmul.mubr.f32.gmra.mrb[0].mxu0 %v3333
      %v3520 = vpop.f32.mrb[0].mxu0
      %v3521 = vadd.f32 0.0, %v3520
      %v3522 = vpop.f32.mrb[0].mxu0
      %3523 = vmatprep.mubr.f32.mxu0 0.0
      %3524 = vmatmul.mubr.f32.gmra.mrb[0].mxu0 %v3336
      %v3525 = vpop.f32.mrb[0].mxu0
      %v3526 = vadd.f32 0.0, %v3525
      %v3527 = vpop.f32.mrb[0].mxu0
      %3528 = vmatprep.mubr.f32.mxu0 0.0
      %3529 = vmatmul.mubr.f32.gmra.mrb[0].mxu0 %v3339
      %v3530 = vpop.f32.mrb[0].mxu0
      %v3531 = vadd.f32 0.0, %v3530
      %v3532 = vpop.f32.mrb[0].mxu0
      %3533 = vmatprep.mubr.f32.mxu0 0.0
      %3534 = vmatmul.mubr.f32.gmra.mrb[0].mxu0 %v3342
      %v3535 = vpop.f32.mrb[0].mxu0
      %v3536 = vadd.f32 0.0, %v3535
      %v3537 = vpop.f32.mrb[0].mxu0
      %3538 = vmatprep.mubr.f32.mxu0 0.0
      %3539 = vmatmul.mubr.f32.gmra.mrb[0].mxu0 %v3345
      %v3540 = vpop.f32.mrb[0].mxu0
      %v3541 = vadd.f32 0.0, %v3540
      %v3542 = vpop.f32.mrb[0].mxu0
      %3543 = vmatprep.mubr.f32.mxu0 0.0
      %3544 = vmatmul.mubr.f32.gmra.mrb[0].mxu0 %v3348
      %v3545 = vpop.f32.mrb[0].mxu0
      %v3546 = vadd.f32 0.0, %v3545
      %v3547 = vpop.f32.mrb[0].mxu0
      %3548 = vmatprep.mubr.f32.mxu0 0.0
      %3549 = vmatmul.mubr.f32.gmra.mrb[0].mxu0 %v3351
      %v3550 = vpop.f32.mrb[0].mxu0
      %v3551 = vadd.f32 0.0, %v3550
      %v3552 = vpop.f32.mrb[0].mxu0
      %3553 = vmatprep.mubr.f32.mxu0 0.0
      %3554 = vmatmul.mubr.f32.gmra.mrb[0].mxu0 %v3354
      %v3555 = vpop.f32.mrb[0].mxu0
      %v3556 = vadd.f32 0.0, %v3555
      %v3557 = vpop.f32.mrb[0].mxu0
      %3558 = vmatprep.mubr.f32.mxu0 0.0
      %3559 = vmatmul.mubr.f32.gmra.mrb[0].mxu0 %v3357
      %v3560 = vpop.f32.mrb[0].mxu0
      %v3561 = vadd.f32 0.0, %v3560
      %v3562 = vpop.f32.mrb[0].mxu0
      %3563 = vmatprep.mubr.f32.mxu0 0.0
      %3564 = vmatmul.mubr.f32.gmra.mrb[0].mxu0 %v3360
      %v3565 = vpop.f32.mrb[0].mxu0
      %v3566 = vadd.f32 0.0, %v3565
      %v3567 = vpop.f32.mrb[0].mxu0
      %3568 = vmatprep.mubr.f32.mxu0 0.0
      %3569 = vmatmul.mubr.f32.gmra.mrb[0].mxu0 %v3363
      %v3570 = vpop.f32.mrb[0].mxu0
      %v3571 = vadd.f32 0.0, %v3570
      %v3572 = vpop.f32.mrb[0].mxu0
      %3573 = vmatprep.mubr.f32.mxu0 0.0
      %3574 = vmatmul.mubr.f32.gmra.mrb[0].mxu0 %v3366
      %v3575 = vpop.f32.mrb[0].mxu0
      %v3576 = vadd.f32 0.0, %v3575
      %v3577 = vpop.f32.mrb[0].mxu0
      %3578 = vmatprep.mubr.f32.mxu0 0.0
      %3579 = vmatmul.mubr.f32.gmra.mrb[0].mxu0 %v3369
      %v3580 = vpop.f32.mrb[0].mxu0
      %v3581 = vadd.f32 0.0, %v3580
      %v3582 = vpop.f32.mrb[0].mxu0
      %3583 = vmatprep.mubr.f32.mxu0 0.0
      %3584 = vmatmul.mubr.f32.gmra.mrb[0].mxu0 %v3372
      %v3585 = vpop.f32.mrb[0].mxu0
      %v3586 = vadd.f32 0.0, %v3585
      %v3587 = vpop.f32.mrb[0].mxu0
      %3588 = vmatprep.mubr.f32.mxu0 0.0
      %3589 = vmatmul.mubr.f32.gmra.mrb[0].mxu0 %v3375
      %v3590 = vpop.f32.mrb[0].mxu0
      %v3591 = vadd.f32 0.0, %v3590
      %v3592 = vpop.f32.mrb[0].mxu0
      %3593 = vmatprep.mubr.f32.mxu0 0.0
      %3594 = vmatmul.mubr.f32.gmra.mrb[0].mxu0 %v3378
      %v3595 = vpop.f32.mrb[0].mxu0
      %v3596 = vadd.f32 0.0, %v3595
      %v3597 = vpop.f32.mrb[0].mxu0
      %3598 = vmatprep.mubr.f32.mxu0 0.0
      %3599 = vmatmul.mubr.f32.gmra.mrb[0].mxu0 %v3381
      %v3600 = vpop.f32.mrb[0].mxu0
      %v3601 = vadd.f32 0.0, %v3600
      %v3602 = vpop.f32.mrb[0].mxu0
      %3603 = vmatprep.mubr.f32.mxu0 0.0
      %3604 = vmatmul.mubr.f32.gmra.mrb[0].mxu0 %v3384
      %v3605 = vpop.f32.mrb[0].mxu0
      %v3606 = vadd.f32 0.0, %v3605
      %v3607 = vpop.f32.mrb[0].mxu0
      %3608 = vmatprep.mubr.f32.mxu0 0.0
      %3609 = vmatmul.mubr.f32.gmra.mrb[0].mxu0 %v3387
      %v3610 = vpop.f32.mrb[0].mxu0
      %v3611 = vadd.f32 0.0, %v3610
      %v3612 = vpop.f32.mrb[0].mxu0
      %3613 = vdwg.mxu0
      %v3614 = vadd.f32 %v3224, %v3456
      %v3615 = vadd.f32 %v3225, %v3461
      %v3616 = vadd.f32 %v3226, %v3466
      %v3617 = vadd.f32 %v3227, %v3471
      %v3618 = vadd.f32 %v3228, %v3476
      %v3619 = vadd.f32 %v3229, %v3481
      %v3620 = vadd.f32 %v3230, %v3486
      %v3621 = vadd.f32 %v3231, %v3491
      %v3622 = vadd.f32 %v3232, %v3496
      %v3623 = vadd.f32 %v3233, %v3501
      %v3624 = vadd.f32 %v3234, %v3506
      %v3625 = vadd.f32 %v3235, %v3511
      %v3626 = vadd.f32 %v3236, %v3516
      %v3627 = vadd.f32 %v3237, %v3521
      %v3628 = vadd.f32 %v3238, %v3526
      %v3629 = vadd.f32 %v3239, %v3531
      %v3630 = vadd.f32 %v3240, %v3536
      %v3631 = vadd.f32 %v3241, %v3541
      %v3632 = vadd.f32 %v3242, %v3546
      %v3633 = vadd.f32 %v3243, %v3551
      %v3634 = vadd.f32 %v3244, %v3556
      %v3635 = vadd.f32 %v3245, %v3561
      %v3636 = vadd.f32 %v3246, %v3566
      %v3637 = vadd.f32 %v3247, %v3571
      %v3638 = vadd.f32 %v3248, %v3576
      %v3639 = vadd.f32 %v3249, %v3581
      %v3640 = vadd.f32 %v3250, %v3586
      %v3641 = vadd.f32 %v3251, %v3591
      %v3642 = vadd.f32 %v3252, %v3596
      %v3643 = vadd.f32 %v3253, %v3601
      %v3644 = vadd.f32 %v3254, %v3606
      %v3645 = vadd.f32 %v3255, %v3611
      %v3646 = vld [vmem:[%s3] sm:$0x1]
      %v3647 = vlaneseq
      %v3648 = vshrl.u32 %v3647, 7
      %v3649 = vsub.s32 0, %v3648
      %v3650 = vrot.slane %v3646, %v3649
      %v3651 = vadd.f32 %v3614, %v3650
      %v3652 = vadd.f32 %v3615, %v3650
      %v3653 = vadd.f32 %v3616, %v3650
      %v3654 = vadd.f32 %v3617, %v3650
      %v3655 = vadd.f32 %v3618, %v3650
      %v3656 = vadd.f32 %v3619, %v3650
      %v3657 = vadd.f32 %v3620, %v3650
      %v3658 = vadd.f32 %v3621, %v3650
      %v3659 = vadd.f32 %v3622, %v3650
      %v3660 = vadd.f32 %v3623, %v3650
      %v3661 = vadd.f32 %v3624, %v3650
      %v3662 = vadd.f32 %v3625, %v3650
      %v3663 = vadd.f32 %v3626, %v3650
      %v3664 = vadd.f32 %v3627, %v3650
      %v3665 = vadd.f32 %v3628, %v3650
      %v3666 = vadd.f32 %v3629, %v3650
      %v3667 = vadd.f32 %v3630, %v3650
      %v3668 = vadd.f32 %v3631, %v3650
      %v3669 = vadd.f32 %v3632, %v3650
      %v3670 = vadd.f32 %v3633, %v3650
      %v3671 = vadd.f32 %v3634, %v3650
      %v3672 = vadd.f32 %v3635, %v3650
      %v3673 = vadd.f32 %v3636, %v3650
      %v3674 = vadd.f32 %v3637, %v3650
      %v3675 = vadd.f32 %v3638, %v3650
      %v3676 = vadd.f32 %v3639, %v3650
      %v3677 = vadd.f32 %v3640, %v3650
      %v3678 = vadd.f32 %v3641, %v3650
      %v3679 = vadd.f32 %v3642, %v3650
      %v3680 = vadd.f32 %v3643, %v3650
      %v3681 = vadd.f32 %v3644, %v3650
      %v3682 = vadd.f32 %v3645, %v3650
      %v3683 = vmax.f32 %v3651, 0.0
      %v3684 = vmax.f32 %v3652, 0.0
      %v3685 = vmax.f32 %v3653, 0.0
      %v3686 = vmax.f32 %v3654, 0.0
      %v3687 = vmax.f32 %v3655, 0.0
      %v3688 = vmax.f32 %v3656, 0.0
      %v3689 = vmax.f32 %v3657, 0.0
      %v3690 = vmax.f32 %v3658, 0.0
      %v3691 = vmax.f32 %v3659, 0.0
      %v3692 = vmax.f32 %v3660, 0.0
      %v3693 = vmax.f32 %v3661, 0.0
      %v3694 = vmax.f32 %v3662, 0.0
      %v3695 = vmax.f32 %v3663, 0.0
      %v3696 = vmax.f32 %v3664, 0.0
      %v3697 = vmax.f32 %v3665, 0.0
      %v3698 = vmax.f32 %v3666, 0.0
      %v3699 = vmax.f32 %v3667, 0.0
      %v3700 = vmax.f32 %v3668, 0.0
      %v3701 = vmax.f32 %v3669, 0.0
      %v3702 = vmax.f32 %v3670, 0.0
      %v3703 = vmax.f32 %v3671, 0.0
      %v3704 = vmax.f32 %v3672, 0.0
      %v3705 = vmax.f32 %v3673, 0.0
      %v3706 = vmax.f32 %v3674, 0.0
      %v3707 = vmax.f32 %v3675, 0.0
      %v3708 = vmax.f32 %v3676, 0.0
      %v3709 = vmax.f32 %v3677, 0.0
      %v3710 = vmax.f32 %v3678, 0.0
      %v3711 = vmax.f32 %v3679, 0.0
      %v3712 = vmax.f32 %v3680, 0.0
      %v3713 = vmax.f32 %v3681, 0.0
      %v3714 = vmax.f32 %v3682, 0.0
      %s3715 = scalar_lea.vmem %s2, 64
      %v3716 = vld [vmem:[%s3715] sm:$0xff]
      %v3717 = vld [vmem:[%s3715 + $0x8] sm:$0xff]
      %v3718 = vld [vmem:[%s3715 + $0x10] sm:$0xff]
      %v3719 = vld [vmem:[%s3715 + $0x18] sm:$0xff]
      %v3720 = vld [vmem:[%s3715 + $0x20] sm:$0xff]
      %v3721 = vld [vmem:[%s3715 + $0x28] sm:$0xff]
      %v3722 = vld [vmem:[%s3715 + $0x30] sm:$0xff]
      %v3723 = vld [vmem:[%s3715 + $0x38] sm:$0xff]
      %vm3724 = vcmask 523264
      %v3726 = vsel %vm3724, %v3683, 0
      %v3729 = vsel %vm3724, %v3684, 0
      %v3732 = vsel %vm3724, %v3685, 0
      %v3735 = vsel %vm3724, %v3686, 0
      %v3738 = vsel %vm3724, %v3687, 0
      %v3741 = vsel %vm3724, %v3688, 0
      %v3744 = vsel %vm3724, %v3689, 0
      %v3747 = vsel %vm3724, %v3690, 0
      %v3750 = vsel %vm3724, %v3691, 0
      %v3753 = vsel %vm3724, %v3692, 0
      %v3756 = vsel %vm3724, %v3693, 0
      %v3759 = vsel %vm3724, %v3694, 0
      %v3762 = vsel %vm3724, %v3695, 0
      %v3765 = vsel %vm3724, %v3696, 0
      %v3768 = vsel %vm3724, %v3697, 0
      %v3771 = vsel %vm3724, %v3698, 0
      %v3774 = vsel %vm3724, %v3699, 0
      %v3777 = vsel %vm3724, %v3700, 0
      %v3780 = vsel %vm3724, %v3701, 0
      %v3783 = vsel %vm3724, %v3702, 0
      %v3786 = vsel %vm3724, %v3703, 0
      %v3789 = vsel %vm3724, %v3704, 0
      %v3792 = vsel %vm3724, %v3705, 0
      %v3795 = vsel %vm3724, %v3706, 0
      %v3798 = vsel %vm3724, %v3707, 0
      %v3801 = vsel %vm3724, %v3708, 0
      %v3804 = vsel %vm3724, %v3709, 0
      %v3807 = vsel %vm3724, %v3710, 0
      %v3810 = vsel %vm3724, %v3711, 0
      %v3813 = vsel %vm3724, %v3712, 0
      %v3816 = vsel %vm3724, %v3713, 0
      %v3819 = vsel %vm3724, %v3714, 0
      %3821 = vmatprep.subr.mxu0 0.0
      %3822 = vmatpush1.msra.mxu0 %v3716
      %3823 = vmatprep.subr.mxu0 0.0
      %3824 = vmatpush1.msra.mxu0 %v3717
      %3825 = vmatprep.subr.mxu0 0.0
      %3826 = vmatpush1.msra.mxu0 %v3718
      %3827 = vmatprep.subr.mxu0 0.0
      %3828 = vmatpush1.msra.mxu0 %v3719
      %3829 = vmatprep.subr.mxu0 0.0
      %3830 = vmatpush1.msra.mxu0 %v3720
      %3831 = vmatprep.subr.mxu0 0.0
      %3832 = vmatpush1.msra.mxu0 %v3721
      %3833 = vmatprep.subr.mxu0 0.0
      %3834 = vmatpush1.msra.mxu0 %v3722
      %3835 = vmatprep.subr.mxu0 0.0
      %3836 = vmatpush1.msra.mxu0 %v3723
      %3837 = vmatprep.subr.mxu0 0.0
      %3838 = vmatpush1.msra.mxu0 0.0
      %3839 = vmatprep.subr.mxu0 0.0
      %3840 = vmatpush1.msra.mxu0 0.0
      %3841 = vmatprep.subr.mxu0 0.0
      %3842 = vmatpush1.msra.mxu0 0.0
      %3843 = vmatprep.subr.mxu0 0.0
      %3844 = vmatpush1.msra.mxu0 0.0
      %3845 = vmatprep.subr.mxu0 0.0
      %3846 = vmatpush1.msra.mxu0 0.0
      %3847 = vmatprep.subr.mxu0 0.0
      %3848 = vmatpush1.msra.mxu0 0.0
      %3849 = vmatprep.subr.mxu0 0.0
      %3850 = vmatpush1.msra.mxu0 0.0
      %3851 = vmatprep.subr.mxu0 0.0
      %3852 = vmatpush1.msra.mxu0 0.0
      %3853 = vmatprep.subr.mxu0 0.0
      %3854 = vmatpush1.msra.mxu0 0.0
      %3855 = vmatprep.subr.mxu0 0.0
      %3856 = vmatpush1.msra.mxu0 0.0
      %3857 = vmatprep.subr.mxu0 0.0
      %3858 = vmatpush1.msra.mxu0 0.0
      %3859 = vmatprep.subr.mxu0 0.0
      %3860 = vmatpush1.msra.mxu0 0.0
      %3861 = vmatprep.subr.mxu0 0.0
      %3862 = vmatpush1.msra.mxu0 0.0
      %3863 = vmatprep.subr.mxu0 0.0
      %3864 = vmatpush1.msra.mxu0 0.0
      %3865 = vmatprep.subr.mxu0 0.0
      %3866 = vmatpush1.msra.mxu0 0.0
      %3867 = vmatprep.subr.mxu0 0.0
      %3868 = vmatpush1.msra.mxu0 0.0
      %3869 = vmatprep.subr.mxu0 0.0
      %3870 = vmatpush1.msra.mxu0 0.0
      %3871 = vmatprep.subr.mxu0 0.0
      %3872 = vmatpush1.msra.mxu0 0.0
      %3873 = vmatprep.subr.mxu0 0.0
      %3874 = vmatpush1.msra.mxu0 0.0
      %3875 = vmatprep.subr.mxu0 0.0
      %3876 = vmatpush1.msra.mxu0 0.0
      %3877 = vmatprep.subr.mxu0 0.0
      %3878 = vmatpush1.msra.mxu0 0.0
      %3879 = vmatprep.subr.mxu0 0.0
      %3880 = vmatpush1.msra.mxu0 0.0
      %3881 = vmatprep.subr.mxu0 0.0
      %3882 = vmatpush1.msra.mxu0 0.0
      %3883 = vmatprep.subr.mxu0 0.0
      %3884 = vmatpush1.msra.mxu0 0.0
      %3885 = vmatprep.mubr.f32.mxu0 0.0
      %3886 = vmatmul.mubr.f32.gmra.mrb[0].mxu0 %v3726
      %v3887 = vpop.f32.mrb[0].mxu0
      %v3888 = vadd.f32 0.0, %v3887
      %v3889 = vpop.f32.mrb[0].mxu0
      %3890 = vmatprep.mubr.f32.mxu0 0.0
      %3891 = vmatmul.mubr.f32.gmra.mrb[0].mxu0 %v3729
      %v3892 = vpop.f32.mrb[0].mxu0
      %v3893 = vadd.f32 0.0, %v3892
      %v3894 = vpop.f32.mrb[0].mxu0
      %3895 = vmatprep.mubr.f32.mxu0 0.0
      %3896 = vmatmul.mubr.f32.gmra.mrb[0].mxu0 %v3732
      %v3897 = vpop.f32.mrb[0].mxu0
      %v3898 = vadd.f32 0.0, %v3897
      %v3899 = vpop.f32.mrb[0].mxu0
      %3900 = vmatprep.mubr.f32.mxu0 0.0
      %3901 = vmatmul.mubr.f32.gmra.mrb[0].mxu0 %v3735
      %v3902 = vpop.f32.mrb[0].mxu0
      %v3903 = vadd.f32 0.0, %v3902
      %v3904 = vpop.f32.mrb[0].mxu0
      %3905 = vmatprep.mubr.f32.mxu0 0.0
      %3906 = vmatmul.mubr.f32.gmra.mrb[0].mxu0 %v3738
      %v3907 = vpop.f32.mrb[0].mxu0
      %v3908 = vadd.f32 0.0, %v3907
      %v3909 = vpop.f32.mrb[0].mxu0
      %3910 = vmatprep.mubr.f32.mxu0 0.0
      %3911 = vmatmul.mubr.f32.gmra.mrb[0].mxu0 %v3741
      %v3912 = vpop.f32.mrb[0].mxu0
      %v3913 = vadd.f32 0.0, %v3912
      %v3914 = vpop.f32.mrb[0].mxu0
      %3915 = vmatprep.mubr.f32.mxu0 0.0
      %3916 = vmatmul.mubr.f32.gmra.mrb[0].mxu0 %v3744
      %v3917 = vpop.f32.mrb[0].mxu0
      %v3918 = vadd.f32 0.0, %v3917
      %v3919 = vpop.f32.mrb[0].mxu0
      %3920 = vmatprep.mubr.f32.mxu0 0.0
      %3921 = vmatmul.mubr.f32.gmra.mrb[0].mxu0 %v3747
      %v3922 = vpop.f32.mrb[0].mxu0
      %v3923 = vadd.f32 0.0, %v3922
      %v3924 = vpop.f32.mrb[0].mxu0
      %3925 = vmatprep.mubr.f32.mxu0 0.0
      %3926 = vmatmul.mubr.f32.gmra.mrb[0].mxu0 %v3750
      %v3927 = vpop.f32.mrb[0].mxu0
      %v3928 = vadd.f32 0.0, %v3927
      %v3929 = vpop.f32.mrb[0].mxu0
      %3930 = vmatprep.mubr.f32.mxu0 0.0
      %3931 = vmatmul.mubr.f32.gmra.mrb[0].mxu0 %v3753
      %v3932 = vpop.f32.mrb[0].mxu0
      %v3933 = vadd.f32 0.0, %v3932
      %v3934 = vpop.f32.mrb[0].mxu0
      %3935 = vmatprep.mubr.f32.mxu0 0.0
      %3936 = vmatmul.mubr.f32.gmra.mrb[0].mxu0 %v3756
      %v3937 = vpop.f32.mrb[0].mxu0
      %v3938 = vadd.f32 0.0, %v3937
      %v3939 = vpop.f32.mrb[0].mxu0
      %3940 = vmatprep.mubr.f32.mxu0 0.0
      %3941 = vmatmul.mubr.f32.gmra.mrb[0].mxu0 %v3759
      %v3942 = vpop.f32.mrb[0].mxu0
      %v3943 = vadd.f32 0.0, %v3942
      %v3944 = vpop.f32.mrb[0].mxu0
      %3945 = vmatprep.mubr.f32.mxu0 0.0
      %3946 = vmatmul.mubr.f32.gmra.mrb[0].mxu0 %v3762
      %v3947 = vpop.f32.mrb[0].mxu0
      %v3948 = vadd.f32 0.0, %v3947
      %v3949 = vpop.f32.mrb[0].mxu0
      %3950 = vmatprep.mubr.f32.mxu0 0.0
      %3951 = vmatmul.mubr.f32.gmra.mrb[0].mxu0 %v3765
      %v3952 = vpop.f32.mrb[0].mxu0
      %v3953 = vadd.f32 0.0, %v3952
      %v3954 = vpop.f32.mrb[0].mxu0
      %3955 = vmatprep.mubr.f32.mxu0 0.0
      %3956 = vmatmul.mubr.f32.gmra.mrb[0].mxu0 %v3768
      %v3957 = vpop.f32.mrb[0].mxu0
      %v3958 = vadd.f32 0.0, %v3957
      %v3959 = vpop.f32.mrb[0].mxu0
      %3960 = vmatprep.mubr.f32.mxu0 0.0
      %3961 = vmatmul.mubr.f32.gmra.mrb[0].mxu0 %v3771
      %v3962 = vpop.f32.mrb[0].mxu0
      %v3963 = vadd.f32 0.0, %v3962
      %v3964 = vpop.f32.mrb[0].mxu0
      %3965 = vmatprep.mubr.f32.mxu0 0.0
      %3966 = vmatmul.mubr.f32.gmra.mrb[0].mxu0 %v3774
      %v3967 = vpop.f32.mrb[0].mxu0
      %v3968 = vadd.f32 0.0, %v3967
      %v3969 = vpop.f32.mrb[0].mxu0
      %3970 = vmatprep.mubr.f32.mxu0 0.0
      %3971 = vmatmul.mubr.f32.gmra.mrb[0].mxu0 %v3777
      %v3972 = vpop.f32.mrb[0].mxu0
      %v3973 = vadd.f32 0.0, %v3972
      %v3974 = vpop.f32.mrb[0].mxu0
      %3975 = vmatprep.mubr.f32.mxu0 0.0
      %3976 = vmatmul.mubr.f32.gmra.mrb[0].mxu0 %v3780
      %v3977 = vpop.f32.mrb[0].mxu0
      %v3978 = vadd.f32 0.0, %v3977
      %v3979 = vpop.f32.mrb[0].mxu0
      %3980 = vmatprep.mubr.f32.mxu0 0.0
      %3981 = vmatmul.mubr.f32.gmra.mrb[0].mxu0 %v3783
      %v3982 = vpop.f32.mrb[0].mxu0
      %v3983 = vadd.f32 0.0, %v3982
      %v3984 = vpop.f32.mrb[0].mxu0
      %3985 = vmatprep.mubr.f32.mxu0 0.0
      %3986 = vmatmul.mubr.f32.gmra.mrb[0].mxu0 %v3786
      %v3987 = vpop.f32.mrb[0].mxu0
      %v3988 = vadd.f32 0.0, %v3987
      %v3989 = vpop.f32.mrb[0].mxu0
      %3990 = vmatprep.mubr.f32.mxu0 0.0
      %3991 = vmatmul.mubr.f32.gmra.mrb[0].mxu0 %v3789
      %v3992 = vpop.f32.mrb[0].mxu0
      %v3993 = vadd.f32 0.0, %v3992
      %v3994 = vpop.f32.mrb[0].mxu0
      %3995 = vmatprep.mubr.f32.mxu0 0.0
      %3996 = vmatmul.mubr.f32.gmra.mrb[0].mxu0 %v3792
      %v3997 = vpop.f32.mrb[0].mxu0
      %v3998 = vadd.f32 0.0, %v3997
      %v3999 = vpop.f32.mrb[0].mxu0
      %4000 = vmatprep.mubr.f32.mxu0 0.0
      %4001 = vmatmul.mubr.f32.gmra.mrb[0].mxu0 %v3795
      %v4002 = vpop.f32.mrb[0].mxu0
      %v4003 = vadd.f32 0.0, %v4002
      %v4004 = vpop.f32.mrb[0].mxu0
      %4005 = vmatprep.mubr.f32.mxu0 0.0
      %4006 = vmatmul.mubr.f32.gmra.mrb[0].mxu0 %v3798
      %v4007 = vpop.f32.mrb[0].mxu0
      %v4008 = vadd.f32 0.0, %v4007
      %v4009 = vpop.f32.mrb[0].mxu0
      %4010 = vmatprep.mubr.f32.mxu0 0.0
      %4011 = vmatmul.mubr.f32.gmra.mrb[0].mxu0 %v3801
      %v4012 = vpop.f32.mrb[0].mxu0
      %v4013 = vadd.f32 0.0, %v4012
      %v4014 = vpop.f32.mrb[0].mxu0
      %4015 = vmatprep.mubr.f32.mxu0 0.0
      %4016 = vmatmul.mubr.f32.gmra.mrb[0].mxu0 %v3804
      %v4017 = vpop.f32.mrb[0].mxu0
      %v4018 = vadd.f32 0.0, %v4017
      %v4019 = vpop.f32.mrb[0].mxu0
      %4020 = vmatprep.mubr.f32.mxu0 0.0
      %4021 = vmatmul.mubr.f32.gmra.mrb[0].mxu0 %v3807
      %v4022 = vpop.f32.mrb[0].mxu0
      %v4023 = vadd.f32 0.0, %v4022
      %v4024 = vpop.f32.mrb[0].mxu0
      %4025 = vmatprep.mubr.f32.mxu0 0.0
      %4026 = vmatmul.mubr.f32.gmra.mrb[0].mxu0 %v3810
      %v4027 = vpop.f32.mrb[0].mxu0
      %v4028 = vadd.f32 0.0, %v4027
      %v4029 = vpop.f32.mrb[0].mxu0
      %4030 = vmatprep.mubr.f32.mxu0 0.0
      %4031 = vmatmul.mubr.f32.gmra.mrb[0].mxu0 %v3813
      %v4032 = vpop.f32.mrb[0].mxu0
      %v4033 = vadd.f32 0.0, %v4032
      %v4034 = vpop.f32.mrb[0].mxu0
      %4035 = vmatprep.mubr.f32.mxu0 0.0
      %4036 = vmatmul.mubr.f32.gmra.mrb[0].mxu0 %v3816
      %v4037 = vpop.f32.mrb[0].mxu0
      %v4038 = vadd.f32 0.0, %v4037
      %v4039 = vpop.f32.mrb[0].mxu0
      %4040 = vmatprep.mubr.f32.mxu0 0.0
      %4041 = vmatmul.mubr.f32.gmra.mrb[0].mxu0 %v3819
      %v4042 = vpop.f32.mrb[0].mxu0
      %v4043 = vadd.f32 0.0, %v4042
      %v4044 = vpop.f32.mrb[0].mxu0
      %4045 = vdwg.mxu0
      %4046 = vst.msk [vmem:[#allocation2] sm:$0xff] %vm3724, %v3888
      %4047 = vst.msk [vmem:[#allocation2 + $0x8] sm:$0xff] %vm3724, %v3893
      %4048 = vst.msk [vmem:[#allocation2 + $0x10] sm:$0xff] %vm3724, %v3898
      %4049 = vst.msk [vmem:[#allocation2 + $0x18] sm:$0xff] %vm3724, %v3903
      %4050 = vst.msk [vmem:[#allocation2 + $0x20] sm:$0xff] %vm3724, %v3908
      %4051 = vst.msk [vmem:[#allocation2 + $0x28] sm:$0xff] %vm3724, %v3913
      %4052 = vst.msk [vmem:[#allocation2 + $0x30] sm:$0xff] %vm3724, %v3918
      %4053 = vst.msk [vmem:[#allocation2 + $0x38] sm:$0xff] %vm3724, %v3923
      %4054 = vst.msk [vmem:[#allocation2 + $0x40] sm:$0xff] %vm3724, %v3928
      %4055 = vst.msk [vmem:[#allocation2 + $0x48] sm:$0xff] %vm3724, %v3933
      %4056 = vst.msk [vmem:[#allocation2 + $0x50] sm:$0xff] %vm3724, %v3938
      %4057 = vst.msk [vmem:[#allocation2 + $0x58] sm:$0xff] %vm3724, %v3943
      %4058 = vst.msk [vmem:[#allocation2 + $0x60] sm:$0xff] %vm3724, %v3948
      %4059 = vst.msk [vmem:[#allocation2 + $0x68] sm:$0xff] %vm3724, %v3953
      %4060 = vst.msk [vmem:[#allocation2 + $0x70] sm:$0xff] %vm3724, %v3958
      %4061 = vst.msk [vmem:[#allocation2 + $0x78] sm:$0xff] %vm3724, %v3963
      %4062 = vst.msk [vmem:[#allocation2 + $0x80] sm:$0xff] %vm3724, %v3968
      %4063 = vst.msk [vmem:[#allocation2 + $0x88] sm:$0xff] %vm3724, %v3973
      %4064 = vst.msk [vmem:[#allocation2 + $0x90] sm:$0xff] %vm3724, %v3978
      %4065 = vst.msk [vmem:[#allocation2 + $0x98] sm:$0xff] %vm3724, %v3983
      %4066 = vst.msk [vmem:[#allocation2 + $0xa0] sm:$0xff] %vm3724, %v3988
      %4067 = vst.msk [vmem:[#allocation2 + $0xa8] sm:$0xff] %vm3724, %v3993
      %4068 = vst.msk [vmem:[#allocation2 + $0xb0] sm:$0xff] %vm3724, %v3998
      %4069 = vst.msk [vmem:[#allocation2 + $0xb8] sm:$0xff] %vm3724, %v4003
      %4070 = vst.msk [vmem:[#allocation2 + $0xc0] sm:$0xff] %vm3724, %v4008
      %4071 = vst.msk [vmem:[#allocation2 + $0xc8] sm:$0xff] %vm3724, %v4013
      %4072 = vst.msk [vmem:[#allocation2 + $0xd0] sm:$0xff] %vm3724, %v4018
      %4073 = vst.msk [vmem:[#allocation2 + $0xd8] sm:$0xff] %vm3724, %v4023
      %4074 = vst.msk [vmem:[#allocation2 + $0xe0] sm:$0xff] %vm3724, %v4028
      %4075 = vst.msk [vmem:[#allocation2 + $0xe8] sm:$0xff] %vm3724, %v4033
      %4076 = vst.msk [vmem:[#allocation2 + $0xf0] sm:$0xff] %vm3724, %v4038
      %4077 = vst.msk [vmem:[#allocation2 + $0xf8] sm:$0xff] %vm3724, %v4043
      %v4078 = vld [vmem:[#allocation2 + $0x40] sm:$0xff]
      %v4079 = vld [vmem:[#allocation2 + $0x48] sm:$0xff]
      %v4080 = vld [vmem:[#allocation2 + $0x50] sm:$0xff]
      %v4081 = vld [vmem:[#allocation2 + $0x58] sm:$0xff]
      %v4082 = vld [vmem:[#allocation2 + $0x60] sm:$0xff]
      %v4083 = vld [vmem:[#allocation2 + $0x68] sm:$0xff]
      %v4084 = vld [vmem:[#allocation2 + $0x70] sm:$0xff]
      %v4085 = vld [vmem:[#allocation2 + $0x78] sm:$0xff]
      %v4086 = vld [vmem:[#allocation2 + $0x80] sm:$0xff]
      %v4087 = vld [vmem:[#allocation2 + $0x88] sm:$0xff]
      %v4088 = vld [vmem:[#allocation2 + $0x90] sm:$0xff]
      %v4089 = vld [vmem:[#allocation2 + $0x98] sm:$0xff]
      %v4090 = vld [vmem:[#allocation2 + $0xa0] sm:$0xff]
      %v4091 = vld [vmem:[#allocation2 + $0xa8] sm:$0xff]
      %v4092 = vld [vmem:[#allocation2 + $0xb0] sm:$0xff]
      %v4093 = vld [vmem:[#allocation2 + $0xb8] sm:$0xff]
      %v4094 = vld [vmem:[#allocation2 + $0xc0] sm:$0xff]
      %v4095 = vld [vmem:[#allocation2 + $0xc8] sm:$0xff]
      %v4096 = vld [vmem:[#allocation2 + $0xd0] sm:$0xff]
      %v4097 = vld [vmem:[#allocation2 + $0xd8] sm:$0xff]
      %v4098 = vld [vmem:[#allocation2 + $0xe0] sm:$0xff]
      %v4099 = vld [vmem:[#allocation2 + $0xe8] sm:$0xff]
      %v4100 = vld [vmem:[#allocation2 + $0xf0] sm:$0xff]
      %v4101 = vld [vmem:[#allocation2 + $0xf8] sm:$0xff]
      %v4102 = vld [vmem:[%s2] sm:$0xff]
      %v4103 = vld [vmem:[%s2 + $0x8] sm:$0xff]
      %v4104 = vld [vmem:[%s2 + $0x10] sm:$0xff]
      %v4105 = vld [vmem:[%s2 + $0x18] sm:$0xff]
      %v4106 = vld [vmem:[%s2 + $0x20] sm:$0xff]
      %v4107 = vld [vmem:[%s2 + $0x28] sm:$0xff]
      %v4108 = vld [vmem:[%s2 + $0x30] sm:$0xff]
      %v4109 = vld [vmem:[%s2 + $0x38] sm:$0xff]
      %4110 = vmatprep.subr.mxu0 0.0
      %4111 = vmatpush1.msra.mxu0 %v4102
      %4112 = vmatprep.subr.mxu0 0.0
      %4113 = vmatpush1.msra.mxu0 %v4103
      %4114 = vmatprep.subr.mxu0 0.0
      %4115 = vmatpush1.msra.mxu0 %v4104
      %4116 = vmatprep.subr.mxu0 0.0
      %4117 = vmatpush1.msra.mxu0 %v4105
      %4118 = vmatprep.subr.mxu0 0.0
      %4119 = vmatpush1.msra.mxu0 %v4106
      %4120 = vmatprep.subr.mxu0 0.0
      %4121 = vmatpush1.msra.mxu0 %v4107
      %4122 = vmatprep.subr.mxu0 0.0
      %4123 = vmatpush1.msra.mxu0 %v4108
      %4124 = vmatprep.subr.mxu0 0.0
      %4125 = vmatpush1.msra.mxu0 %v4109
      %4126 = vmatprep.subr.mxu0 0.0
      %4127 = vmatpush1.msra.mxu0 0.0
      %4128 = vmatprep.subr.mxu0 0.0
      %4129 = vmatpush1.msra.mxu0 0.0
      %4130 = vmatprep.subr.mxu0 0.0
      %4131 = vmatpush1.msra.mxu0 0.0
      %4132 = vmatprep.subr.mxu0 0.0
      %4133 = vmatpush1.msra.mxu0 0.0
      %4134 = vmatprep.subr.mxu0 0.0
      %4135 = vmatpush1.msra.mxu0 0.0
      %4136 = vmatprep.subr.mxu0 0.0
      %4137 = vmatpush1.msra.mxu0 0.0
      %4138 = vmatprep.subr.mxu0 0.0
      %4139 = vmatpush1.msra.mxu0 0.0
      %4140 = vmatprep.subr.mxu0 0.0
      %4141 = vmatpush1.msra.mxu0 0.0
      %4142 = vmatprep.subr.mxu0 0.0
      %4143 = vmatpush1.msra.mxu0 0.0
      %4144 = vmatprep.subr.mxu0 0.0
      %4145 = vmatpush1.msra.mxu0 0.0
      %4146 = vmatprep.subr.mxu0 0.0
      %4147 = vmatpush1.msra.mxu0 0.0
      %4148 = vmatprep.subr.mxu0 0.0
      %4149 = vmatpush1.msra.mxu0 0.0
      %4150 = vmatprep.subr.mxu0 0.0
      %4151 = vmatpush1.msra.mxu0 0.0
      %4152 = vmatprep.subr.mxu0 0.0
      %4153 = vmatpush1.msra.mxu0 0.0
      %4154 = vmatprep.subr.mxu0 0.0
      %4155 = vmatpush1.msra.mxu0 0.0
      %4156 = vmatprep.subr.mxu0 0.0
      %4157 = vmatpush1.msra.mxu0 0.0
      %4158 = vmatprep.subr.mxu0 0.0
      %4159 = vmatpush1.msra.mxu0 0.0
      %4160 = vmatprep.subr.mxu0 0.0
      %4161 = vmatpush1.msra.mxu0 0.0
      %4162 = vmatprep.subr.mxu0 0.0
      %4163 = vmatpush1.msra.mxu0 0.0
      %4164 = vmatprep.subr.mxu0 0.0
      %4165 = vmatpush1.msra.mxu0 0.0
      %4166 = vmatprep.subr.mxu0 0.0
      %4167 = vmatpush1.msra.mxu0 0.0
      %4168 = vmatprep.subr.mxu0 0.0
      %4169 = vmatpush1.msra.mxu0 0.0
      %4170 = vmatprep.subr.mxu0 0.0
      %4171 = vmatpush1.msra.mxu0 0.0
      %4172 = vmatprep.subr.mxu0 0.0
      %4173 = vmatpush1.msra.mxu0 0.0
      %4174 = vmatprep.mubr.f32.mxu0 0.0
      %4175 = vmatmul.mubr.f32.gmra.mrb[0].mxu0 %v3726
      %v4176 = vpop.f32.mrb[0].mxu0
      %v4177 = vadd.f32 0.0, %v4176
      %v4178 = vpop.f32.mrb[0].mxu0
      %4179 = vmatprep.mubr.f32.mxu0 0.0
      %4180 = vmatmul.mubr.f32.gmra.mrb[0].mxu0 %v3729
      %v4181 = vpop.f32.mrb[0].mxu0
      %v4182 = vadd.f32 0.0, %v4181
      %v4183 = vpop.f32.mrb[0].mxu0
      %4184 = vmatprep.mubr.f32.mxu0 0.0
      %4185 = vmatmul.mubr.f32.gmra.mrb[0].mxu0 %v3732
      %v4186 = vpop.f32.mrb[0].mxu0
      %v4187 = vadd.f32 0.0, %v4186
      %v4188 = vpop.f32.mrb[0].mxu0
      %4189 = vmatprep.mubr.f32.mxu0 0.0
      %4190 = vmatmul.mubr.f32.gmra.mrb[0].mxu0 %v3735
      %v4191 = vpop.f32.mrb[0].mxu0
      %v4192 = vadd.f32 0.0, %v4191
      %v4193 = vpop.f32.mrb[0].mxu0
      %4194 = vmatprep.mubr.f32.mxu0 0.0
      %4195 = vmatmul.mubr.f32.gmra.mrb[0].mxu0 %v3738
      %v4196 = vpop.f32.mrb[0].mxu0
      %v4197 = vadd.f32 0.0, %v4196
      %v4198 = vpop.f32.mrb[0].mxu0
      %4199 = vmatprep.mubr.f32.mxu0 0.0
      %4200 = vmatmul.mubr.f32.gmra.mrb[0].mxu0 %v3741
      %v4201 = vpop.f32.mrb[0].mxu0
      %v4202 = vadd.f32 0.0, %v4201
      %v4203 = vpop.f32.mrb[0].mxu0
      %4204 = vmatprep.mubr.f32.mxu0 0.0
      %4205 = vmatmul.mubr.f32.gmra.mrb[0].mxu0 %v3744
      %v4206 = vpop.f32.mrb[0].mxu0
      %v4207 = vadd.f32 0.0, %v4206
      %v4208 = vpop.f32.mrb[0].mxu0
      %4209 = vmatprep.mubr.f32.mxu0 0.0
      %4210 = vmatmul.mubr.f32.gmra.mrb[0].mxu0 %v3747
      %v4211 = vpop.f32.mrb[0].mxu0
      %v4212 = vadd.f32 0.0, %v4211
      %v4213 = vpop.f32.mrb[0].mxu0
      %4214 = vmatprep.mubr.f32.mxu0 0.0
      %4215 = vmatmul.mubr.f32.gmra.mrb[0].mxu0 %v3750
      %v4216 = vpop.f32.mrb[0].mxu0
      %v4217 = vadd.f32 0.0, %v4216
      %v4218 = vpop.f32.mrb[0].mxu0
      %4219 = vmatprep.mubr.f32.mxu0 0.0
      %4220 = vmatmul.mubr.f32.gmra.mrb[0].mxu0 %v3753
      %v4221 = vpop.f32.mrb[0].mxu0
      %v4222 = vadd.f32 0.0, %v4221
      %v4223 = vpop.f32.mrb[0].mxu0
      %4224 = vmatprep.mubr.f32.mxu0 0.0
      %4225 = vmatmul.mubr.f32.gmra.mrb[0].mxu0 %v3756
      %v4226 = vpop.f32.mrb[0].mxu0
      %v4227 = vadd.f32 0.0, %v4226
      %v4228 = vpop.f32.mrb[0].mxu0
      %4229 = vmatprep.mubr.f32.mxu0 0.0
      %4230 = vmatmul.mubr.f32.gmra.mrb[0].mxu0 %v3759
      %v4231 = vpop.f32.mrb[0].mxu0
      %v4232 = vadd.f32 0.0, %v4231
      %v4233 = vpop.f32.mrb[0].mxu0
      %4234 = vmatprep.mubr.f32.mxu0 0.0
      %4235 = vmatmul.mubr.f32.gmra.mrb[0].mxu0 %v3762
      %v4236 = vpop.f32.mrb[0].mxu0
      %v4237 = vadd.f32 0.0, %v4236
      %v4238 = vpop.f32.mrb[0].mxu0
      %4239 = vmatprep.mubr.f32.mxu0 0.0
      %4240 = vmatmul.mubr.f32.gmra.mrb[0].mxu0 %v3765
      %v4241 = vpop.f32.mrb[0].mxu0
      %v4242 = vadd.f32 0.0, %v4241
      %v4243 = vpop.f32.mrb[0].mxu0
      %4244 = vmatprep.mubr.f32.mxu0 0.0
      %4245 = vmatmul.mubr.f32.gmra.mrb[0].mxu0 %v3768
      %v4246 = vpop.f32.mrb[0].mxu0
      %v4247 = vadd.f32 0.0, %v4246
      %v4248 = vpop.f32.mrb[0].mxu0
      %4249 = vmatprep.mubr.f32.mxu0 0.0
      %4250 = vmatmul.mubr.f32.gmra.mrb[0].mxu0 %v3771
      %v4251 = vpop.f32.mrb[0].mxu0
      %v4252 = vadd.f32 0.0, %v4251
      %v4253 = vpop.f32.mrb[0].mxu0
      %4254 = vmatprep.mubr.f32.mxu0 0.0
      %4255 = vmatmul.mubr.f32.gmra.mrb[0].mxu0 %v3774
      %v4256 = vpop.f32.mrb[0].mxu0
      %v4257 = vadd.f32 0.0, %v4256
      %v4258 = vpop.f32.mrb[0].mxu0
      %4259 = vmatprep.mubr.f32.mxu0 0.0
      %4260 = vmatmul.mubr.f32.gmra.mrb[0].mxu0 %v3777
      %v4261 = vpop.f32.mrb[0].mxu0
      %v4262 = vadd.f32 0.0, %v4261
      %v4263 = vpop.f32.mrb[0].mxu0
      %4264 = vmatprep.mubr.f32.mxu0 0.0
      %4265 = vmatmul.mubr.f32.gmra.mrb[0].mxu0 %v3780
      %v4266 = vpop.f32.mrb[0].mxu0
      %v4267 = vadd.f32 0.0, %v4266
      %v4268 = vpop.f32.mrb[0].mxu0
      %4269 = vmatprep.mubr.f32.mxu0 0.0
      %4270 = vmatmul.mubr.f32.gmra.mrb[0].mxu0 %v3783
      %v4271 = vpop.f32.mrb[0].mxu0
      %v4272 = vadd.f32 0.0, %v4271
      %v4273 = vpop.f32.mrb[0].mxu0
      %4274 = vmatprep.mubr.f32.mxu0 0.0
      %4275 = vmatmul.mubr.f32.gmra.mrb[0].mxu0 %v3786
      %v4276 = vpop.f32.mrb[0].mxu0
      %v4277 = vadd.f32 0.0, %v4276
      %v4278 = vpop.f32.mrb[0].mxu0
      %4279 = vmatprep.mubr.f32.mxu0 0.0
      %4280 = vmatmul.mubr.f32.gmra.mrb[0].mxu0 %v3789
      %v4281 = vpop.f32.mrb[0].mxu0
      %v4282 = vadd.f32 0.0, %v4281
      %v4283 = vpop.f32.mrb[0].mxu0
      %4284 = vmatprep.mubr.f32.mxu0 0.0
      %4285 = vmatmul.mubr.f32.gmra.mrb[0].mxu0 %v3792
      %v4286 = vpop.f32.mrb[0].mxu0
      %v4287 = vadd.f32 0.0, %v4286
      %v4288 = vpop.f32.mrb[0].mxu0
      %4289 = vmatprep.mubr.f32.mxu0 0.0
      %4290 = vmatmul.mubr.f32.gmra.mrb[0].mxu0 %v3795
      %v4291 = vpop.f32.mrb[0].mxu0
      %v4292 = vadd.f32 0.0, %v4291
      %v4293 = vpop.f32.mrb[0].mxu0
      %4294 = vdwg.mxu0
      %v4295 = vadd.f32 %v4078, %v4177
      %v4296 = vadd.f32 %v4079, %v4182
      %v4297 = vadd.f32 %v4080, %v4187
      %v4298 = vadd.f32 %v4081, %v4192
      %v4299 = vadd.f32 %v4082, %v4197
      %v4300 = vadd.f32 %v4083, %v4202
      %v4301 = vadd.f32 %v4084, %v4207
      %v4302 = vadd.f32 %v4085, %v4212
      %v4303 = vadd.f32 %v4086, %v4217
      %v4304 = vadd.f32 %v4087, %v4222
      %v4305 = vadd.f32 %v4088, %v4227
      %v4306 = vadd.f32 %v4089, %v4232
      %v4307 = vadd.f32 %v4090, %v4237
      %v4308 = vadd.f32 %v4091, %v4242
      %v4309 = vadd.f32 %v4092, %v4247
      %v4310 = vadd.f32 %v4093, %v4252
      %v4311 = vadd.f32 %v4094, %v4257
      %v4312 = vadd.f32 %v4095, %v4262
      %v4313 = vadd.f32 %v4096, %v4267
      %v4314 = vadd.f32 %v4097, %v4272
      %v4315 = vadd.f32 %v4098, %v4277
      %v4316 = vadd.f32 %v4099, %v4282
      %v4317 = vadd.f32 %v4100, %v4287
      %v4318 = vadd.f32 %v4101, %v4292
      %4319 = vst.msk [vmem:[#allocation2 + $0x40] sm:$0xff] %vm3724, %v4295
      %4320 = vst.msk [vmem:[#allocation2 + $0x48] sm:$0xff] %vm3724, %v4296
      %4321 = vst.msk [vmem:[#allocation2 + $0x50] sm:$0xff] %vm3724, %v4297
      %4322 = vst.msk [vmem:[#allocation2 + $0x58] sm:$0xff] %vm3724, %v4298
      %4323 = vst.msk [vmem:[#allocation2 + $0x60] sm:$0xff] %vm3724, %v4299
      %4324 = vst.msk [vmem:[#allocation2 + $0x68] sm:$0xff] %vm3724, %v4300
      %4325 = vst.msk [vmem:[#allocation2 + $0x70] sm:$0xff] %vm3724, %v4301
      %4326 = vst.msk [vmem:[#allocation2 + $0x78] sm:$0xff] %vm3724, %v4302
      %4327 = vst.msk [vmem:[#allocation2 + $0x80] sm:$0xff] %vm3724, %v4303
      %4328 = vst.msk [vmem:[#allocation2 + $0x88] sm:$0xff] %vm3724, %v4304
      %4329 = vst.msk [vmem:[#allocation2 + $0x90] sm:$0xff] %vm3724, %v4305
      %4330 = vst.msk [vmem:[#allocation2 + $0x98] sm:$0xff] %vm3724, %v4306
      %4331 = vst.msk [vmem:[#allocation2 + $0xa0] sm:$0xff] %vm3724, %v4307
      %4332 = vst.msk [vmem:[#allocation2 + $0xa8] sm:$0xff] %vm3724, %v4308
      %4333 = vst.msk [vmem:[#allocation2 + $0xb0] sm:$0xff] %vm3724, %v4309
      %4334 = vst.msk [vmem:[#allocation2 + $0xb8] sm:$0xff] %vm3724, %v4310
      %4335 = vst.msk [vmem:[#allocation2 + $0xc0] sm:$0xff] %vm3724, %v4311
      %4336 = vst.msk [vmem:[#allocation2 + $0xc8] sm:$0xff] %vm3724, %v4312
      %4337 = vst.msk [vmem:[#allocation2 + $0xd0] sm:$0xff] %vm3724, %v4313
      %4338 = vst.msk [vmem:[#allocation2 + $0xd8] sm:$0xff] %vm3724, %v4314
      %4339 = vst.msk [vmem:[#allocation2 + $0xe0] sm:$0xff] %vm3724, %v4315
      %4340 = vst.msk [vmem:[#allocation2 + $0xe8] sm:$0xff] %vm3724, %v4316
      %4341 = vst.msk [vmem:[#allocation2 + $0xf0] sm:$0xff] %vm3724, %v4317
      %4342 = vst.msk [vmem:[#allocation2 + $0xf8] sm:$0xff] %vm3724, %v4318
      %v4343 = vld [vmem:[#allocation2] sm:$0xff]
      %v4344 = vld [vmem:[#allocation2 + $0x8] sm:$0xff]
      %v4345 = vld [vmem:[#allocation2 + $0x10] sm:$0xff]
      %v4346 = vld [vmem:[#allocation2 + $0x18] sm:$0xff]
      %v4347 = vld [vmem:[#allocation2 + $0x20] sm:$0xff]
      %v4348 = vld [vmem:[#allocation2 + $0x28] sm:$0xff]
      %v4349 = vld [vmem:[#allocation2 + $0x30] sm:$0xff]
      %v4350 = vld [vmem:[#allocation2 + $0x38] sm:$0xff]
      %v4351 = vld [vmem:[#allocation2 + $0x40] sm:$0xff]
      %v4352 = vld [vmem:[#allocation2 + $0x48] sm:$0xff]
      %v4353 = vld [vmem:[#allocation2 + $0x50] sm:$0xff]
      %v4354 = vld [vmem:[#allocation2 + $0x58] sm:$0xff]
      %v4355 = vld [vmem:[#allocation2 + $0x60] sm:$0xff]
      %v4356 = vld [vmem:[#allocation2 + $0x68] sm:$0xff]
      %v4357 = vld [vmem:[#allocation2 + $0x70] sm:$0xff]
      %v4358 = vld [vmem:[#allocation2 + $0x78] sm:$0xff]
      %v4359 = vld [vmem:[#allocation2 + $0x80] sm:$0xff]
      %v4360 = vld [vmem:[#allocation2 + $0x88] sm:$0xff]
      %v4361 = vld [vmem:[#allocation2 + $0x90] sm:$0xff]
      %v4362 = vld [vmem:[#allocation2 + $0x98] sm:$0xff]
      %v4363 = vld [vmem:[#allocation2 + $0xa0] sm:$0xff]
      %v4364 = vld [vmem:[#allocation2 + $0xa8] sm:$0xff]
      %v4365 = vld [vmem:[#allocation2 + $0xb0] sm:$0xff]
      %v4366 = vld [vmem:[#allocation2 + $0xb8] sm:$0xff]
      %s4367 = scalar_lea.vmem %s2, 128
      %v4368 = vld [vmem:[%s4367] sm:$0xff]
      %v4369 = vld [vmem:[%s4367 + $0x8] sm:$0xff]
      %v4370 = vld [vmem:[%s4367 + $0x10] sm:$0xff]
      %v4371 = vld [vmem:[%s4367 + $0x18] sm:$0xff]
      %v4372 = vld [vmem:[%s4367 + $0x20] sm:$0xff]
      %v4373 = vld [vmem:[%s4367 + $0x28] sm:$0xff]
      %v4374 = vld [vmem:[%s4367 + $0x30] sm:$0xff]
      %v4375 = vld [vmem:[%s4367 + $0x38] sm:$0xff]
      %4376 = vmatprep.subr.mxu0 0.0
      %4377 = vmatpush1.msra.mxu0 %v4368
      %4378 = vmatprep.subr.mxu0 0.0
      %4379 = vmatpush1.msra.mxu0 %v4369
      %4380 = vmatprep.subr.mxu0 0.0
      %4381 = vmatpush1.msra.mxu0 %v4370
      %4382 = vmatprep.subr.mxu0 0.0
      %4383 = vmatpush1.msra.mxu0 %v4371
      %4384 = vmatprep.subr.mxu0 0.0
      %4385 = vmatpush1.msra.mxu0 %v4372
      %4386 = vmatprep.subr.mxu0 0.0
      %4387 = vmatpush1.msra.mxu0 %v4373
      %4388 = vmatprep.subr.mxu0 0.0
      %4389 = vmatpush1.msra.mxu0 %v4374
      %4390 = vmatprep.subr.mxu0 0.0
      %4391 = vmatpush1.msra.mxu0 %v4375
      %4392 = vmatprep.subr.mxu0 0.0
      %4393 = vmatpush1.msra.mxu0 0.0
      %4394 = vmatprep.subr.mxu0 0.0
      %4395 = vmatpush1.msra.mxu0 0.0
      %4396 = vmatprep.subr.mxu0 0.0
      %4397 = vmatpush1.msra.mxu0 0.0
      %4398 = vmatprep.subr.mxu0 0.0
      %4399 = vmatpush1.msra.mxu0 0.0
      %4400 = vmatprep.subr.mxu0 0.0
      %4401 = vmatpush1.msra.mxu0 0.0
      %4402 = vmatprep.subr.mxu0 0.0
      %4403 = vmatpush1.msra.mxu0 0.0
      %4404 = vmatprep.subr.mxu0 0.0
      %4405 = vmatpush1.msra.mxu0 0.0
      %4406 = vmatprep.subr.mxu0 0.0
      %4407 = vmatpush1.msra.mxu0 0.0
      %4408 = vmatprep.subr.mxu0 0.0
      %4409 = vmatpush1.msra.mxu0 0.0
      %4410 = vmatprep.subr.mxu0 0.0
      %4411 = vmatpush1.msra.mxu0 0.0
      %4412 = vmatprep.subr.mxu0 0.0
      %4413 = vmatpush1.msra.mxu0 0.0
      %4414 = vmatprep.subr.mxu0 0.0
      %4415 = vmatpush1.msra.mxu0 0.0
      %4416 = vmatprep.subr.mxu0 0.0
      %4417 = vmatpush1.msra.mxu0 0.0
      %4418 = vmatprep.subr.mxu0 0.0
      %4419 = vmatpush1.msra.mxu0 0.0
      %4420 = vmatprep.subr.mxu0 0.0
      %4421 = vmatpush1.msra.mxu0 0.0
      %4422 = vmatprep.subr.mxu0 0.0
      %4423 = vmatpush1.msra.mxu0 0.0
      %4424 = vmatprep.subr.mxu0 0.0
      %4425 = vmatpush1.msra.mxu0 0.0
      %4426 = vmatprep.subr.mxu0 0.0
      %4427 = vmatpush1.msra.mxu0 0.0
      %4428 = vmatprep.subr.mxu0 0.0
      %4429 = vmatpush1.msra.mxu0 0.0
      %4430 = vmatprep.subr.mxu0 0.0
      %4431 = vmatpush1.msra.mxu0 0.0
      %4432 = vmatprep.subr.mxu0 0.0
      %4433 = vmatpush1.msra.mxu0 0.0
      %4434 = vmatprep.subr.mxu0 0.0
      %4435 = vmatpush1.msra.mxu0 0.0
      %4436 = vmatprep.subr.mxu0 0.0
      %4437 = vmatpush1.msra.mxu0 0.0
      %4438 = vmatprep.subr.mxu0 0.0
      %4439 = vmatpush1.msra.mxu0 0.0
      %4440 = vmatprep.mubr.f32.mxu0 0.0
      %4441 = vmatmul.mubr.f32.gmra.mrb[0].mxu0 %v3750
      %v4442 = vpop.f32.mrb[0].mxu0
      %v4443 = vadd.f32 0.0, %v4442
      %v4444 = vpop.f32.mrb[0].mxu0
      %4445 = vmatprep.mubr.f32.mxu0 0.0
      %4446 = vmatmul.mubr.f32.gmra.mrb[0].mxu0 %v3753
      %v4447 = vpop.f32.mrb[0].mxu0
      %v4448 = vadd.f32 0.0, %v4447
      %v4449 = vpop.f32.mrb[0].mxu0
      %4450 = vmatprep.mubr.f32.mxu0 0.0
      %4451 = vmatmul.mubr.f32.gmra.mrb[0].mxu0 %v3756
      %v4452 = vpop.f32.mrb[0].mxu0
      %v4453 = vadd.f32 0.0, %v4452
      %v4454 = vpop.f32.mrb[0].mxu0
      %4455 = vmatprep.mubr.f32.mxu0 0.0
      %4456 = vmatmul.mubr.f32.gmra.mrb[0].mxu0 %v3759
      %v4457 = vpop.f32.mrb[0].mxu0
      %v4458 = vadd.f32 0.0, %v4457
      %v4459 = vpop.f32.mrb[0].mxu0
      %4460 = vmatprep.mubr.f32.mxu0 0.0
      %4461 = vmatmul.mubr.f32.gmra.mrb[0].mxu0 %v3762
      %v4462 = vpop.f32.mrb[0].mxu0
      %v4463 = vadd.f32 0.0, %v4462
      %v4464 = vpop.f32.mrb[0].mxu0
      %4465 = vmatprep.mubr.f32.mxu0 0.0
      %4466 = vmatmul.mubr.f32.gmra.mrb[0].mxu0 %v3765
      %v4467 = vpop.f32.mrb[0].mxu0
      %v4468 = vadd.f32 0.0, %v4467
      %v4469 = vpop.f32.mrb[0].mxu0
      %4470 = vmatprep.mubr.f32.mxu0 0.0
      %4471 = vmatmul.mubr.f32.gmra.mrb[0].mxu0 %v3768
      %v4472 = vpop.f32.mrb[0].mxu0
      %v4473 = vadd.f32 0.0, %v4472
      %v4474 = vpop.f32.mrb[0].mxu0
      %4475 = vmatprep.mubr.f32.mxu0 0.0
      %4476 = vmatmul.mubr.f32.gmra.mrb[0].mxu0 %v3771
      %v4477 = vpop.f32.mrb[0].mxu0
      %v4478 = vadd.f32 0.0, %v4477
      %v4479 = vpop.f32.mrb[0].mxu0
      %4480 = vmatprep.mubr.f32.mxu0 0.0
      %4481 = vmatmul.mubr.f32.gmra.mrb[0].mxu0 %v3774
      %v4482 = vpop.f32.mrb[0].mxu0
      %v4483 = vadd.f32 0.0, %v4482
      %v4484 = vpop.f32.mrb[0].mxu0
      %4485 = vmatprep.mubr.f32.mxu0 0.0
      %4486 = vmatmul.mubr.f32.gmra.mrb[0].mxu0 %v3777
      %v4487 = vpop.f32.mrb[0].mxu0
      %v4488 = vadd.f32 0.0, %v4487
      %v4489 = vpop.f32.mrb[0].mxu0
      %4490 = vmatprep.mubr.f32.mxu0 0.0
      %4491 = vmatmul.mubr.f32.gmra.mrb[0].mxu0 %v3780
      %v4492 = vpop.f32.mrb[0].mxu0
      %v4493 = vadd.f32 0.0, %v4492
      %v4494 = vpop.f32.mrb[0].mxu0
      %4495 = vmatprep.mubr.f32.mxu0 0.0
      %4496 = vmatmul.mubr.f32.gmra.mrb[0].mxu0 %v3783
      %v4497 = vpop.f32.mrb[0].mxu0
      %v4498 = vadd.f32 0.0, %v4497
      %v4499 = vpop.f32.mrb[0].mxu0
      %4500 = vmatprep.mubr.f32.mxu0 0.0
      %4501 = vmatmul.mubr.f32.gmra.mrb[0].mxu0 %v3786
      %v4502 = vpop.f32.mrb[0].mxu0
      %v4503 = vadd.f32 0.0, %v4502
      %v4504 = vpop.f32.mrb[0].mxu0
      %4505 = vmatprep.mubr.f32.mxu0 0.0
      %4506 = vmatmul.mubr.f32.gmra.mrb[0].mxu0 %v3789
      %v4507 = vpop.f32.mrb[0].mxu0
      %v4508 = vadd.f32 0.0, %v4507
      %v4509 = vpop.f32.mrb[0].mxu0
      %4510 = vmatprep.mubr.f32.mxu0 0.0
      %4511 = vmatmul.mubr.f32.gmra.mrb[0].mxu0 %v3792
      %v4512 = vpop.f32.mrb[0].mxu0
      %v4513 = vadd.f32 0.0, %v4512
      %v4514 = vpop.f32.mrb[0].mxu0
      %4515 = vmatprep.mubr.f32.mxu0 0.0
      %4516 = vmatmul.mubr.f32.gmra.mrb[0].mxu0 %v3795
      %v4517 = vpop.f32.mrb[0].mxu0
      %v4518 = vadd.f32 0.0, %v4517
      %v4519 = vpop.f32.mrb[0].mxu0
      %4520 = vmatprep.mubr.f32.mxu0 0.0
      %4521 = vmatmul.mubr.f32.gmra.mrb[0].mxu0 %v3798
      %v4522 = vpop.f32.mrb[0].mxu0
      %v4523 = vadd.f32 0.0, %v4522
      %v4524 = vpop.f32.mrb[0].mxu0
      %4525 = vmatprep.mubr.f32.mxu0 0.0
      %4526 = vmatmul.mubr.f32.gmra.mrb[0].mxu0 %v3801
      %v4527 = vpop.f32.mrb[0].mxu0
      %v4528 = vadd.f32 0.0, %v4527
      %v4529 = vpop.f32.mrb[0].mxu0
      %4530 = vmatprep.mubr.f32.mxu0 0.0
      %4531 = vmatmul.mubr.f32.gmra.mrb[0].mxu0 %v3804
      %v4532 = vpop.f32.mrb[0].mxu0
      %v4533 = vadd.f32 0.0, %v4532
      %v4534 = vpop.f32.mrb[0].mxu0
      %4535 = vmatprep.mubr.f32.mxu0 0.0
      %4536 = vmatmul.mubr.f32.gmra.mrb[0].mxu0 %v3807
      %v4537 = vpop.f32.mrb[0].mxu0
      %v4538 = vadd.f32 0.0, %v4537
      %v4539 = vpop.f32.mrb[0].mxu0
      %4540 = vmatprep.mubr.f32.mxu0 0.0
      %4541 = vmatmul.mubr.f32.gmra.mrb[0].mxu0 %v3810
      %v4542 = vpop.f32.mrb[0].mxu0
      %v4543 = vadd.f32 0.0, %v4542
      %v4544 = vpop.f32.mrb[0].mxu0
      %4545 = vmatprep.mubr.f32.mxu0 0.0
      %4546 = vmatmul.mubr.f32.gmra.mrb[0].mxu0 %v3813
      %v4547 = vpop.f32.mrb[0].mxu0
      %v4548 = vadd.f32 0.0, %v4547
      %v4549 = vpop.f32.mrb[0].mxu0
      %4550 = vmatprep.mubr.f32.mxu0 0.0
      %4551 = vmatmul.mubr.f32.gmra.mrb[0].mxu0 %v3816
      %v4552 = vpop.f32.mrb[0].mxu0
      %v4553 = vadd.f32 0.0, %v4552
      %v4554 = vpop.f32.mrb[0].mxu0
      %4555 = vmatprep.mubr.f32.mxu0 0.0
      %4556 = vmatmul.mubr.f32.gmra.mrb[0].mxu0 %v3819
      %v4557 = vpop.f32.mrb[0].mxu0
      %v4558 = vadd.f32 0.0, %v4557
      %v4559 = vpop.f32.mrb[0].mxu0
      %4560 = vdwg.mxu0
      %v4561 = vadd.f32 %v4343, %v4443
      %v4562 = vadd.f32 %v4344, %v4448
      %v4563 = vadd.f32 %v4345, %v4453
      %v4564 = vadd.f32 %v4346, %v4458
      %v4565 = vadd.f32 %v4347, %v4463
      %v4566 = vadd.f32 %v4348, %v4468
      %v4567 = vadd.f32 %v4349, %v4473
      %v4568 = vadd.f32 %v4350, %v4478
      %v4569 = vadd.f32 %v4351, %v4483
      %v4570 = vadd.f32 %v4352, %v4488
      %v4571 = vadd.f32 %v4353, %v4493
      %v4572 = vadd.f32 %v4354, %v4498
      %v4573 = vadd.f32 %v4355, %v4503
      %v4574 = vadd.f32 %v4356, %v4508
      %v4575 = vadd.f32 %v4357, %v4513
      %v4576 = vadd.f32 %v4358, %v4518
      %v4577 = vadd.f32 %v4359, %v4523
      %v4578 = vadd.f32 %v4360, %v4528
      %v4579 = vadd.f32 %v4361, %v4533
      %v4580 = vadd.f32 %v4362, %v4538
      %v4581 = vadd.f32 %v4363, %v4543
      %v4582 = vadd.f32 %v4364, %v4548
      %v4583 = vadd.f32 %v4365, %v4553
      %v4584 = vadd.f32 %v4366, %v4558
      %4585 = vst.msk [vmem:[#allocation2] sm:$0xff] %vm3724, %v4561
      %4586 = vst.msk [vmem:[#allocation2 + $0x8] sm:$0xff] %vm3724, %v4562
      %4587 = vst.msk [vmem:[#allocation2 + $0x10] sm:$0xff] %vm3724, %v4563
      %4588 = vst.msk [vmem:[#allocation2 + $0x18] sm:$0xff] %vm3724, %v4564
      %4589 = vst.msk [vmem:[#allocation2 + $0x20] sm:$0xff] %vm3724, %v4565
      %4590 = vst.msk [vmem:[#allocation2 + $0x28] sm:$0xff] %vm3724, %v4566
      %4591 = vst.msk [vmem:[#allocation2 + $0x30] sm:$0xff] %vm3724, %v4567
      %4592 = vst.msk [vmem:[#allocation2 + $0x38] sm:$0xff] %vm3724, %v4568
      %4593 = vst.msk [vmem:[#allocation2 + $0x40] sm:$0xff] %vm3724, %v4569
      %4594 = vst.msk [vmem:[#allocation2 + $0x48] sm:$0xff] %vm3724, %v4570
      %4595 = vst.msk [vmem:[#allocation2 + $0x50] sm:$0xff] %vm3724, %v4571
      %4596 = vst.msk [vmem:[#allocation2 + $0x58] sm:$0xff] %vm3724, %v4572
      %4597 = vst.msk [vmem:[#allocation2 + $0x60] sm:$0xff] %vm3724, %v4573
      %4598 = vst.msk [vmem:[#allocation2 + $0x68] sm:$0xff] %vm3724, %v4574
      %4599 = vst.msk [vmem:[#allocation2 + $0x70] sm:$0xff] %vm3724, %v4575
      %4600 = vst.msk [vmem:[#allocation2 + $0x78] sm:$0xff] %vm3724, %v4576
      %4601 = vst.msk [vmem:[#allocation2 + $0x80] sm:$0xff] %vm3724, %v4577
      %4602 = vst.msk [vmem:[#allocation2 + $0x88] sm:$0xff] %vm3724, %v4578
      %4603 = vst.msk [vmem:[#allocation2 + $0x90] sm:$0xff] %vm3724, %v4579
      %4604 = vst.msk [vmem:[#allocation2 + $0x98] sm:$0xff] %vm3724, %v4580
      %4605 = vst.msk [vmem:[#allocation2 + $0xa0] sm:$0xff] %vm3724, %v4581
      %4606 = vst.msk [vmem:[#allocation2 + $0xa8] sm:$0xff] %vm3724, %v4582
      %4607 = vst.msk [vmem:[#allocation2 + $0xb0] sm:$0xff] %vm3724, %v4583
      %4608 = vst.msk [vmem:[#allocation2 + $0xb8] sm:$0xff] %vm3724, %v4584
      %v4609 = vld [vmem:[#allocation2] sm:$0xff]
      %v4610 = vld [vmem:[#allocation2 + $0x8] sm:$0xff]
      %v4611 = vld [vmem:[#allocation2 + $0x10] sm:$0xff]
      %v4612 = vld [vmem:[#allocation2 + $0x18] sm:$0xff]
      %v4613 = vld [vmem:[#allocation2 + $0x20] sm:$0xff]
      %v4614 = vld [vmem:[#allocation2 + $0x28] sm:$0xff]
      %v4615 = vld [vmem:[#allocation2 + $0x30] sm:$0xff]
      %v4616 = vld [vmem:[#allocation2 + $0x38] sm:$0xff]
      %v4617 = vld [vmem:[#allocation2 + $0x40] sm:$0xff]
      %v4618 = vld [vmem:[#allocation2 + $0x48] sm:$0xff]
      %v4619 = vld [vmem:[#allocation2 + $0x50] sm:$0xff]
      %v4620 = vld [vmem:[#allocation2 + $0x58] sm:$0xff]
      %v4621 = vld [vmem:[#allocation2 + $0x60] sm:$0xff]
      %v4622 = vld [vmem:[#allocation2 + $0x68] sm:$0xff]
      %v4623 = vld [vmem:[#allocation2 + $0x70] sm:$0xff]
      %v4624 = vld [vmem:[#allocation2 + $0x78] sm:$0xff]
      %v4625 = vld [vmem:[#allocation2 + $0x80] sm:$0xff]
      %v4626 = vld [vmem:[#allocation2 + $0x88] sm:$0xff]
      %v4627 = vld [vmem:[#allocation2 + $0x90] sm:$0xff]
      %v4628 = vld [vmem:[#allocation2 + $0x98] sm:$0xff]
      %v4629 = vld [vmem:[#allocation2 + $0xa0] sm:$0xff]
      %v4630 = vld [vmem:[#allocation2 + $0xa8] sm:$0xff]
      %v4631 = vld [vmem:[#allocation2 + $0xb0] sm:$0xff]
      %v4632 = vld [vmem:[#allocation2 + $0xb8] sm:$0xff]
      %v4633 = vld [vmem:[#allocation2 + $0xc0] sm:$0xff]
      %v4634 = vld [vmem:[#allocation2 + $0xc8] sm:$0xff]
      %v4635 = vld [vmem:[#allocation2 + $0xd0] sm:$0xff]
      %v4636 = vld [vmem:[#allocation2 + $0xd8] sm:$0xff]
      %v4637 = vld [vmem:[#allocation2 + $0xe0] sm:$0xff]
      %v4638 = vld [vmem:[#allocation2 + $0xe8] sm:$0xff]
      %v4639 = vld [vmem:[#allocation2 + $0xf0] sm:$0xff]
      %v4640 = vld [vmem:[#allocation2 + $0xf8] sm:$0xff]
      %v4641 = vld [vmem:[%s3 + $0x1] sm:$0x1]
      %v4642 = vlaneseq
      %v4643 = vshrl.u32 %v4642, 7
      %v4644 = vsub.s32 0, %v4643
      %v4645 = vrot.slane %v4641, %v4644
      %v4646 = vadd.f32 %v4609, %v4645
      %v4647 = vadd.f32 %v4610, %v4645
      %v4648 = vadd.f32 %v4611, %v4645
      %v4649 = vadd.f32 %v4612, %v4645
      %v4650 = vadd.f32 %v4613, %v4645
      %v4651 = vadd.f32 %v4614, %v4645
      %v4652 = vadd.f32 %v4615, %v4645
      %v4653 = vadd.f32 %v4616, %v4645
      %v4654 = vadd.f32 %v4617, %v4645
      %v4655 = vadd.f32 %v4618, %v4645
      %v4656 = vadd.f32 %v4619, %v4645
      %v4657 = vadd.f32 %v4620, %v4645
      %v4658 = vadd.f32 %v4621, %v4645
      %v4659 = vadd.f32 %v4622, %v4645
      %v4660 = vadd.f32 %v4623, %v4645
      %v4661 = vadd.f32 %v4624, %v4645
      %v4662 = vadd.f32 %v4625, %v4645
      %v4663 = vadd.f32 %v4626, %v4645
      %v4664 = vadd.f32 %v4627, %v4645
      %v4665 = vadd.f32 %v4628, %v4645
      %v4666 = vadd.f32 %v4629, %v4645
      %v4667 = vadd.f32 %v4630, %v4645
      %v4668 = vadd.f32 %v4631, %v4645
      %v4669 = vadd.f32 %v4632, %v4645
      %v4670 = vadd.f32 %v4633, %v4645
      %v4671 = vadd.f32 %v4634, %v4645
      %v4672 = vadd.f32 %v4635, %v4645
      %v4673 = vadd.f32 %v4636, %v4645
      %v4674 = vadd.f32 %v4637, %v4645
      %v4675 = vadd.f32 %v4638, %v4645
      %v4676 = vadd.f32 %v4639, %v4645
      %v4677 = vadd.f32 %v4640, %v4645
      %v4678 = vmax.f32 %v4646, 0.0
      %v4679 = vmax.f32 %v4647, 0.0
      %v4680 = vmax.f32 %v4648, 0.0
      %v4681 = vmax.f32 %v4649, 0.0
      %v4682 = vmax.f32 %v4650, 0.0
      %v4683 = vmax.f32 %v4651, 0.0
      %v4684 = vmax.f32 %v4652, 0.0
      %v4685 = vmax.f32 %v4653, 0.0
      %v4686 = vmax.f32 %v4654, 0.0
      %v4687 = vmax.f32 %v4655, 0.0
      %v4688 = vmax.f32 %v4656, 0.0
      %v4689 = vmax.f32 %v4657, 0.0
      %v4690 = vmax.f32 %v4658, 0.0
      %v4691 = vmax.f32 %v4659, 0.0
      %v4692 = vmax.f32 %v4660, 0.0
      %v4693 = vmax.f32 %v4661, 0.0
      %v4694 = vmax.f32 %v4662, 0.0
      %v4695 = vmax.f32 %v4663, 0.0
      %v4696 = vmax.f32 %v4664, 0.0
      %v4697 = vmax.f32 %v4665, 0.0
      %v4698 = vmax.f32 %v4666, 0.0
      %v4699 = vmax.f32 %v4667, 0.0
      %v4700 = vmax.f32 %v4668, 0.0
      %v4701 = vmax.f32 %v4669, 0.0
      %v4702 = vmax.f32 %v4670, 0.0
      %v4703 = vmax.f32 %v4671, 0.0
      %v4704 = vmax.f32 %v4672, 0.0
      %v4705 = vmax.f32 %v4673, 0.0
      %v4706 = vmax.f32 %v4674, 0.0
      %v4707 = vmax.f32 %v4675, 0.0
      %v4708 = vmax.f32 %v4676, 0.0
      %v4709 = vmax.f32 %v4677, 0.0
      %v4710 = vlaneseq
      %v4711 = vshrl.u32 %v4710, 7
      %v4712 = vadd.s32 %v4711, 8
      %v4713 = vadd.s32 %v4711, 16
      %v4714 = vadd.s32 %v4711, 24
      %v4715 = vadd.s32 %v4711, 32
      %v4716 = vadd.s32 %v4711, 40
      %v4717 = vadd.s32 %v4711, 48
      %v4718 = vadd.s32 %v4711, 56
      %v4719 = vlaneseq
      %v4720 = vand.u32 %v4719, 127
      %vm4721 = vcmp.eq.s32.totalorder %v4711, %v4720
      %vm4722 = vcmp.eq.s32.totalorder %v4712, %v4720
      %vm4723 = vcmp.eq.s32.totalorder %v4713, %v4720
      %vm4724 = vcmp.eq.s32.totalorder %v4714, %v4720
      %vm4725 = vcmp.eq.s32.totalorder %v4715, %v4720
      %vm4726 = vcmp.eq.s32.totalorder %v4716, %v4720
      %vm4727 = vcmp.eq.s32.totalorder %v4717, %v4720
      %vm4728 = vcmp.eq.s32.totalorder %v4718, %v4720
      %v4729 = vsel %vm4721, 1, 0
      %v4730 = vsel %vm4722, 1, 0
      %v4731 = vsel %vm4723, 1, 0
      %v4732 = vsel %vm4724, 1, 0
      %v4733 = vsel %vm4725, 1, 0
      %v4734 = vsel %vm4726, 1, 0
      %v4735 = vsel %vm4727, 1, 0
      %v4736 = vsel %vm4728, 1, 0
      %v4737 = vcvt.s32.f32 %v4729
      %v4738 = vcvt.s32.f32 %v4730
      %v4739 = vcvt.s32.f32 %v4731
      %v4740 = vcvt.s32.f32 %v4732
      %v4741 = vcvt.s32.f32 %v4733
      %v4742 = vcvt.s32.f32 %v4734
      %v4743 = vcvt.s32.f32 %v4735
      %v4744 = vcvt.s32.f32 %v4736
      %v4746 = vsel %vm3724, %v4737, 0
      %v4749 = vsel %vm3724, %v4738, 0
      %v4752 = vsel %vm3724, %v4739, 0
      %v4755 = vsel %vm3724, %v4740, 0
      %v4758 = vsel %vm3724, %v4741, 0
      %v4761 = vsel %vm3724, %v4742, 0
      %v4764 = vsel %vm3724, %v4743, 0
      %v4767 = vsel %vm3724, %v4744, 0
      %v4770 = vsel %vm3724, %v4678, 0
      %v4773 = vsel %vm3724, %v4679, 0
      %v4776 = vsel %vm3724, %v4680, 0
      %v4779 = vsel %vm3724, %v4681, 0
      %v4782 = vsel %vm3724, %v4682, 0
      %v4785 = vsel %vm3724, %v4683, 0
      %v4788 = vsel %vm3724, %v4684, 0
      %v4791 = vsel %vm3724, %v4685, 0
      %v4794 = vsel %vm3724, %v4686, 0
      %v4797 = vsel %vm3724, %v4687, 0
      %v4800 = vsel %vm3724, %v4688, 0
      %v4803 = vsel %vm3724, %v4689, 0
      %v4806 = vsel %vm3724, %v4690, 0
      %v4809 = vsel %vm3724, %v4691, 0
      %v4812 = vsel %vm3724, %v4692, 0
      %v4815 = vsel %vm3724, %v4693, 0
      %v4818 = vsel %vm3724, %v4694, 0
      %v4821 = vsel %vm3724, %v4695, 0
      %v4824 = vsel %vm3724, %v4696, 0
      %v4827 = vsel %vm3724, %v4697, 0
      %v4830 = vsel %vm3724, %v4698, 0
      %v4833 = vsel %vm3724, %v4699, 0
      %v4836 = vsel %vm3724, %v4700, 0
      %v4839 = vsel %vm3724, %v4701, 0
      %v4842 = vsel %vm3724, %v4702, 0
      %v4845 = vsel %vm3724, %v4703, 0
      %v4848 = vsel %vm3724, %v4704, 0
      %v4851 = vsel %vm3724, %v4705, 0
      %v4854 = vsel %vm3724, %v4706, 0
      %v4857 = vsel %vm3724, %v4707, 0
      %v4860 = vsel %vm3724, %v4708, 0
      %v4863 = vsel %vm3724, %v4709, 0
      %4865 = vmatprep.subr.mxu0 0.0
      %4866 = vmatpush1.xpose.msra.mxu0 %v4770
      %4867 = vmatprep.subr.mxu0 0.0
      %4868 = vmatpush1.xpose.msra.mxu0 %v4773
      %4869 = vmatprep.subr.mxu0 0.0
      %4870 = vmatpush1.xpose.msra.mxu0 %v4776
      %4871 = vmatprep.subr.mxu0 0.0
      %4872 = vmatpush1.xpose.msra.mxu0 %v4779
      %4873 = vmatprep.subr.mxu0 0.0
      %4874 = vmatpush1.xpose.msra.mxu0 %v4782
      %4875 = vmatprep.subr.mxu0 0.0
      %4876 = vmatpush1.xpose.msra.mxu0 %v4785
      %4877 = vmatprep.subr.mxu0 0.0
      %4878 = vmatpush1.xpose.msra.mxu0 %v4788
      %4879 = vmatprep.subr.mxu0 0.0
      %4880 = vmatpush1.xpose.msra.mxu0 %v4791
      %4881 = vmatprep.subr.mxu0 0.0
      %4882 = vmatpush1.xpose.msra.mxu0 %v4794
      %4883 = vmatprep.subr.mxu0 0.0
      %4884 = vmatpush1.xpose.msra.mxu0 %v4797
      %4885 = vmatprep.subr.mxu0 0.0
      %4886 = vmatpush1.xpose.msra.mxu0 %v4800
      %4887 = vmatprep.subr.mxu0 0.0
      %4888 = vmatpush1.xpose.msra.mxu0 %v4803
      %4889 = vmatprep.subr.mxu0 0.0
      %4890 = vmatpush1.xpose.msra.mxu0 %v4806
      %4891 = vmatprep.subr.mxu0 0.0
      %4892 = vmatpush1.xpose.msra.mxu0 %v4809
      %4893 = vmatprep.subr.mxu0 0.0
      %4894 = vmatpush1.xpose.msra.mxu0 %v4812
      %4895 = vmatprep.subr.mxu0 0.0
      %4896 = vmatpush1.xpose.msra.mxu0 %v4815
      %4897 = vmatprep.subr.mxu0 0.0
      %4898 = vmatpush1.xpose.msra.mxu0 %v4818
      %4899 = vmatprep.subr.mxu0 0.0
      %4900 = vmatpush1.xpose.msra.mxu0 %v4821
      %4901 = vmatprep.subr.mxu0 0.0
      %4902 = vmatpush1.xpose.msra.mxu0 %v4824
      %4903 = vmatprep.subr.mxu0 0.0
      %4904 = vmatpush1.xpose.msra.mxu0 %v4827
      %4905 = vmatprep.subr.mxu0 0.0
      %4906 = vmatpush1.xpose.msra.mxu0 %v4830
      %4907 = vmatprep.subr.mxu0 0.0
      %4908 = vmatpush1.xpose.msra.mxu0 %v4833
      %4909 = vmatprep.subr.mxu0 0.0
      %4910 = vmatpush1.xpose.msra.mxu0 %v4836
      %4911 = vmatprep.subr.mxu0 0.0
      %4912 = vmatpush1.xpose.msra.mxu0 %v4839
      %4913 = vmatprep.subr.mxu0 0.0
      %4914 = vmatpush1.xpose.msra.mxu0 %v4842
      %4915 = vmatprep.subr.mxu0 0.0
      %4916 = vmatpush1.xpose.msra.mxu0 %v4845
      %4917 = vmatprep.subr.mxu0 0.0
      %4918 = vmatpush1.xpose.msra.mxu0 %v4848
      %4919 = vmatprep.subr.mxu0 0.0
      %4920 = vmatpush1.xpose.msra.mxu0 %v4851
      %4921 = vmatprep.subr.mxu0 0.0
      %4922 = vmatpush1.xpose.msra.mxu0 %v4854
      %4923 = vmatprep.subr.mxu0 0.0
      %4924 = vmatpush1.xpose.msra.mxu0 %v4857
      %4925 = vmatprep.subr.mxu0 0.0
      %4926 = vmatpush1.xpose.msra.mxu0 %v4860
      %4927 = vmatprep.subr.mxu0 0.0
      %4928 = vmatpush1.xpose.msra.mxu0 %v4863
      %4929 = vmatprep.mubr.f32.mxu0 0.0
      %4930 = vmatmul.mubr.f32.gmra.mrb[0].mxu0 %v4746
      %v4931 = vpop.f32.mrb[0].mxu0
      %v4932 = vadd.f32 0.0, %v4931
      %v4933 = vpop.f32.mrb[0].mxu0
      %v4934 = vadd.f32 0.0, %v4933
      %4935 = vmatprep.mubr.f32.mxu0 0.0
      %4936 = vmatmul.mubr.f32.gmra.mrb[0].mxu0 %v4749
      %v4937 = vpop.f32.mrb[0].mxu0
      %v4938 = vadd.f32 0.0, %v4937
      %v4939 = vpop.f32.mrb[0].mxu0
      %v4940 = vadd.f32 0.0, %v4939
      %4941 = vmatprep.mubr.f32.mxu0 0.0
      %4942 = vmatmul.mubr.f32.gmra.mrb[0].mxu0 %v4752
      %v4943 = vpop.f32.mrb[0].mxu0
      %v4944 = vadd.f32 0.0, %v4943
      %v4945 = vpop.f32.mrb[0].mxu0
      %v4946 = vadd.f32 0.0, %v4945
      %4947 = vmatprep.mubr.f32.mxu0 0.0
      %4948 = vmatmul.mubr.f32.gmra.mrb[0].mxu0 %v4755
      %v4949 = vpop.f32.mrb[0].mxu0
      %v4950 = vadd.f32 0.0, %v4949
      %v4951 = vpop.f32.mrb[0].mxu0
      %v4952 = vadd.f32 0.0, %v4951
      %4953 = vmatprep.mubr.f32.mxu0 0.0
      %4954 = vmatmul.mubr.f32.gmra.mrb[0].mxu0 %v4758
      %v4955 = vpop.f32.mrb[0].mxu0
      %v4956 = vadd.f32 0.0, %v4955
      %v4957 = vpop.f32.mrb[0].mxu0
      %v4958 = vadd.f32 0.0, %v4957
      %4959 = vmatprep.mubr.f32.mxu0 0.0
      %4960 = vmatmul.mubr.f32.gmra.mrb[0].mxu0 %v4761
      %v4961 = vpop.f32.mrb[0].mxu0
      %v4962 = vadd.f32 0.0, %v4961
      %v4963 = vpop.f32.mrb[0].mxu0
      %v4964 = vadd.f32 0.0, %v4963
      %4965 = vmatprep.mubr.f32.mxu0 0.0
      %4966 = vmatmul.mubr.f32.gmra.mrb[0].mxu0 %v4764
      %v4967 = vpop.f32.mrb[0].mxu0
      %v4968 = vadd.f32 0.0, %v4967
      %v4969 = vpop.f32.mrb[0].mxu0
      %v4970 = vadd.f32 0.0, %v4969
      %4971 = vmatprep.mubr.f32.mxu0 0.0
      %4972 = vmatmul.mubr.f32.gmra.mrb[0].mxu0 %v4767
      %v4973 = vpop.f32.mrb[0].mxu0
      %v4974 = vadd.f32 0.0, %v4973
      %v4975 = vpop.f32.mrb[0].mxu0
      %v4976 = vadd.f32 0.0, %v4975
      %4977 = vdwg.mxu0
      %4978 = vst [vmem:[%s197] sm:$0xff] %v4932
      %4979 = vst [vmem:[%s197 + $0x8] sm:$0xff] %v4934
      %4980 = vst [vmem:[%s197 + $0x10] sm:$0xff] %v4938
      %4981 = vst [vmem:[%s197 + $0x18] sm:$0xff] %v4940
      %4982 = vst [vmem:[%s197 + $0x20] sm:$0xff] %v4944
      %4983 = vst [vmem:[%s197 + $0x28] sm:$0xff] %v4946
      %4984 = vst [vmem:[%s197 + $0x30] sm:$0xff] %v4950
      %4985 = vst [vmem:[%s197 + $0x38] sm:$0xff] %v4952
      %4986 = vst [vmem:[%s197 + $0x40] sm:$0xff] %v4956
      %4987 = vst [vmem:[%s197 + $0x48] sm:$0xff] %v4958
      %4988 = vst [vmem:[%s197 + $0x50] sm:$0xff] %v4962
      %4989 = vst [vmem:[%s197 + $0x58] sm:$0xff] %v4964
      %4990 = vst [vmem:[%s197 + $0x60] sm:$0xff] %v4968
      %4991 = vst [vmem:[%s197 + $0x68] sm:$0xff] %v4970
      %4992 = vst [vmem:[%s197 + $0x70] sm:$0xff] %v4974
      %4993 = vst [vmem:[%s197 + $0x78] sm:$0xff] %v4976
      %p4994 = scmp.lt.s32.totalorder %s15, 1
      %s4995 = scalar_select %p4994, %s15, 1
      %s4996 = smul.addr %s4995, 16
      %s4997 = smul.addr %s4996, 8
      %s4998 = scalar_lea.vmem %s4, %s4997
      // Predicated region
      $region37: #{sepconv3d_pallas.1} parent=35 // pred_check
        %p4999 = pneg %p122
      $region38: #{sepconv3d_pallas.1} parent=35 // pred_check_branch
        %5001 = sbr.rel (%p4999) target = $region40
      $region39: #{sepconv3d_pallas.1} parent=35 // pred_region
        _
      $region40: #{sepconv3d_pallas.1} parent=35 // pred_fallthru
        _
    $region36: #{sepconv3d_pallas.1} parent=5 // pred_fallthru
      _
    %p5002 = scmp.le.s32.totalorder 2, %s10
    // Predicated region
    $region41: #{sepconv3d_pallas.1} parent=5 // pred_check
      %p5003 = pneg %p5002
    $region42: #{sepconv3d_pallas.1} parent=5 // pred_check_branch
      %5005 = sbr.rel (%p5003) target = $region44
    $region43: #{sepconv3d_pallas.1} parent=5 // pred_region
      %s5006 = ssub.s32 %s10, 2
      // Predicated region
      $region45: #{sepconv3d_pallas.1} parent=43 // pred_check
        %p5007 = pneg %p128
      $region46: #{sepconv3d_pallas.1} parent=43 // pred_check_branch
        %5009 = sbr.rel (%p5007) target = $region48
      $region47: #{sepconv3d_pallas.1} parent=43 // pred_region
        %p5010 = scmp.lt.s32.totalorder %s16, 1
        %s5011 = scalar_select %p5010, %s16, 1
        %s5012 = smul.addr %s5011, 16
        %s5013 = smul.addr %s5012, 8
        %s5014 = scalar_lea.vmem %s4, %s5013
      $region48: #{sepconv3d_pallas.1} parent=43 // pred_fallthru
        _
    $region44: #{sepconv3d_pallas.1} parent=5 // pred_fallthru
      _
  $region6: #{sepconv3d_pallas.1} parent=0 // loop_footer
    %s14 = sadd.s32 1, %s10
  $region7: #{sepconv3d_pallas.1} parent=0 // loop_footer_branch
    %9 = sbr.rel target = $region3
  $region8: #{sepconv3d_pallas.1} parent=0 // loop_exit
    _

</llo_original>
